<compile_context>
chip_gen: v7x
topology: tpu7x:2x2x1
jax: 0.10.0
libtpu: 0.0.40
codegen_flags: <defaults>
</compile_context>

<pallas_src>
import jax
import jax.numpy as jnp
from jax.experimental import pallas as pl
from jax.experimental.pallas import tpu as pltpu


def _relpos_kernel(q_ref, he_ref, we_ref, exp_ref, o_ref):
    """One (batch*head, x-tile) grid step.

    q_ref:   (1, Tx, W, D)   queries for Tx image rows
    he_ref:  (Tx, D, H)      He^T[x, d, u] = rel_height[rel_ind[x, u], d]
    we_ref:  (W,  D, W)      We^T[y, d, v] = rel_width [rel_ind[y, v], d]
    exp_ref: (H+W, H*W)      0/1 expand matrix (broadcast-add as a matmul)
    o_ref:   (1, Tx, W, H*W) lane-dense output, lane index k = u*W + v
    """
    q = q_ref[0].astype(jnp.float32)          # (Tx, W, D)
    he = he_ref[...].astype(jnp.float32)      # (Tx, D, H)
    we = we_ref[...].astype(jnp.float32)      # (W, D, W)
    exp = exp_ref[...].astype(jnp.float32)    # (H+W, H*W)

    # Height scores: hs[x, y, u] = sum_d q[x, y, d] * He[x, u, d]
    hs = jnp.einsum("xyd,xdu->xyu", q, he, preferred_element_type=jnp.float32)
    # Width scores:  ws[x, y, v] = sum_d q[x, y, d] * We[y, v, d]
    ws = jnp.einsum("xyd,ydv->xyv", q, we, preferred_element_type=jnp.float32)

    # Broadcast add, computed lane-dense in one MXU matmul:
    #   out[x, y, u*W + v] = hs[x, y, u] + ws[x, y, v]
    scores = jnp.concatenate([hs, ws], axis=-1)               # (Tx, W, H+W)
    out = jnp.einsum("xyj,jk->xyk", scores, exp,
                     preferred_element_type=jnp.float32)      # (Tx, W, H*W)
    o_ref[0] = out.astype(o_ref.dtype)


def _pick_x_tile(h, w, itemsize, budget_bytes=2 << 20):
    """Largest divisor of H whose output tile (Tx, W, H*W) fits the budget."""
    bytes_per_x_row = w * h * w * itemsize
    tx = int(max(1, min(h, budget_bytes // max(bytes_per_x_row, 1))))
    while h % tx:
        tx -= 1
    return tx


def rel_pos_emb(q, rel_height, rel_width, max_pos_size):
    """Pallas implementation of RelPosEmb.forward.

    q:          (B, heads, H, W, D) float32
    rel_height: (2*max_pos_size-1, D) embedding table
    rel_width:  (2*max_pos_size-1, D) embedding table
    returns:    (B, heads, H, W, H, W)
    """
    B, heads, h, w, d = q.shape
    bh = B * heads
    hw = h * w

    # --- glue: rel_ind buffer + embedding gathers (plain JAX) --------------
    deltas = jnp.arange(max_pos_size)[None, :] - jnp.arange(max_pos_size)[:, None]
    rel_ind = deltas + max_pos_size - 1                       # (max, max)
    He = rel_height[rel_ind[:h, :h]]                          # (H, H, D) [x, u, d]
    We = rel_width[rel_ind[:w, :w]]                           # (W, W, D) [y, v, d]
    He_t = jnp.swapaxes(He, 1, 2)                             # (H, D, H) [x, d, u]
    We_t = jnp.swapaxes(We, 1, 2)                             # (W, D, W) [y, d, v]

    # Constant 0/1 expand matrix realizing the (u, v) broadcast add as a
    # single lane-dense matmul: row u -> lanes u*W..u*W+W-1, row H+v -> lanes v::W.
    expand_h = jnp.repeat(jnp.eye(h, dtype=q.dtype), w, axis=1)   # (H, H*W)
    expand_w = jnp.tile(jnp.eye(w, dtype=q.dtype), (1, h))        # (W, H*W)
    expand = jnp.concatenate([expand_h, expand_w], axis=0)        # (H+W, H*W)

    q4 = q.reshape(bh, h, w, d)                               # fold B, heads

    tx = _pick_x_tile(h, w, jnp.dtype(q.dtype).itemsize)
    n_xt = h // tx

    out = pl.pallas_call(
        _relpos_kernel,
        out_shape=jax.ShapeDtypeStruct((bh, h, w, hw), q.dtype),
        grid=(bh, n_xt),
        in_specs=[
            pl.BlockSpec((1, tx, w, d), lambda b, xt: (b, xt, 0, 0)),
            pl.BlockSpec((tx, d, h), lambda b, xt: (xt, 0, 0)),
            pl.BlockSpec((w, d, w), lambda b, xt: (0, 0, 0)),
            pl.BlockSpec((h + w, hw), lambda b, xt: (0, 0)),
        ],
        out_specs=pl.BlockSpec((1, tx, w, hw), lambda b, xt: (b, xt, 0, 0)),
        compiler_params=pltpu.CompilerParams(
            dimension_semantics=("parallel", "parallel")
        ),
    )(q4, He_t, We_t, expand)

    # Free, row-major metadata reshape back to the 6-D module output layout.
    return out.reshape(B, heads, h, w, h, w)


if __name__ == "__main__":
    key = jax.random.PRNGKey(0)
    k1, k2, k3 = jax.random.split(key, 3)

    max_pos_size = 16
    dim_head = 32
    B, heads, h, w = 2, 2, 8, 8

    # Deterministic synthetic "parameters" (nn.Embedding weights ~ N(0,1)).
    rel_height = jax.random.normal(k1, (2 * max_pos_size - 1, dim_head), jnp.float32)
    rel_width = jax.random.normal(k2, (2 * max_pos_size - 1, dim_head), jnp.float32)
    q = jax.random.normal(k3, (B, heads, h, w, dim_head), jnp.float32)

    out = rel_pos_emb(q, rel_height, rel_width, max_pos_size)
    out = jax.block_until_ready(out)

    # Pure-JAX reference (mirrors the PyTorch einsums exactly).
    deltas = jnp.arange(max_pos_size)[None, :] - jnp.arange(max_pos_size)[:, None]
    rel_ind = deltas + max_pos_size - 1
    He_ref = rel_height[rel_ind[:h, :h]]                      # (H, H, D)
    We_ref = rel_width[rel_ind[:w, :w]]                       # (W, W, D)
    hs_ref = jnp.einsum("bhxyd,xud->bhxyu", q, He_ref)
    ws_ref = jnp.einsum("bhxyd,yvd->bhxyv", q, We_ref)
    ref = hs_ref[..., :, None] + ws_ref[..., None, :]         # (B, heads, H, W, H, W)

    assert out.shape == (B, heads, h, w, h, w)
    assert jnp.allclose(out, ref, atol=1e-4, rtol=1e-4)
    print("KERNEL_OK")
</pallas_src>

<mosaic_0001>
module attributes {stable_mosaic.version = 11 : i64} {
  func.func @_relpos_kernel(%arg0: i32, %arg1: i32, %arg2: memref<1x8x8x32xf32, #tpu.memory_space<vmem>>, %arg3: memref<8x32x8xf32, #tpu.memory_space<vmem>>, %arg4: memref<8x32x8xf32, #tpu.memory_space<vmem>>, %arg5: memref<16x64xf32, #tpu.memory_space<vmem>>, %arg6: memref<1x8x8x64xf32, #tpu.memory_space<vmem>>) attributes {dimension_semantics = [#tpu.dimension_semantics<parallel>, #tpu.dimension_semantics<parallel>], iteration_bounds = array<i64: 4, 1>, scalar_prefetch = 0 : i64, scratch_operands = 0 : i64, tpu.core_type = #tpu.core_type<tc>, window_params = [{transform_indices = @transform_0, window_bounds = array<i64: 1, 8, 8, 32>}, {transform_indices = @transform_1, window_bounds = array<i64: 8, 32, 8>}, {pipeline_mode = #tpu.pipeline_mode<synchronous>, transform_indices = @transform_2, window_bounds = array<i64: 8, 32, 8>}, {pipeline_mode = #tpu.pipeline_mode<synchronous>, transform_indices = @transform_3, window_bounds = array<i64: 16, 64>}, {transform_indices = @transform_4, window_bounds = array<i64: 1, 8, 8, 64>}]} {
    %c0 = arith.constant 0 : index
    %c0_0 = arith.constant 0 : index
    %c0_1 = arith.constant 0 : index
    %c0_2 = arith.constant 0 : index
    %0 = vector.load %arg2[%c0, %c0_0, %c0_1, %c0_2] : memref<1x8x8x32xf32, #tpu.memory_space<vmem>>, vector<1x8x8x32xf32>
    %1 = vector.shape_cast %0 : vector<1x8x8x32xf32> to vector<8x8x32xf32>
    %c0_3 = arith.constant 0 : index
    %c0_4 = arith.constant 0 : index
    %c0_5 = arith.constant 0 : index
    %2 = vector.load %arg3[%c0_3, %c0_4, %c0_5] : memref<8x32x8xf32, #tpu.memory_space<vmem>>, vector<8x32x8xf32>
    %c0_6 = arith.constant 0 : index
    %c0_7 = arith.constant 0 : index
    %c0_8 = arith.constant 0 : index
    %3 = vector.load %arg4[%c0_6, %c0_7, %c0_8] : memref<8x32x8xf32, #tpu.memory_space<vmem>>, vector<8x32x8xf32>
    %c0_9 = arith.constant 0 : index
    %c0_10 = arith.constant 0 : index
    %4 = vector.load %arg5[%c0_9, %c0_10] : memref<16x64xf32, #tpu.memory_space<vmem>>, vector<16x64xf32>
    "tpu.trace_start"() <{level = 10 : i32, message = "xyd,xdu->xyu"}> : () -> ()
    %cst = arith.constant dense<0.000000e+00> : vector<8x8x8xf32>
    %5 = tpu.matmul %1, %2, %cst {dimension_numbers = #tpu.dot_dimension_numbers<[2], [1], [1], [2], [0, 0, 0, 1, 1, 2], [0], [0]>} : vector<8x8x32xf32>, vector<8x32x8xf32>, vector<8x8x8xf32> -> vector<8x8x8xf32>
    "tpu.trace_stop"() : () -> ()
    "tpu.trace_start"() <{level = 10 : i32, message = "xyd,ydv->xyv"}> : () -> ()
    %cst_11 = arith.constant dense<0.000000e+00> : vector<8x8x8xf32>
    %6 = tpu.matmul %3, %1, %cst_11 {dimension_numbers = #tpu.dot_dimension_numbers<[1], [2], [2], [0], [0, 0, 0, 2, 1, 0], [0], [1]>} : vector<8x32x8xf32>, vector<8x8x32xf32>, vector<8x8x8xf32> -> vector<8x8x8xf32>
    %7 = tpu.transpose %6, [2, 0, 1] : vector<8x8x8xf32> -> vector<8x8x8xf32>
    "tpu.trace_stop"() : () -> ()
    %8 = tpu.concatenate %5, %7 in 2 : vector<8x8x8xf32>, vector<8x8x8xf32> -> vector<8x8x16xf32>
    "tpu.trace_start"() <{level = 10 : i32, message = "xyj,jk->xyk"}> : () -> ()
    %cst_12 = arith.constant dense<0.000000e+00> : vector<8x8x64xf32>
    %9 = tpu.matmul %8, %4, %cst_12 {dimension_numbers = #tpu.dot_dimension_numbers<[2], [0], [0, 1], [1], [0, 0, 0, 1, 1, 1], [], []>} : vector<8x8x16xf32>, vector<16x64xf32>, vector<8x8x64xf32> -> vector<8x8x64xf32>
    "tpu.trace_stop"() : () -> ()
    %c0_13 = arith.constant 0 : index
    %c0_14 = arith.constant 0 : index
    %c0_15 = arith.constant 0 : index
    %c0_16 = arith.constant 0 : index
    %10 = vector.load %arg6[%c0_13, %c0_14, %c0_15, %c0_16] : memref<1x8x8x64xf32, #tpu.memory_space<vmem>>, vector<1x8x8x64xf32>
    %11 = vector.shape_cast %10 : vector<1x8x8x64xf32> to vector<8x8x64xf32>
    %12 = vector.shape_cast %9 : vector<8x8x64xf32> to vector<1x8x8x64xf32>
    tpu.vector_store %arg6[%c0_13, %c0_14, %c0_15, %c0_16], %12 {strides = array<i32>} : memref<1x8x8x64xf32, #tpu.memory_space<vmem>>, vector<1x8x8x64xf32>,
    return
  }
  func.func @transform_0(%arg0: i32, %arg1: i32) -> (i32, i32, i32, i32) {
    %c0_i32 = arith.constant 0 : i32
    %c0_i32_0 = arith.constant 0 : i32
    %c0_i32_1 = arith.constant 0 : i32
    return %arg0, %arg1, %c0_i32, %c0_i32_0 : i32, i32, i32, i32
  }
  func.func @transform_1(%arg0: i32, %arg1: i32) -> (i32, i32, i32) {
    %c0_i32 = arith.constant 0 : i32
    %c0_i32_0 = arith.constant 0 : i32
    %c0_i32_1 = arith.constant 0 : i32
    return %arg1, %c0_i32, %c0_i32_0 : i32, i32, i32
  }
  func.func @transform_2(%arg0: i32, %arg1: i32) -> (i32, i32, i32) {
    %c0_i32 = arith.constant 0 : i32
    %c0_i32_0 = arith.constant 0 : i32
    %c0_i32_1 = arith.constant 0 : i32
    %c0_i32_2 = arith.constant 0 : i32
    return %c0_i32, %c0_i32_0, %c0_i32_1 : i32, i32, i32
  }
  func.func @transform_3(%arg0: i32, %arg1: i32) -> (i32, i32) {
    %c0_i32 = arith.constant 0 : i32
    %c0_i32_0 = arith.constant 0 : i32
    %c0_i32_1 = arith.constant 0 : i32
    return %c0_i32, %c0_i32_0 : i32, i32
  }
  func.func @transform_4(%arg0: i32, %arg1: i32) -> (i32, i32, i32, i32) {
    %c0_i32 = arith.constant 0 : i32
    %c0_i32_0 = arith.constant 0 : i32
    %c0_i32_1 = arith.constant 0 : i32
    return %arg0, %arg1, %c0_i32, %c0_i32_0 : i32, i32, i32, i32
  }
}

</mosaic_0001>

<llo_original>
// kernel: tpu_custom_call.1
$region0: #{tpu_custom_call.1}
  #allocation0 [shape = 'u32[]', space=smem, size = 0x4, offset = 0x4, fixed_abs, tag = 'smem constant byte address 0x4 - core index']
  #allocation1 [shape = 'u32[144,128]{1,0:T(1,128)}', space=vmem, size = 0x12000, scoped, tag = 'internal scratch']
  %s0 = inlined_call_operand.vmem [shape: f32[4,8,8,32], index: 0, kind: input, shape index: {}]
  %s1 = inlined_call_operand.vmem [shape: f32[8,32,8], index: 1, kind: input, shape index: {}]
  %s2 = inlined_call_operand.vmem [shape: f32[8,32,8], index: 2, kind: input, shape index: {}]
  %s3 = inlined_call_operand.vmem [shape: f32[16,64], index: 3, kind: input, shape index: {}]
  %s4 = inlined_call_operand.hbm [shape: f32[4,8,8,64], index: 4, kind: output, shape index: {}]
  %s5 = sld [smem:[#allocation0]]
  $region49: #{tpu_custom_call.1} parent=0
    _
  %s7 = ssub.s32 1, %s5
  %s8 = scalar_select 0, %s7, %s5
  $region1: #{tpu_custom_call.1} parent=0
    #allocation2 [shape = 'u8[65536]{0}', space=vmem, size = 0x10000, scoped, tag = 'output window, operand 0']
    #allocation3 [shape = 's32[2]{0}', space=sflag, size = 0x8, scoped, tag = 'scoped memory for tpu_custom_call.1']
    %9 = vsyncpa [#allocation3], 0
    %s10 = scalar_lea.sflag [#allocation3], 1
    %11 = vsyncpa %s10, 0
    loop: start=0, step=1, limit=6
    $region2: #{tpu_custom_call.1} parent=1 // loop_pre_header
      _
    $region3: #{tpu_custom_call.1} parent=1 // loop_header
      %s13 = sphi 0, %s17
      %p14 = scmp.ge.s32.totalorder %s13, 6
      %s20 = sphi 0, %s32
      %s21 = sphi 0, %s28
      %s22 = sphi 0, %s20
      %s23 = sphi 0, %s21
      %s24 = sphi 0, %s22
      %s25 = sphi 0, %s23
      %s37 = sphi 0, %s39
      %s40 = sphi 0, %s37
      %s41 = sphi 0, %s40
      %s57 = sphi 0, %s41
      %s63 = sphi 0, %s65
      %s66 = sphi 0, %s63
      %s67 = sphi 0, %s66
      %s83 = sphi 0, %s67
      %s87 = sphi 0, %s87
      %s89 = sphi 0, %s87
      %s90 = sphi 0, %s89
      %s104 = sphi 0, %s90
      %s108 = sphi 0, %s108
      %s110 = sphi 0, %s108
      %s111 = sphi 0, %s110
      %s125 = sphi 0, %s111
      %s133 = sphi 0, %s135
      %s136 = sphi 0, %s133
      %s137 = sphi 0, %s136
      %s153 = sphi 0, %s137
    $region4: #{tpu_custom_call.1} parent=1 // loop_header_branch
      %16 = sbr.rel (%p14) target = $region8
    $region5: #{tpu_custom_call.1} parent=1 // loop_body
      %s18 = ssub.s32 %s13, 1
      %s19 = ssub.s32 %s13, 2
      %s26 = sadd.s32 1, %s21
      %p27 = scmp.ge.s32.totalorder %s26, 1
      %s28 = scalar_select %p27, 0, %s26
      %s29 = sadd.s32 1, %s20
      %s30 = scalar_select %p27, %s29, %s20
      %p31 = scmp.ge.s32.totalorder %s30, 4
      %s32 = scalar_select %p31, 0, %s30
      %s33 = ssub.s32 %s20, %s32
      %s34 = ssub.s32 %s21, %s28
      %s35 = sor.u32 %s33, %s34
      %p36 = scmp.eq.s32.totalorder %s35, 0
      %s38 = sadd.s32 %s37, 1
      %s39 = scalar_select %p36, %s37, %s38
      %p42 = pneg %p36
      %p43 = scmp.eq.s32.totalorder %s13, 3
      %p44 = por %p42, %p43
      %p45 = scmp.ne.s32.totalorder %s37, %s40
      %p46 = scmp.eq.s32.totalorder %s13, 0
      %p47 = por %p45, %p46
      %p48 = scmp.ne.s32.totalorder %s37, %s40
      %p49 = scmp.eq.s32.totalorder %s18, 3
      %p50 = por %p48, %p49
      %p51 = scmp.ne.s32.totalorder %s40, %s41
      %p52 = scmp.eq.s32.totalorder %s18, 0
      %p53 = por %p51, %p52
      %p54 = scmp.ne.s32.totalorder %s40, %s41
      %p55 = scmp.eq.s32.totalorder %s19, 3
      %p56 = por %p54, %p55
      %p58 = scmp.ne.s32.totalorder %s41, %s57
      %p59 = scmp.eq.s32.totalorder %s19, 0
      %p60 = por %p58, %p59
      %s61 = ssub.s32 %s21, %s28
      %p62 = scmp.eq.s32.totalorder %s61, 0
      %s64 = sadd.s32 %s63, 1
      %s65 = scalar_select %p62, %s63, %s64
      %p68 = pneg %p62
      %p69 = scmp.eq.s32.totalorder %s13, 3
      %p70 = por %p68, %p69
      %p71 = scmp.ne.s32.totalorder %s63, %s66
      %p72 = scmp.eq.s32.totalorder %s13, 0
      %p73 = por %p71, %p72
      %p74 = scmp.ne.s32.totalorder %s63, %s66
      %p75 = scmp.eq.s32.totalorder %s18, 3
      %p76 = por %p74, %p75
      %p77 = scmp.ne.s32.totalorder %s66, %s67
      %p78 = scmp.eq.s32.totalorder %s18, 0
      %p79 = por %p77, %p78
      %p80 = scmp.ne.s32.totalorder %s66, %s67
      %p81 = scmp.eq.s32.totalorder %s19, 3
      %p82 = por %p80, %p81
      %p84 = scmp.ne.s32.totalorder %s67, %s83
      %p85 = scmp.eq.s32.totalorder %s19, 0
      %p86 = por %p84, %p85
      %s88 = sadd.s32 %s87, 1
      %p91 = scmp.eq.s32.totalorder %s13, 3
      %p92 = scmp.ne.s32.totalorder %s87, %s89
      %p93 = scmp.eq.s32.totalorder %s13, 0
      %p94 = por %p92, %p93
      %p95 = scmp.ne.s32.totalorder %s87, %s89
      %p96 = scmp.eq.s32.totalorder %s18, 3
      %p97 = por %p95, %p96
      %p98 = scmp.ne.s32.totalorder %s89, %s90
      %p99 = scmp.eq.s32.totalorder %s18, 0
      %p100 = por %p98, %p99
      %p101 = scmp.ne.s32.totalorder %s89, %s90
      %p102 = scmp.eq.s32.totalorder %s19, 3
      %p103 = por %p101, %p102
      %p105 = scmp.ne.s32.totalorder %s90, %s104
      %p106 = scmp.eq.s32.totalorder %s19, 0
      %p107 = por %p105, %p106
      %s109 = sadd.s32 %s108, 1
      %p112 = scmp.eq.s32.totalorder %s13, 3
      %p113 = scmp.ne.s32.totalorder %s108, %s110
      %p114 = scmp.eq.s32.totalorder %s13, 0
      %p115 = por %p113, %p114
      %p116 = scmp.ne.s32.totalorder %s108, %s110
      %p117 = scmp.eq.s32.totalorder %s18, 3
      %p118 = por %p116, %p117
      %p119 = scmp.ne.s32.totalorder %s110, %s111
      %p120 = scmp.eq.s32.totalorder %s18, 0
      %p121 = por %p119, %p120
      %p122 = scmp.ne.s32.totalorder %s110, %s111
      %p123 = scmp.eq.s32.totalorder %s19, 3
      %p124 = por %p122, %p123
      %p126 = scmp.ne.s32.totalorder %s111, %s125
      %p127 = scmp.eq.s32.totalorder %s19, 0
      %p128 = por %p126, %p127
      %s129 = ssub.s32 %s20, %s32
      %s130 = ssub.s32 %s21, %s28
      %s131 = sor.u32 %s129, %s130
      %p132 = scmp.eq.s32.totalorder %s131, 0
      %s134 = sadd.s32 %s133, 1
      %s135 = scalar_select %p132, %s133, %s134
      %p138 = pneg %p132
      %p139 = scmp.eq.s32.totalorder %s13, 3
      %p140 = por %p138, %p139
      %p141 = scmp.ne.s32.totalorder %s133, %s136
      %p142 = scmp.eq.s32.totalorder %s13, 0
      %p143 = por %p141, %p142
      %p144 = scmp.ne.s32.totalorder %s133, %s136
      %p145 = scmp.eq.s32.totalorder %s18, 3
      %p146 = por %p144, %p145
      %p147 = scmp.ne.s32.totalorder %s136, %s137
      %p148 = scmp.eq.s32.totalorder %s18, 0
      %p149 = por %p147, %p148
      %p150 = scmp.ne.s32.totalorder %s136, %s137
      %p151 = scmp.eq.s32.totalorder %s19, 3
      %p152 = por %p150, %p151
      %p154 = scmp.ne.s32.totalorder %s137, %s153
      %p155 = scmp.eq.s32.totalorder %s19, 0
      %p156 = por %p154, %p155
      %p157 = scmp.le.s32.totalorder 1, %s13
      %p158 = scmp.lt.s32.totalorder %s13, 5
      %p159 = pnand %p157, %p158
      %p160 = pneg %p159
      // Predicated region
      $region9: #{tpu_custom_call.1} parent=5 // pred_check
        _
      $region10: #{tpu_custom_call.1} parent=5 // pred_check_branch
        %162 = sbr.rel (%p159) target = $region12
      $region11: #{tpu_custom_call.1} parent=5 // pred_region
        %s163 = ssub.s32 %s13, 1
        // Predicated region
        $region13: #{tpu_custom_call.1} parent=11 // pred_check
          %p164 = pneg %p79
        $region14: #{tpu_custom_call.1} parent=11 // pred_check_branch
          %166 = sbr.rel (%p164) target = $region16
        $region15: #{tpu_custom_call.1} parent=11 // pred_region
          %s167 = smul.u32 8, %s23
          %p168 = scmp.lt.s32.totalorder %s167, 7
          %s169 = scalar_select %p168, %s167, 7
          %s170 = smul.addr %s169, 4
          %s171 = smul.addr %s170, 8
          %s172 = scalar_lea.vmem %s1, %s171
          %s173 = smul.u32 8, %s23
        $region16: #{tpu_custom_call.1} parent=11 // pred_fallthru
          _
        // Predicated region
        $region17: #{tpu_custom_call.1} parent=11 // pred_check
          %p174 = pneg %p100
        $region18: #{tpu_custom_call.1} parent=11 // pred_check_branch
          %176 = sbr.rel (%p174) target = $region20
        $region19: #{tpu_custom_call.1} parent=11 // pred_region
          _
        $region20: #{tpu_custom_call.1} parent=11 // pred_fallthru
          _
        // Predicated region
        $region21: #{tpu_custom_call.1} parent=11 // pred_check
          %p177 = pneg %p121
        $region22: #{tpu_custom_call.1} parent=11 // pred_check_branch
          %179 = sbr.rel (%p177) target = $region24
        $region23: #{tpu_custom_call.1} parent=11 // pred_region
          _
        $region24: #{tpu_custom_call.1} parent=11 // pred_fallthru
          _
      $region12: #{tpu_custom_call.1} parent=5 // pred_fallthru
        _
      %p180 = scmp.lt.s32.totalorder %s13, 4
      // Predicated region
      $region25: #{tpu_custom_call.1} parent=5 // pred_check
        %p181 = pneg %p180
      $region26: #{tpu_custom_call.1} parent=5 // pred_check_branch
        %183 = sbr.rel (%p181) target = $region28
      $region27: #{tpu_custom_call.1} parent=5 // pred_region
        // Predicated region
        $region29: #{tpu_custom_call.1} parent=27 // pred_check
          %p184 = pneg %p47
        $region30: #{tpu_custom_call.1} parent=27 // pred_check_branch
          %186 = sbr.rel (%p184) target = $region32
        $region31: #{tpu_custom_call.1} parent=27 // pred_region
          %s187 = smul.u32 8, %s21
          %p188 = scmp.lt.s32.totalorder %s20, 3
          %s189 = scalar_select %p188, %s20, 3
          %p190 = scmp.lt.s32.totalorder %s187, 7
          %s191 = scalar_select %p190, %s187, 7
          %s192 = smul.addr %s189, 8
          %s193 = sadd.s32 %s191, %s192
          %s194 = smul.addr %s193, 8
          %s195 = scalar_lea.vmem %s0, %s194
          %s196 = smul.u32 8, %s21
        $region32: #{tpu_custom_call.1} parent=27 // pred_fallthru
          _
      $region28: #{tpu_custom_call.1} parent=5 // pred_fallthru
        _
      %p197 = scmp.le.s32.totalorder 1, %s13
      %p198 = scmp.lt.s32.totalorder %s13, 5
      %p199 = pnand %p197, %p198
      %p200 = pneg %p199
      // Predicated region
      $region33: #{tpu_custom_call.1} parent=5 // pred_check
        _
      $region34: #{tpu_custom_call.1} parent=5 // pred_check_branch
        %202 = sbr.rel (%p199) target = $region36
      $region35: #{tpu_custom_call.1} parent=5 // pred_region
        %s203 = ssub.s32 %s13, 1
        %s204 = smul.u32 8, %s23
        %p205 = scmp.lt.s32.totalorder %s22, 3
        %s206 = scalar_select %p205, %s22, 3
        %p207 = scmp.lt.s32.totalorder %s204, 7
        %s208 = scalar_select %p207, %s204, 7
        %s209 = smul.addr %s206, 8
        %s210 = sadd.s32 %s208, %s209
        %s211 = smul.addr %s210, 8
        %s212 = scalar_lea.vmem %s0, %s211
        %p213 = pneg %p53
        %p214 = pneg %p50
        %s215 = smul.u32 8, %s23
        %p216 = scmp.lt.s32.totalorder %s215, 7
        %s217 = scalar_select %p216, %s215, 7
        %s218 = smul.addr %s217, 4
        %s219 = smul.addr %s218, 8
        %s220 = scalar_lea.vmem %s1, %s219
        %p221 = pneg %p79
        %p222 = pneg %p76
        %p223 = pneg %p100
        %p224 = pneg %p97
        %p225 = pneg %p121
        %p226 = pneg %p118
        %p227 = pneg %p149
        %p228 = pneg %p146
        %s229 = sand.u32 %s136, 1
        %s230 = scalar_lea.sflag [#allocation3], %s229
        %s231 = sand.u32 %s136, 1
        %s232 = smul.addr %s231, 64
        %s233 = scalar_lea.vmem [#allocation2], %s232
        %s234 = smul.u32 8, %s23
        %p235 = scmp.lt.s32.totalorder %s22, 3
        %s236 = scalar_select %p235, %s22, 3
        %p237 = scmp.lt.s32.totalorder %s234, 7
        %s238 = scalar_select %p237, %s234, 7
        %s239 = smul.addr %s236, 8
        %s240 = sadd.s32 %s238, %s239
        %s241 = smul.addr %s240, 8
        %s242 = scalar_lea.vmem %s0, %s241
        %s243 = smul.u32 8, %s23
        %s244 = smul.u32 8, %s23
        %p245 = scmp.lt.s32.totalorder %s244, 7
        %s246 = scalar_select %p245, %s244, 7
        %s247 = smul.addr %s246, 4
        %s248 = smul.addr %s247, 8
        %s249 = scalar_lea.vmem %s1, %s248
        %s250 = smul.u32 8, %s23
        %s251 = smul.u32 8, %s23
        %v252 = vld [vmem:[%s242] sm:$0xff]
        %v253 = vld [vmem:[%s242 + $0x8] sm:$0xff]
        %v254 = vld [vmem:[%s242 + $0x10] sm:$0xff]
        %v255 = vld [vmem:[%s242 + $0x18] sm:$0xff]
        %v256 = vld [vmem:[%s242 + $0x20] sm:$0xff]
        %v257 = vld [vmem:[%s242 + $0x28] sm:$0xff]
        %v258 = vld [vmem:[%s242 + $0x30] sm:$0xff]
        %v259 = vld [vmem:[%s242 + $0x38] sm:$0xff]
        %v260 = vld [vmem:[%s249] sm:$0xff]
        %v261 = vld [vmem:[%s249 + $0x8] sm:$0xff]
        %v262 = vld [vmem:[%s249 + $0x10] sm:$0xff]
        %v263 = vld [vmem:[%s249 + $0x18] sm:$0xff]
        %v264 = vld [vmem:[%s249 + $0x20] sm:$0xff]
        %v265 = vld [vmem:[%s249 + $0x28] sm:$0xff]
        %v266 = vld [vmem:[%s249 + $0x30] sm:$0xff]
        %v267 = vld [vmem:[%s249 + $0x38] sm:$0xff]
        %v268 = vld [vmem:[%s249 + $0x40] sm:$0xff]
        %v269 = vld [vmem:[%s249 + $0x48] sm:$0xff]
        %v270 = vld [vmem:[%s249 + $0x50] sm:$0xff]
        %v271 = vld [vmem:[%s249 + $0x58] sm:$0xff]
        %v272 = vld [vmem:[%s249 + $0x60] sm:$0xff]
        %v273 = vld [vmem:[%s249 + $0x68] sm:$0xff]
        %v274 = vld [vmem:[%s249 + $0x70] sm:$0xff]
        %v275 = vld [vmem:[%s249 + $0x78] sm:$0xff]
        %v276 = vld [vmem:[%s249 + $0x80] sm:$0xff]
        %v277 = vld [vmem:[%s249 + $0x88] sm:$0xff]
        %v278 = vld [vmem:[%s249 + $0x90] sm:$0xff]
        %v279 = vld [vmem:[%s249 + $0x98] sm:$0xff]
        %v280 = vld [vmem:[%s249 + $0xa0] sm:$0xff]
        %v281 = vld [vmem:[%s249 + $0xa8] sm:$0xff]
        %v282 = vld [vmem:[%s249 + $0xb0] sm:$0xff]
        %v283 = vld [vmem:[%s249 + $0xb8] sm:$0xff]
        %v284 = vld [vmem:[%s249 + $0xc0] sm:$0xff]
        %v285 = vld [vmem:[%s249 + $0xc8] sm:$0xff]
        %v286 = vld [vmem:[%s249 + $0xd0] sm:$0xff]
        %v287 = vld [vmem:[%s249 + $0xd8] sm:$0xff]
        %v288 = vld [vmem:[%s249 + $0xe0] sm:$0xff]
        %v289 = vld [vmem:[%s249 + $0xe8] sm:$0xff]
        %v290 = vld [vmem:[%s249 + $0xf0] sm:$0xff]
        %v291 = vld [vmem:[%s249 + $0xf8] sm:$0xff]
        %v292 = vld [vmem:[%s2] sm:$0xff]
        %v293 = vld [vmem:[%s2 + $0x8] sm:$0xff]
        %v294 = vld [vmem:[%s2 + $0x10] sm:$0xff]
        %v295 = vld [vmem:[%s2 + $0x18] sm:$0xff]
        %v296 = vld [vmem:[%s2 + $0x20] sm:$0xff]
        %v297 = vld [vmem:[%s2 + $0x28] sm:$0xff]
        %v298 = vld [vmem:[%s2 + $0x30] sm:$0xff]
        %v299 = vld [vmem:[%s2 + $0x38] sm:$0xff]
        %v300 = vld [vmem:[%s2 + $0x40] sm:$0xff]
        %v301 = vld [vmem:[%s2 + $0x48] sm:$0xff]
        %v302 = vld [vmem:[%s2 + $0x50] sm:$0xff]
        %v303 = vld [vmem:[%s2 + $0x58] sm:$0xff]
        %v304 = vld [vmem:[%s2 + $0x60] sm:$0xff]
        %v305 = vld [vmem:[%s2 + $0x68] sm:$0xff]
        %v306 = vld [vmem:[%s2 + $0x70] sm:$0xff]
        %v307 = vld [vmem:[%s2 + $0x78] sm:$0xff]
        %v308 = vld [vmem:[%s2 + $0x80] sm:$0xff]
        %v309 = vld [vmem:[%s2 + $0x88] sm:$0xff]
        %v310 = vld [vmem:[%s2 + $0x90] sm:$0xff]
        %v311 = vld [vmem:[%s2 + $0x98] sm:$0xff]
        %v312 = vld [vmem:[%s2 + $0xa0] sm:$0xff]
        %v313 = vld [vmem:[%s2 + $0xa8] sm:$0xff]
        %v314 = vld [vmem:[%s2 + $0xb0] sm:$0xff]
        %v315 = vld [vmem:[%s2 + $0xb8] sm:$0xff]
        %v316 = vld [vmem:[%s2 + $0xc0] sm:$0xff]
        %v317 = vld [vmem:[%s2 + $0xc8] sm:$0xff]
        %v318 = vld [vmem:[%s2 + $0xd0] sm:$0xff]
        %v319 = vld [vmem:[%s2 + $0xd8] sm:$0xff]
        %v320 = vld [vmem:[%s2 + $0xe0] sm:$0xff]
        %v321 = vld [vmem:[%s2 + $0xe8] sm:$0xff]
        %v322 = vld [vmem:[%s2 + $0xf0] sm:$0xff]
        %v323 = vld [vmem:[%s2 + $0xf8] sm:$0xff]
        %v324 = vld [vmem:[%s3] sm:$0xff]
        %v325 = vld [vmem:[%s3 + $0x8] sm:$0xff]
        %vm326 = vcmask 261120
        %v328 = vsel %vm326, %v252, 0
        %330 = vmatprep.subr.mxu0 0.0
        %331 = vmatpush1.msra.mxu0 %v260
        %332 = vmatprep.subr.mxu0 0.0
        %333 = vmatpush1.msra.mxu0 %v261
        %334 = vmatprep.subr.mxu0 0.0
        %335 = vmatpush1.msra.mxu0 %v262
        %336 = vmatprep.subr.mxu0 0.0
        %337 = vmatpush1.msra.mxu0 %v263
        %338 = vmatprep.subr.mxu0 0.0
        %339 = vmatpush1.msra.mxu0 0.0
        %340 = vmatprep.subr.mxu0 0.0
        %341 = vmatpush1.msra.mxu0 0.0
        %342 = vmatprep.subr.mxu0 0.0
        %343 = vmatpush1.msra.mxu0 0.0
        %344 = vmatprep.subr.mxu0 0.0
        %345 = vmatpush1.msra.mxu0 0.0
        %346 = vmatprep.subr.mxu0 0.0
        %347 = vmatpush1.msra.mxu0 0.0
        %348 = vmatprep.subr.mxu0 0.0
        %349 = vmatpush1.msra.mxu0 0.0
        %350 = vmatprep.subr.mxu0 0.0
        %351 = vmatpush1.msra.mxu0 0.0
        %352 = vmatprep.subr.mxu0 0.0
        %353 = vmatpush1.msra.mxu0 0.0
        %354 = vmatprep.subr.mxu0 0.0
        %355 = vmatpush1.msra.mxu0 0.0
        %356 = vmatprep.subr.mxu0 0.0
        %357 = vmatpush1.msra.mxu0 0.0
        %358 = vmatprep.subr.mxu0 0.0
        %359 = vmatpush1.msra.mxu0 0.0
        %360 = vmatprep.subr.mxu0 0.0
        %361 = vmatpush1.msra.mxu0 0.0
        %362 = vmatprep.subr.mxu0 0.0
        %363 = vmatpush1.msra.mxu0 0.0
        %364 = vmatprep.subr.mxu0 0.0
        %365 = vmatpush1.msra.mxu0 0.0
        %366 = vmatprep.subr.mxu0 0.0
        %367 = vmatpush1.msra.mxu0 0.0
        %368 = vmatprep.subr.mxu0 0.0
        %369 = vmatpush1.msra.mxu0 0.0
        %370 = vmatprep.subr.mxu0 0.0
        %371 = vmatpush1.msra.mxu0 0.0
        %372 = vmatprep.subr.mxu0 0.0
        %373 = vmatpush1.msra.mxu0 0.0
        %374 = vmatprep.subr.mxu0 0.0
        %375 = vmatpush1.msra.mxu0 0.0
        %376 = vmatprep.subr.mxu0 0.0
        %377 = vmatpush1.msra.mxu0 0.0
        %378 = vmatprep.subr.mxu0 0.0
        %379 = vmatpush1.msra.mxu0 0.0
        %380 = vmatprep.subr.mxu0 0.0
        %381 = vmatpush1.msra.mxu0 0.0
        %382 = vmatprep.subr.mxu0 0.0
        %383 = vmatpush1.msra.mxu0 0.0
        %384 = vmatprep.subr.mxu0 0.0
        %385 = vmatpush1.msra.mxu0 0.0
        %386 = vmatprep.subr.mxu0 0.0
        %387 = vmatpush1.msra.mxu0 0.0
        %388 = vmatprep.subr.mxu0 0.0
        %389 = vmatpush1.msra.mxu0 0.0
        %390 = vmatprep.subr.mxu0 0.0
        %391 = vmatpush1.msra.mxu0 0.0
        %392 = vmatprep.subr.mxu0 0.0
        %393 = vmatpush1.msra.mxu0 0.0
        %394 = vmatprep.mubr.f32.mxu0 0.0
        %395 = vmatmul.mubr.f32.gmra.mrb[0].mxu0 %v328
        %v396 = vpop.f32.mrb[0].mxu0
        %v397 = vadd.f32 0.0, %v396
        %v398 = vpop.f32.mrb[0].mxu0
        %399 = vdwg.mxu0
        %v401 = vsel %vm326, %v253, 0
        %403 = vmatprep.subr.mxu0 0.0
        %404 = vmatpush1.msra.mxu0 %v264
        %405 = vmatprep.subr.mxu0 0.0
        %406 = vmatpush1.msra.mxu0 %v265
        %407 = vmatprep.subr.mxu0 0.0
        %408 = vmatpush1.msra.mxu0 %v266
        %409 = vmatprep.subr.mxu0 0.0
        %410 = vmatpush1.msra.mxu0 %v267
        %411 = vmatprep.subr.mxu0 0.0
        %412 = vmatpush1.msra.mxu0 0.0
        %413 = vmatprep.subr.mxu0 0.0
        %414 = vmatpush1.msra.mxu0 0.0
        %415 = vmatprep.subr.mxu0 0.0
        %416 = vmatpush1.msra.mxu0 0.0
        %417 = vmatprep.subr.mxu0 0.0
        %418 = vmatpush1.msra.mxu0 0.0
        %419 = vmatprep.subr.mxu0 0.0
        %420 = vmatpush1.msra.mxu0 0.0
        %421 = vmatprep.subr.mxu0 0.0
        %422 = vmatpush1.msra.mxu0 0.0
        %423 = vmatprep.subr.mxu0 0.0
        %424 = vmatpush1.msra.mxu0 0.0
        %425 = vmatprep.subr.mxu0 0.0
        %426 = vmatpush1.msra.mxu0 0.0
        %427 = vmatprep.subr.mxu0 0.0
        %428 = vmatpush1.msra.mxu0 0.0
        %429 = vmatprep.subr.mxu0 0.0
        %430 = vmatpush1.msra.mxu0 0.0
        %431 = vmatprep.subr.mxu0 0.0
        %432 = vmatpush1.msra.mxu0 0.0
        %433 = vmatprep.subr.mxu0 0.0
        %434 = vmatpush1.msra.mxu0 0.0
        %435 = vmatprep.subr.mxu0 0.0
        %436 = vmatpush1.msra.mxu0 0.0
        %437 = vmatprep.subr.mxu0 0.0
        %438 = vmatpush1.msra.mxu0 0.0
        %439 = vmatprep.subr.mxu0 0.0
        %440 = vmatpush1.msra.mxu0 0.0
        %441 = vmatprep.subr.mxu0 0.0
        %442 = vmatpush1.msra.mxu0 0.0
        %443 = vmatprep.subr.mxu0 0.0
        %444 = vmatpush1.msra.mxu0 0.0
        %445 = vmatprep.subr.mxu0 0.0
        %446 = vmatpush1.msra.mxu0 0.0
        %447 = vmatprep.subr.mxu0 0.0
        %448 = vmatpush1.msra.mxu0 0.0
        %449 = vmatprep.subr.mxu0 0.0
        %450 = vmatpush1.msra.mxu0 0.0
        %451 = vmatprep.subr.mxu0 0.0
        %452 = vmatpush1.msra.mxu0 0.0
        %453 = vmatprep.subr.mxu0 0.0
        %454 = vmatpush1.msra.mxu0 0.0
        %455 = vmatprep.subr.mxu0 0.0
        %456 = vmatpush1.msra.mxu0 0.0
        %457 = vmatprep.subr.mxu0 0.0
        %458 = vmatpush1.msra.mxu0 0.0
        %459 = vmatprep.subr.mxu0 0.0
        %460 = vmatpush1.msra.mxu0 0.0
        %461 = vmatprep.subr.mxu0 0.0
        %462 = vmatpush1.msra.mxu0 0.0
        %463 = vmatprep.subr.mxu0 0.0
        %464 = vmatpush1.msra.mxu0 0.0
        %465 = vmatprep.subr.mxu0 0.0
        %466 = vmatpush1.msra.mxu0 0.0
        %467 = vmatprep.mubr.f32.mxu0 0.0
        %468 = vmatmul.mubr.f32.gmra.mrb[0].mxu0 %v401
        %v469 = vpop.f32.mrb[0].mxu0
        %v470 = vadd.f32 0.0, %v469
        %v471 = vpop.f32.mrb[0].mxu0
        %472 = vdwg.mxu0
        %v474 = vsel %vm326, %v254, 0
        %476 = vmatprep.subr.mxu0 0.0
        %477 = vmatpush1.msra.mxu0 %v268
        %478 = vmatprep.subr.mxu0 0.0
        %479 = vmatpush1.msra.mxu0 %v269
        %480 = vmatprep.subr.mxu0 0.0
        %481 = vmatpush1.msra.mxu0 %v270
        %482 = vmatprep.subr.mxu0 0.0
        %483 = vmatpush1.msra.mxu0 %v271
        %484 = vmatprep.subr.mxu0 0.0
        %485 = vmatpush1.msra.mxu0 0.0
        %486 = vmatprep.subr.mxu0 0.0
        %487 = vmatpush1.msra.mxu0 0.0
        %488 = vmatprep.subr.mxu0 0.0
        %489 = vmatpush1.msra.mxu0 0.0
        %490 = vmatprep.subr.mxu0 0.0
        %491 = vmatpush1.msra.mxu0 0.0
        %492 = vmatprep.subr.mxu0 0.0
        %493 = vmatpush1.msra.mxu0 0.0
        %494 = vmatprep.subr.mxu0 0.0
        %495 = vmatpush1.msra.mxu0 0.0
        %496 = vmatprep.subr.mxu0 0.0
        %497 = vmatpush1.msra.mxu0 0.0
        %498 = vmatprep.subr.mxu0 0.0
        %499 = vmatpush1.msra.mxu0 0.0
        %500 = vmatprep.subr.mxu0 0.0
        %501 = vmatpush1.msra.mxu0 0.0
        %502 = vmatprep.subr.mxu0 0.0
        %503 = vmatpush1.msra.mxu0 0.0
        %504 = vmatprep.subr.mxu0 0.0
        %505 = vmatpush1.msra.mxu0 0.0
        %506 = vmatprep.subr.mxu0 0.0
        %507 = vmatpush1.msra.mxu0 0.0
        %508 = vmatprep.subr.mxu0 0.0
        %509 = vmatpush1.msra.mxu0 0.0
        %510 = vmatprep.subr.mxu0 0.0
        %511 = vmatpush1.msra.mxu0 0.0
        %512 = vmatprep.subr.mxu0 0.0
        %513 = vmatpush1.msra.mxu0 0.0
        %514 = vmatprep.subr.mxu0 0.0
        %515 = vmatpush1.msra.mxu0 0.0
        %516 = vmatprep.subr.mxu0 0.0
        %517 = vmatpush1.msra.mxu0 0.0
        %518 = vmatprep.subr.mxu0 0.0
        %519 = vmatpush1.msra.mxu0 0.0
        %520 = vmatprep.subr.mxu0 0.0
        %521 = vmatpush1.msra.mxu0 0.0
        %522 = vmatprep.subr.mxu0 0.0
        %523 = vmatpush1.msra.mxu0 0.0
        %524 = vmatprep.subr.mxu0 0.0
        %525 = vmatpush1.msra.mxu0 0.0
        %526 = vmatprep.subr.mxu0 0.0
        %527 = vmatpush1.msra.mxu0 0.0
        %528 = vmatprep.subr.mxu0 0.0
        %529 = vmatpush1.msra.mxu0 0.0
        %530 = vmatprep.subr.mxu0 0.0
        %531 = vmatpush1.msra.mxu0 0.0
        %532 = vmatprep.subr.mxu0 0.0
        %533 = vmatpush1.msra.mxu0 0.0
        %534 = vmatprep.subr.mxu0 0.0
        %535 = vmatpush1.msra.mxu0 0.0
        %536 = vmatprep.subr.mxu0 0.0
        %537 = vmatpush1.msra.mxu0 0.0
        %538 = vmatprep.subr.mxu0 0.0
        %539 = vmatpush1.msra.mxu0 0.0
        %540 = vmatprep.mubr.f32.mxu0 0.0
        %541 = vmatmul.mubr.f32.gmra.mrb[0].mxu0 %v474
        %v542 = vpop.f32.mrb[0].mxu0
        %v543 = vadd.f32 0.0, %v542
        %v544 = vpop.f32.mrb[0].mxu0
        %545 = vdwg.mxu0
        %v547 = vsel %vm326, %v255, 0
        %549 = vmatprep.subr.mxu0 0.0
        %550 = vmatpush1.msra.mxu0 %v272
        %551 = vmatprep.subr.mxu0 0.0
        %552 = vmatpush1.msra.mxu0 %v273
        %553 = vmatprep.subr.mxu0 0.0
        %554 = vmatpush1.msra.mxu0 %v274
        %555 = vmatprep.subr.mxu0 0.0
        %556 = vmatpush1.msra.mxu0 %v275
        %557 = vmatprep.subr.mxu0 0.0
        %558 = vmatpush1.msra.mxu0 0.0
        %559 = vmatprep.subr.mxu0 0.0
        %560 = vmatpush1.msra.mxu0 0.0
        %561 = vmatprep.subr.mxu0 0.0
        %562 = vmatpush1.msra.mxu0 0.0
        %563 = vmatprep.subr.mxu0 0.0
        %564 = vmatpush1.msra.mxu0 0.0
        %565 = vmatprep.subr.mxu0 0.0
        %566 = vmatpush1.msra.mxu0 0.0
        %567 = vmatprep.subr.mxu0 0.0
        %568 = vmatpush1.msra.mxu0 0.0
        %569 = vmatprep.subr.mxu0 0.0
        %570 = vmatpush1.msra.mxu0 0.0
        %571 = vmatprep.subr.mxu0 0.0
        %572 = vmatpush1.msra.mxu0 0.0
        %573 = vmatprep.subr.mxu0 0.0
        %574 = vmatpush1.msra.mxu0 0.0
        %575 = vmatprep.subr.mxu0 0.0
        %576 = vmatpush1.msra.mxu0 0.0
        %577 = vmatprep.subr.mxu0 0.0
        %578 = vmatpush1.msra.mxu0 0.0
        %579 = vmatprep.subr.mxu0 0.0
        %580 = vmatpush1.msra.mxu0 0.0
        %581 = vmatprep.subr.mxu0 0.0
        %582 = vmatpush1.msra.mxu0 0.0
        %583 = vmatprep.subr.mxu0 0.0
        %584 = vmatpush1.msra.mxu0 0.0
        %585 = vmatprep.subr.mxu0 0.0
        %586 = vmatpush1.msra.mxu0 0.0
        %587 = vmatprep.subr.mxu0 0.0
        %588 = vmatpush1.msra.mxu0 0.0
        %589 = vmatprep.subr.mxu0 0.0
        %590 = vmatpush1.msra.mxu0 0.0
        %591 = vmatprep.subr.mxu0 0.0
        %592 = vmatpush1.msra.mxu0 0.0
        %593 = vmatprep.subr.mxu0 0.0
        %594 = vmatpush1.msra.mxu0 0.0
        %595 = vmatprep.subr.mxu0 0.0
        %596 = vmatpush1.msra.mxu0 0.0
        %597 = vmatprep.subr.mxu0 0.0
        %598 = vmatpush1.msra.mxu0 0.0
        %599 = vmatprep.subr.mxu0 0.0
        %600 = vmatpush1.msra.mxu0 0.0
        %601 = vmatprep.subr.mxu0 0.0
        %602 = vmatpush1.msra.mxu0 0.0
        %603 = vmatprep.subr.mxu0 0.0
        %604 = vmatpush1.msra.mxu0 0.0
        %605 = vmatprep.subr.mxu0 0.0
        %606 = vmatpush1.msra.mxu0 0.0
        %607 = vmatprep.subr.mxu0 0.0
        %608 = vmatpush1.msra.mxu0 0.0
        %609 = vmatprep.subr.mxu0 0.0
        %610 = vmatpush1.msra.mxu0 0.0
        %611 = vmatprep.subr.mxu0 0.0
        %612 = vmatpush1.msra.mxu0 0.0
        %613 = vmatprep.mubr.f32.mxu0 0.0
        %614 = vmatmul.mubr.f32.gmra.mrb[0].mxu0 %v547
        %v615 = vpop.f32.mrb[0].mxu0
        %v616 = vadd.f32 0.0, %v615
        %v617 = vpop.f32.mrb[0].mxu0
        %618 = vdwg.mxu0
        %v620 = vsel %vm326, %v256, 0
        %622 = vmatprep.subr.mxu0 0.0
        %623 = vmatpush1.msra.mxu0 %v276
        %624 = vmatprep.subr.mxu0 0.0
        %625 = vmatpush1.msra.mxu0 %v277
        %626 = vmatprep.subr.mxu0 0.0
        %627 = vmatpush1.msra.mxu0 %v278
        %628 = vmatprep.subr.mxu0 0.0
        %629 = vmatpush1.msra.mxu0 %v279
        %630 = vmatprep.subr.mxu0 0.0
        %631 = vmatpush1.msra.mxu0 0.0
        %632 = vmatprep.subr.mxu0 0.0
        %633 = vmatpush1.msra.mxu0 0.0
        %634 = vmatprep.subr.mxu0 0.0
        %635 = vmatpush1.msra.mxu0 0.0
        %636 = vmatprep.subr.mxu0 0.0
        %637 = vmatpush1.msra.mxu0 0.0
        %638 = vmatprep.subr.mxu0 0.0
        %639 = vmatpush1.msra.mxu0 0.0
        %640 = vmatprep.subr.mxu0 0.0
        %641 = vmatpush1.msra.mxu0 0.0
        %642 = vmatprep.subr.mxu0 0.0
        %643 = vmatpush1.msra.mxu0 0.0
        %644 = vmatprep.subr.mxu0 0.0
        %645 = vmatpush1.msra.mxu0 0.0
        %646 = vmatprep.subr.mxu0 0.0
        %647 = vmatpush1.msra.mxu0 0.0
        %648 = vmatprep.subr.mxu0 0.0
        %649 = vmatpush1.msra.mxu0 0.0
        %650 = vmatprep.subr.mxu0 0.0
        %651 = vmatpush1.msra.mxu0 0.0
        %652 = vmatprep.subr.mxu0 0.0
        %653 = vmatpush1.msra.mxu0 0.0
        %654 = vmatprep.subr.mxu0 0.0
        %655 = vmatpush1.msra.mxu0 0.0
        %656 = vmatprep.subr.mxu0 0.0
        %657 = vmatpush1.msra.mxu0 0.0
        %658 = vmatprep.subr.mxu0 0.0
        %659 = vmatpush1.msra.mxu0 0.0
        %660 = vmatprep.subr.mxu0 0.0
        %661 = vmatpush1.msra.mxu0 0.0
        %662 = vmatprep.subr.mxu0 0.0
        %663 = vmatpush1.msra.mxu0 0.0
        %664 = vmatprep.subr.mxu0 0.0
        %665 = vmatpush1.msra.mxu0 0.0
        %666 = vmatprep.subr.mxu0 0.0
        %667 = vmatpush1.msra.mxu0 0.0
        %668 = vmatprep.subr.mxu0 0.0
        %669 = vmatpush1.msra.mxu0 0.0
        %670 = vmatprep.subr.mxu0 0.0
        %671 = vmatpush1.msra.mxu0 0.0
        %672 = vmatprep.subr.mxu0 0.0
        %673 = vmatpush1.msra.mxu0 0.0
        %674 = vmatprep.subr.mxu0 0.0
        %675 = vmatpush1.msra.mxu0 0.0
        %676 = vmatprep.subr.mxu0 0.0
        %677 = vmatpush1.msra.mxu0 0.0
        %678 = vmatprep.subr.mxu0 0.0
        %679 = vmatpush1.msra.mxu0 0.0
        %680 = vmatprep.subr.mxu0 0.0
        %681 = vmatpush1.msra.mxu0 0.0
        %682 = vmatprep.subr.mxu0 0.0
        %683 = vmatpush1.msra.mxu0 0.0
        %684 = vmatprep.subr.mxu0 0.0
        %685 = vmatpush1.msra.mxu0 0.0
        %686 = vmatprep.mubr.f32.mxu0 0.0
        %687 = vmatmul.mubr.f32.gmra.mrb[0].mxu0 %v620
        %v688 = vpop.f32.mrb[0].mxu0
        %v689 = vadd.f32 0.0, %v688
        %v690 = vpop.f32.mrb[0].mxu0
        %691 = vdwg.mxu0
        %v693 = vsel %vm326, %v257, 0
        %695 = vmatprep.subr.mxu0 0.0
        %696 = vmatpush1.msra.mxu0 %v280
        %697 = vmatprep.subr.mxu0 0.0
        %698 = vmatpush1.msra.mxu0 %v281
        %699 = vmatprep.subr.mxu0 0.0
        %700 = vmatpush1.msra.mxu0 %v282
        %701 = vmatprep.subr.mxu0 0.0
        %702 = vmatpush1.msra.mxu0 %v283
        %703 = vmatprep.subr.mxu0 0.0
        %704 = vmatpush1.msra.mxu0 0.0
        %705 = vmatprep.subr.mxu0 0.0
        %706 = vmatpush1.msra.mxu0 0.0
        %707 = vmatprep.subr.mxu0 0.0
        %708 = vmatpush1.msra.mxu0 0.0
        %709 = vmatprep.subr.mxu0 0.0
        %710 = vmatpush1.msra.mxu0 0.0
        %711 = vmatprep.subr.mxu0 0.0
        %712 = vmatpush1.msra.mxu0 0.0
        %713 = vmatprep.subr.mxu0 0.0
        %714 = vmatpush1.msra.mxu0 0.0
        %715 = vmatprep.subr.mxu0 0.0
        %716 = vmatpush1.msra.mxu0 0.0
        %717 = vmatprep.subr.mxu0 0.0
        %718 = vmatpush1.msra.mxu0 0.0
        %719 = vmatprep.subr.mxu0 0.0
        %720 = vmatpush1.msra.mxu0 0.0
        %721 = vmatprep.subr.mxu0 0.0
        %722 = vmatpush1.msra.mxu0 0.0
        %723 = vmatprep.subr.mxu0 0.0
        %724 = vmatpush1.msra.mxu0 0.0
        %725 = vmatprep.subr.mxu0 0.0
        %726 = vmatpush1.msra.mxu0 0.0
        %727 = vmatprep.subr.mxu0 0.0
        %728 = vmatpush1.msra.mxu0 0.0
        %729 = vmatprep.subr.mxu0 0.0
        %730 = vmatpush1.msra.mxu0 0.0
        %731 = vmatprep.subr.mxu0 0.0
        %732 = vmatpush1.msra.mxu0 0.0
        %733 = vmatprep.subr.mxu0 0.0
        %734 = vmatpush1.msra.mxu0 0.0
        %735 = vmatprep.subr.mxu0 0.0
        %736 = vmatpush1.msra.mxu0 0.0
        %737 = vmatprep.subr.mxu0 0.0
        %738 = vmatpush1.msra.mxu0 0.0
        %739 = vmatprep.subr.mxu0 0.0
        %740 = vmatpush1.msra.mxu0 0.0
        %741 = vmatprep.subr.mxu0 0.0
        %742 = vmatpush1.msra.mxu0 0.0
        %743 = vmatprep.subr.mxu0 0.0
        %744 = vmatpush1.msra.mxu0 0.0
        %745 = vmatprep.subr.mxu0 0.0
        %746 = vmatpush1.msra.mxu0 0.0
        %747 = vmatprep.subr.mxu0 0.0
        %748 = vmatpush1.msra.mxu0 0.0
        %749 = vmatprep.subr.mxu0 0.0
        %750 = vmatpush1.msra.mxu0 0.0
        %751 = vmatprep.subr.mxu0 0.0
        %752 = vmatpush1.msra.mxu0 0.0
        %753 = vmatprep.subr.mxu0 0.0
        %754 = vmatpush1.msra.mxu0 0.0
        %755 = vmatprep.subr.mxu0 0.0
        %756 = vmatpush1.msra.mxu0 0.0
        %757 = vmatprep.subr.mxu0 0.0
        %758 = vmatpush1.msra.mxu0 0.0
        %759 = vmatprep.mubr.f32.mxu0 0.0
        %760 = vmatmul.mubr.f32.gmra.mrb[0].mxu0 %v693
        %v761 = vpop.f32.mrb[0].mxu0
        %v762 = vadd.f32 0.0, %v761
        %v763 = vpop.f32.mrb[0].mxu0
        %764 = vdwg.mxu0
        %v766 = vsel %vm326, %v258, 0
        %768 = vmatprep.subr.mxu0 0.0
        %769 = vmatpush1.msra.mxu0 %v284
        %770 = vmatprep.subr.mxu0 0.0
        %771 = vmatpush1.msra.mxu0 %v285
        %772 = vmatprep.subr.mxu0 0.0
        %773 = vmatpush1.msra.mxu0 %v286
        %774 = vmatprep.subr.mxu0 0.0
        %775 = vmatpush1.msra.mxu0 %v287
        %776 = vmatprep.subr.mxu0 0.0
        %777 = vmatpush1.msra.mxu0 0.0
        %778 = vmatprep.subr.mxu0 0.0
        %779 = vmatpush1.msra.mxu0 0.0
        %780 = vmatprep.subr.mxu0 0.0
        %781 = vmatpush1.msra.mxu0 0.0
        %782 = vmatprep.subr.mxu0 0.0
        %783 = vmatpush1.msra.mxu0 0.0
        %784 = vmatprep.subr.mxu0 0.0
        %785 = vmatpush1.msra.mxu0 0.0
        %786 = vmatprep.subr.mxu0 0.0
        %787 = vmatpush1.msra.mxu0 0.0
        %788 = vmatprep.subr.mxu0 0.0
        %789 = vmatpush1.msra.mxu0 0.0
        %790 = vmatprep.subr.mxu0 0.0
        %791 = vmatpush1.msra.mxu0 0.0
        %792 = vmatprep.subr.mxu0 0.0
        %793 = vmatpush1.msra.mxu0 0.0
        %794 = vmatprep.subr.mxu0 0.0
        %795 = vmatpush1.msra.mxu0 0.0
        %796 = vmatprep.subr.mxu0 0.0
        %797 = vmatpush1.msra.mxu0 0.0
        %798 = vmatprep.subr.mxu0 0.0
        %799 = vmatpush1.msra.mxu0 0.0
        %800 = vmatprep.subr.mxu0 0.0
        %801 = vmatpush1.msra.mxu0 0.0
        %802 = vmatprep.subr.mxu0 0.0
        %803 = vmatpush1.msra.mxu0 0.0
        %804 = vmatprep.subr.mxu0 0.0
        %805 = vmatpush1.msra.mxu0 0.0
        %806 = vmatprep.subr.mxu0 0.0
        %807 = vmatpush1.msra.mxu0 0.0
        %808 = vmatprep.subr.mxu0 0.0
        %809 = vmatpush1.msra.mxu0 0.0
        %810 = vmatprep.subr.mxu0 0.0
        %811 = vmatpush1.msra.mxu0 0.0
        %812 = vmatprep.subr.mxu0 0.0
        %813 = vmatpush1.msra.mxu0 0.0
        %814 = vmatprep.subr.mxu0 0.0
        %815 = vmatpush1.msra.mxu0 0.0
        %816 = vmatprep.subr.mxu0 0.0
        %817 = vmatpush1.msra.mxu0 0.0
        %818 = vmatprep.subr.mxu0 0.0
        %819 = vmatpush1.msra.mxu0 0.0
        %820 = vmatprep.subr.mxu0 0.0
        %821 = vmatpush1.msra.mxu0 0.0
        %822 = vmatprep.subr.mxu0 0.0
        %823 = vmatpush1.msra.mxu0 0.0
        %824 = vmatprep.subr.mxu0 0.0
        %825 = vmatpush1.msra.mxu0 0.0
        %826 = vmatprep.subr.mxu0 0.0
        %827 = vmatpush1.msra.mxu0 0.0
        %828 = vmatprep.subr.mxu0 0.0
        %829 = vmatpush1.msra.mxu0 0.0
        %830 = vmatprep.subr.mxu0 0.0
        %831 = vmatpush1.msra.mxu0 0.0
        %832 = vmatprep.mubr.f32.mxu0 0.0
        %833 = vmatmul.mubr.f32.gmra.mrb[0].mxu0 %v766
        %v834 = vpop.f32.mrb[0].mxu0
        %v835 = vadd.f32 0.0, %v834
        %v836 = vpop.f32.mrb[0].mxu0
        %837 = vdwg.mxu0
        %v839 = vsel %vm326, %v259, 0
        %841 = vmatprep.subr.mxu0 0.0
        %842 = vmatpush1.msra.mxu0 %v288
        %843 = vmatprep.subr.mxu0 0.0
        %844 = vmatpush1.msra.mxu0 %v289
        %845 = vmatprep.subr.mxu0 0.0
        %846 = vmatpush1.msra.mxu0 %v290
        %847 = vmatprep.subr.mxu0 0.0
        %848 = vmatpush1.msra.mxu0 %v291
        %849 = vmatprep.subr.mxu0 0.0
        %850 = vmatpush1.msra.mxu0 0.0
        %851 = vmatprep.subr.mxu0 0.0
        %852 = vmatpush1.msra.mxu0 0.0
        %853 = vmatprep.subr.mxu0 0.0
        %854 = vmatpush1.msra.mxu0 0.0
        %855 = vmatprep.subr.mxu0 0.0
        %856 = vmatpush1.msra.mxu0 0.0
        %857 = vmatprep.subr.mxu0 0.0
        %858 = vmatpush1.msra.mxu0 0.0
        %859 = vmatprep.subr.mxu0 0.0
        %860 = vmatpush1.msra.mxu0 0.0
        %861 = vmatprep.subr.mxu0 0.0
        %862 = vmatpush1.msra.mxu0 0.0
        %863 = vmatprep.subr.mxu0 0.0
        %864 = vmatpush1.msra.mxu0 0.0
        %865 = vmatprep.subr.mxu0 0.0
        %866 = vmatpush1.msra.mxu0 0.0
        %867 = vmatprep.subr.mxu0 0.0
        %868 = vmatpush1.msra.mxu0 0.0
        %869 = vmatprep.subr.mxu0 0.0
        %870 = vmatpush1.msra.mxu0 0.0
        %871 = vmatprep.subr.mxu0 0.0
        %872 = vmatpush1.msra.mxu0 0.0
        %873 = vmatprep.subr.mxu0 0.0
        %874 = vmatpush1.msra.mxu0 0.0
        %875 = vmatprep.subr.mxu0 0.0
        %876 = vmatpush1.msra.mxu0 0.0
        %877 = vmatprep.subr.mxu0 0.0
        %878 = vmatpush1.msra.mxu0 0.0
        %879 = vmatprep.subr.mxu0 0.0
        %880 = vmatpush1.msra.mxu0 0.0
        %881 = vmatprep.subr.mxu0 0.0
        %882 = vmatpush1.msra.mxu0 0.0
        %883 = vmatprep.subr.mxu0 0.0
        %884 = vmatpush1.msra.mxu0 0.0
        %885 = vmatprep.subr.mxu0 0.0
        %886 = vmatpush1.msra.mxu0 0.0
        %887 = vmatprep.subr.mxu0 0.0
        %888 = vmatpush1.msra.mxu0 0.0
        %889 = vmatprep.subr.mxu0 0.0
        %890 = vmatpush1.msra.mxu0 0.0
        %891 = vmatprep.subr.mxu0 0.0
        %892 = vmatpush1.msra.mxu0 0.0
        %893 = vmatprep.subr.mxu0 0.0
        %894 = vmatpush1.msra.mxu0 0.0
        %895 = vmatprep.subr.mxu0 0.0
        %896 = vmatpush1.msra.mxu0 0.0
        %897 = vmatprep.subr.mxu0 0.0
        %898 = vmatpush1.msra.mxu0 0.0
        %899 = vmatprep.subr.mxu0 0.0
        %900 = vmatpush1.msra.mxu0 0.0
        %901 = vmatprep.subr.mxu0 0.0
        %902 = vmatpush1.msra.mxu0 0.0
        %903 = vmatprep.subr.mxu0 0.0
        %904 = vmatpush1.msra.mxu0 0.0
        %905 = vmatprep.mubr.f32.mxu0 0.0
        %906 = vmatmul.mubr.f32.gmra.mrb[0].mxu0 %v839
        %v907 = vpop.f32.mrb[0].mxu0
        %v908 = vadd.f32 0.0, %v907
        %v909 = vpop.f32.mrb[0].mxu0
        %910 = vdwg.mxu0
        %911 = vxpose.xlu0.b32.start [1/16] %v252, 128
        %912 = vxpose.xlu0.b32.cont [2/16] 0.0, 128
        %913 = vxpose.xlu0.b32.cont [3/16] 0.0, 128
        %914 = vxpose.xlu0.b32.cont [4/16] 0.0, 128
        %915 = vxpose.xlu0.b32.cont [5/16] 0.0, 128
        %916 = vxpose.xlu0.b32.cont [6/16] 0.0, 128
        %917 = vxpose.xlu0.b32.cont [7/16] 0.0, 128
        %918 = vxpose.xlu0.b32.cont [8/16] 0.0, 128
        %919 = vxpose.xlu0.b32.cont [9/16] 0.0, 128
        %920 = vxpose.xlu0.b32.cont [10/16] 0.0, 128
        %921 = vxpose.xlu0.b32.cont [11/16] 0.0, 128
        %922 = vxpose.xlu0.b32.cont [12/16] 0.0, 128
        %923 = vxpose.xlu0.b32.cont [13/16] 0.0, 128
        %924 = vxpose.xlu0.b32.cont [14/16] 0.0, 128
        %925 = vxpose.xlu0.b32.cont [15/16] 0.0, 128
        %926 = vxpose.xlu0.b32.end [16/16] 0.0, 128
        %v927 = vpop.trf.xlu0
        %v928 = vpop.trf.xlu0
        %v929 = vpop.trf.xlu0
        %v930 = vpop.trf.xlu0
        %v931 = vpop.trf.xlu0
        %v932 = vpop.trf.xlu0
        %v933 = vpop.trf.xlu0
        %v934 = vpop.trf.xlu0
        %v935 = vpop.trf.xlu0
        %v936 = vpop.trf.xlu0
        %v937 = vpop.trf.xlu0
        %v938 = vpop.trf.xlu0
        %v939 = vpop.trf.xlu0
        %v940 = vpop.trf.xlu0
        %v941 = vpop.trf.xlu0
        %v942 = vpop.trf.xlu0
        %943 = vxpose.xlu0.b32.start [1/16] %v253, 128
        %944 = vxpose.xlu0.b32.cont [2/16] 0.0, 128
        %945 = vxpose.xlu0.b32.cont [3/16] 0.0, 128
        %946 = vxpose.xlu0.b32.cont [4/16] 0.0, 128
        %947 = vxpose.xlu0.b32.cont [5/16] 0.0, 128
        %948 = vxpose.xlu0.b32.cont [6/16] 0.0, 128
        %949 = vxpose.xlu0.b32.cont [7/16] 0.0, 128
        %950 = vxpose.xlu0.b32.cont [8/16] 0.0, 128
        %951 = vxpose.xlu0.b32.cont [9/16] 0.0, 128
        %952 = vxpose.xlu0.b32.cont [10/16] 0.0, 128
        %953 = vxpose.xlu0.b32.cont [11/16] 0.0, 128
        %954 = vxpose.xlu0.b32.cont [12/16] 0.0, 128
        %955 = vxpose.xlu0.b32.cont [13/16] 0.0, 128
        %956 = vxpose.xlu0.b32.cont [14/16] 0.0, 128
        %957 = vxpose.xlu0.b32.cont [15/16] 0.0, 128
        %958 = vxpose.xlu0.b32.end [16/16] 0.0, 128
        %v959 = vpop.trf.xlu0
        %v960 = vpop.trf.xlu0
        %v961 = vpop.trf.xlu0
        %v962 = vpop.trf.xlu0
        %v963 = vpop.trf.xlu0
        %v964 = vpop.trf.xlu0
        %v965 = vpop.trf.xlu0
        %v966 = vpop.trf.xlu0
        %v967 = vpop.trf.xlu0
        %v968 = vpop.trf.xlu0
        %v969 = vpop.trf.xlu0
        %v970 = vpop.trf.xlu0
        %v971 = vpop.trf.xlu0
        %v972 = vpop.trf.xlu0
        %v973 = vpop.trf.xlu0
        %v974 = vpop.trf.xlu0
        %975 = vxpose.xlu0.b32.start [1/16] %v254, 128
        %976 = vxpose.xlu0.b32.cont [2/16] 0.0, 128
        %977 = vxpose.xlu0.b32.cont [3/16] 0.0, 128
        %978 = vxpose.xlu0.b32.cont [4/16] 0.0, 128
        %979 = vxpose.xlu0.b32.cont [5/16] 0.0, 128
        %980 = vxpose.xlu0.b32.cont [6/16] 0.0, 128
        %981 = vxpose.xlu0.b32.cont [7/16] 0.0, 128
        %982 = vxpose.xlu0.b32.cont [8/16] 0.0, 128
        %983 = vxpose.xlu0.b32.cont [9/16] 0.0, 128
        %984 = vxpose.xlu0.b32.cont [10/16] 0.0, 128
        %985 = vxpose.xlu0.b32.cont [11/16] 0.0, 128
        %986 = vxpose.xlu0.b32.cont [12/16] 0.0, 128
        %987 = vxpose.xlu0.b32.cont [13/16] 0.0, 128
        %988 = vxpose.xlu0.b32.cont [14/16] 0.0, 128
        %989 = vxpose.xlu0.b32.cont [15/16] 0.0, 128
        %990 = vxpose.xlu0.b32.end [16/16] 0.0, 128
        %v991 = vpop.trf.xlu0
        %v992 = vpop.trf.xlu0
        %v993 = vpop.trf.xlu0
        %v994 = vpop.trf.xlu0
        %v995 = vpop.trf.xlu0
        %v996 = vpop.trf.xlu0
        %v997 = vpop.trf.xlu0
        %v998 = vpop.trf.xlu0
        %v999 = vpop.trf.xlu0
        %v1000 = vpop.trf.xlu0
        %v1001 = vpop.trf.xlu0
        %v1002 = vpop.trf.xlu0
        %v1003 = vpop.trf.xlu0
        %v1004 = vpop.trf.xlu0
        %v1005 = vpop.trf.xlu0
        %v1006 = vpop.trf.xlu0
        %1007 = vxpose.xlu0.b32.start [1/16] %v255, 128
        %1008 = vxpose.xlu0.b32.cont [2/16] 0.0, 128
        %1009 = vxpose.xlu0.b32.cont [3/16] 0.0, 128
        %1010 = vxpose.xlu0.b32.cont [4/16] 0.0, 128
        %1011 = vxpose.xlu0.b32.cont [5/16] 0.0, 128
        %1012 = vxpose.xlu0.b32.cont [6/16] 0.0, 128
        %1013 = vxpose.xlu0.b32.cont [7/16] 0.0, 128
        %1014 = vxpose.xlu0.b32.cont [8/16] 0.0, 128
        %1015 = vxpose.xlu0.b32.cont [9/16] 0.0, 128
        %1016 = vxpose.xlu0.b32.cont [10/16] 0.0, 128
        %1017 = vxpose.xlu0.b32.cont [11/16] 0.0, 128
        %1018 = vxpose.xlu0.b32.cont [12/16] 0.0, 128
        %1019 = vxpose.xlu0.b32.cont [13/16] 0.0, 128
        %1020 = vxpose.xlu0.b32.cont [14/16] 0.0, 128
        %1021 = vxpose.xlu0.b32.cont [15/16] 0.0, 128
        %1022 = vxpose.xlu0.b32.end [16/16] 0.0, 128
        %v1023 = vpop.trf.xlu0
        %v1024 = vpop.trf.xlu0
        %v1025 = vpop.trf.xlu0
        %v1026 = vpop.trf.xlu0
        %v1027 = vpop.trf.xlu0
        %v1028 = vpop.trf.xlu0
        %v1029 = vpop.trf.xlu0
        %v1030 = vpop.trf.xlu0
        %v1031 = vpop.trf.xlu0
        %v1032 = vpop.trf.xlu0
        %v1033 = vpop.trf.xlu0
        %v1034 = vpop.trf.xlu0
        %v1035 = vpop.trf.xlu0
        %v1036 = vpop.trf.xlu0
        %v1037 = vpop.trf.xlu0
        %v1038 = vpop.trf.xlu0
        %1039 = vxpose.xlu0.b32.start [1/16] %v256, 128
        %1040 = vxpose.xlu0.b32.cont [2/16] 0.0, 128
        %1041 = vxpose.xlu0.b32.cont [3/16] 0.0, 128
        %1042 = vxpose.xlu0.b32.cont [4/16] 0.0, 128
        %1043 = vxpose.xlu0.b32.cont [5/16] 0.0, 128
        %1044 = vxpose.xlu0.b32.cont [6/16] 0.0, 128
        %1045 = vxpose.xlu0.b32.cont [7/16] 0.0, 128
        %1046 = vxpose.xlu0.b32.cont [8/16] 0.0, 128
        %1047 = vxpose.xlu0.b32.cont [9/16] 0.0, 128
        %1048 = vxpose.xlu0.b32.cont [10/16] 0.0, 128
        %1049 = vxpose.xlu0.b32.cont [11/16] 0.0, 128
        %1050 = vxpose.xlu0.b32.cont [12/16] 0.0, 128
        %1051 = vxpose.xlu0.b32.cont [13/16] 0.0, 128
        %1052 = vxpose.xlu0.b32.cont [14/16] 0.0, 128
        %1053 = vxpose.xlu0.b32.cont [15/16] 0.0, 128
        %1054 = vxpose.xlu0.b32.end [16/16] 0.0, 128
        %v1055 = vpop.trf.xlu0
        %v1056 = vpop.trf.xlu0
        %v1057 = vpop.trf.xlu0
        %v1058 = vpop.trf.xlu0
        %v1059 = vpop.trf.xlu0
        %v1060 = vpop.trf.xlu0
        %v1061 = vpop.trf.xlu0
        %v1062 = vpop.trf.xlu0
        %v1063 = vpop.trf.xlu0
        %v1064 = vpop.trf.xlu0
        %v1065 = vpop.trf.xlu0
        %v1066 = vpop.trf.xlu0
        %v1067 = vpop.trf.xlu0
        %v1068 = vpop.trf.xlu0
        %v1069 = vpop.trf.xlu0
        %v1070 = vpop.trf.xlu0
        %1071 = vxpose.xlu0.b32.start [1/16] %v257, 128
        %1072 = vxpose.xlu0.b32.cont [2/16] 0.0, 128
        %1073 = vxpose.xlu0.b32.cont [3/16] 0.0, 128
        %1074 = vxpose.xlu0.b32.cont [4/16] 0.0, 128
        %1075 = vxpose.xlu0.b32.cont [5/16] 0.0, 128
        %1076 = vxpose.xlu0.b32.cont [6/16] 0.0, 128
        %1077 = vxpose.xlu0.b32.cont [7/16] 0.0, 128
        %1078 = vxpose.xlu0.b32.cont [8/16] 0.0, 128
        %1079 = vxpose.xlu0.b32.cont [9/16] 0.0, 128
        %1080 = vxpose.xlu0.b32.cont [10/16] 0.0, 128
        %1081 = vxpose.xlu0.b32.cont [11/16] 0.0, 128
        %1082 = vxpose.xlu0.b32.cont [12/16] 0.0, 128
        %1083 = vxpose.xlu0.b32.cont [13/16] 0.0, 128
        %1084 = vxpose.xlu0.b32.cont [14/16] 0.0, 128
        %1085 = vxpose.xlu0.b32.cont [15/16] 0.0, 128
        %1086 = vxpose.xlu0.b32.end [16/16] 0.0, 128
        %v1087 = vpop.trf.xlu0
        %v1088 = vpop.trf.xlu0
        %v1089 = vpop.trf.xlu0
        %v1090 = vpop.trf.xlu0
        %v1091 = vpop.trf.xlu0
        %v1092 = vpop.trf.xlu0
        %v1093 = vpop.trf.xlu0
        %v1094 = vpop.trf.xlu0
        %v1095 = vpop.trf.xlu0
        %v1096 = vpop.trf.xlu0
        %v1097 = vpop.trf.xlu0
        %v1098 = vpop.trf.xlu0
        %v1099 = vpop.trf.xlu0
        %v1100 = vpop.trf.xlu0
        %v1101 = vpop.trf.xlu0
        %v1102 = vpop.trf.xlu0
        %1103 = vxpose.xlu0.b32.start [1/16] %v258, 128
        %1104 = vxpose.xlu0.b32.cont [2/16] 0.0, 128
        %1105 = vxpose.xlu0.b32.cont [3/16] 0.0, 128
        %1106 = vxpose.xlu0.b32.cont [4/16] 0.0, 128
        %1107 = vxpose.xlu0.b32.cont [5/16] 0.0, 128
        %1108 = vxpose.xlu0.b32.cont [6/16] 0.0, 128
        %1109 = vxpose.xlu0.b32.cont [7/16] 0.0, 128
        %1110 = vxpose.xlu0.b32.cont [8/16] 0.0, 128
        %1111 = vxpose.xlu0.b32.cont [9/16] 0.0, 128
        %1112 = vxpose.xlu0.b32.cont [10/16] 0.0, 128
        %1113 = vxpose.xlu0.b32.cont [11/16] 0.0, 128
        %1114 = vxpose.xlu0.b32.cont [12/16] 0.0, 128
        %1115 = vxpose.xlu0.b32.cont [13/16] 0.0, 128
        %1116 = vxpose.xlu0.b32.cont [14/16] 0.0, 128
        %1117 = vxpose.xlu0.b32.cont [15/16] 0.0, 128
        %1118 = vxpose.xlu0.b32.end [16/16] 0.0, 128
        %v1119 = vpop.trf.xlu0
        %v1120 = vpop.trf.xlu0
        %v1121 = vpop.trf.xlu0
        %v1122 = vpop.trf.xlu0
        %v1123 = vpop.trf.xlu0
        %v1124 = vpop.trf.xlu0
        %v1125 = vpop.trf.xlu0
        %v1126 = vpop.trf.xlu0
        %v1127 = vpop.trf.xlu0
        %v1128 = vpop.trf.xlu0
        %v1129 = vpop.trf.xlu0
        %v1130 = vpop.trf.xlu0
        %v1131 = vpop.trf.xlu0
        %v1132 = vpop.trf.xlu0
        %v1133 = vpop.trf.xlu0
        %v1134 = vpop.trf.xlu0
        %1135 = vxpose.xlu0.b32.start [1/16] %v259, 128
        %1136 = vxpose.xlu0.b32.cont [2/16] 0.0, 128
        %1137 = vxpose.xlu0.b32.cont [3/16] 0.0, 128
        %1138 = vxpose.xlu0.b32.cont [4/16] 0.0, 128
        %1139 = vxpose.xlu0.b32.cont [5/16] 0.0, 128
        %1140 = vxpose.xlu0.b32.cont [6/16] 0.0, 128
        %1141 = vxpose.xlu0.b32.cont [7/16] 0.0, 128
        %1142 = vxpose.xlu0.b32.cont [8/16] 0.0, 128
        %1143 = vxpose.xlu0.b32.cont [9/16] 0.0, 128
        %1144 = vxpose.xlu0.b32.cont [10/16] 0.0, 128
        %1145 = vxpose.xlu0.b32.cont [11/16] 0.0, 128
        %1146 = vxpose.xlu0.b32.cont [12/16] 0.0, 128
        %1147 = vxpose.xlu0.b32.cont [13/16] 0.0, 128
        %1148 = vxpose.xlu0.b32.cont [14/16] 0.0, 128
        %1149 = vxpose.xlu0.b32.cont [15/16] 0.0, 128
        %1150 = vxpose.xlu0.b32.end [16/16] 0.0, 128
        %v1151 = vpop.trf.xlu0
        %v1152 = vpop.trf.xlu0
        %v1153 = vpop.trf.xlu0
        %v1154 = vpop.trf.xlu0
        %v1155 = vpop.trf.xlu0
        %v1156 = vpop.trf.xlu0
        %v1157 = vpop.trf.xlu0
        %v1158 = vpop.trf.xlu0
        %v1159 = vpop.trf.xlu0
        %v1160 = vpop.trf.xlu0
        %v1161 = vpop.trf.xlu0
        %v1162 = vpop.trf.xlu0
        %v1163 = vpop.trf.xlu0
        %v1164 = vpop.trf.xlu0
        %v1165 = vpop.trf.xlu0
        %v1166 = vpop.trf.xlu0
        %v1167 = vcombine.low %v927, %v991
        %v1168 = vcombine.high %v927, %v991
        %v1170 = vunpack.c.l.s4 1983009808
        %v1171 = vunpack.c.0.s8 %v1170
        %v1172 = vlaneseq
        %v1173 = vshrl.u32 %v1172, 7
        %v1174 = vsub.s32 %v1171, %v1173
        %v1175 = vrot.slane %v1167, %v1174
        %v1177 = vunpack.c.l.s4 1983009808
        %v1178 = vunpack.c.0.s8 %v1177
        %v1179 = vlaneseq
        %v1180 = vshrl.u32 %v1179, 7
        %v1181 = vsub.s32 %v1178, %v1180
        %v1182 = vrot.slane %v1168, %v1181
        %v1183 = vcombine.low %v959, %v1023
        %v1184 = vcombine.high %v959, %v1023
        %v1186 = vunpack.c.l.s4 1983009808
        %v1187 = vunpack.c.0.s8 %v1186
        %v1188 = vlaneseq
        %v1189 = vshrl.u32 %v1188, 7
        %v1190 = vsub.s32 %v1187, %v1189
        %v1191 = vrot.slane %v1183, %v1190
        %v1193 = vunpack.c.l.s4 1983009808
        %v1194 = vunpack.c.0.s8 %v1193
        %v1195 = vlaneseq
        %v1196 = vshrl.u32 %v1195, 7
        %v1197 = vsub.s32 %v1194, %v1196
        %v1198 = vrot.slane %v1184, %v1197
        %v1199 = vcombine.low %v1055, %v1119
        %v1200 = vcombine.high %v1055, %v1119
        %v1202 = vunpack.c.l.s4 1983009808
        %v1203 = vunpack.c.0.s8 %v1202
        %v1204 = vlaneseq
        %v1205 = vshrl.u32 %v1204, 7
        %v1206 = vsub.s32 %v1203, %v1205
        %v1207 = vrot.slane %v1199, %v1206
        %v1209 = vunpack.c.l.s4 1983009808
        %v1210 = vunpack.c.0.s8 %v1209
        %v1211 = vlaneseq
        %v1212 = vshrl.u32 %v1211, 7
        %v1213 = vsub.s32 %v1210, %v1212
        %v1214 = vrot.slane %v1200, %v1213
        %v1215 = vcombine.low %v1087, %v1151
        %v1216 = vcombine.high %v1087, %v1151
        %v1218 = vunpack.c.l.s4 1983009808
        %v1219 = vunpack.c.0.s8 %v1218
        %v1220 = vlaneseq
        %v1221 = vshrl.u32 %v1220, 7
        %v1222 = vsub.s32 %v1219, %v1221
        %v1223 = vrot.slane %v1215, %v1222
        %v1225 = vunpack.c.l.s4 1983009808
        %v1226 = vunpack.c.0.s8 %v1225
        %v1227 = vlaneseq
        %v1228 = vshrl.u32 %v1227, 7
        %v1229 = vsub.s32 %v1226, %v1228
        %v1230 = vrot.slane %v1216, %v1229
        %v1231 = vcombine.low %v1175, %v1191
        %v1232 = vcombine.high %v1175, %v1191
        %v1234 = vunpack.c.l.s4 1934713408
        %v1235 = vunpack.c.0.s8 %v1234
        %v1236 = vlaneseq
        %v1237 = vshrl.u32 %v1236, 7
        %v1238 = vsub.s32 %v1235, %v1237
        %v1239 = vrot.slane %v1231, %v1238
        %v1241 = vunpack.c.l.s4 1934713408
        %v1242 = vunpack.c.0.s8 %v1241
        %v1243 = vlaneseq
        %v1244 = vshrl.u32 %v1243, 7
        %v1245 = vsub.s32 %v1242, %v1244
        %v1246 = vrot.slane %v1232, %v1245
        %v1247 = vcombine.low %v1182, %v1198
        %v1248 = vcombine.high %v1182, %v1198
        %v1250 = vunpack.c.l.s4 1934713408
        %v1251 = vunpack.c.0.s8 %v1250
        %v1252 = vlaneseq
        %v1253 = vshrl.u32 %v1252, 7
        %v1254 = vsub.s32 %v1251, %v1253
        %v1255 = vrot.slane %v1247, %v1254
        %v1257 = vunpack.c.l.s4 1934713408
        %v1258 = vunpack.c.0.s8 %v1257
        %v1259 = vlaneseq
        %v1260 = vshrl.u32 %v1259, 7
        %v1261 = vsub.s32 %v1258, %v1260
        %v1262 = vrot.slane %v1248, %v1261
        %v1263 = vcombine.low %v1207, %v1223
        %v1264 = vcombine.high %v1207, %v1223
        %v1266 = vunpack.c.l.s4 1934713408
        %v1267 = vunpack.c.0.s8 %v1266
        %v1268 = vlaneseq
        %v1269 = vshrl.u32 %v1268, 7
        %v1270 = vsub.s32 %v1267, %v1269
        %v1271 = vrot.slane %v1263, %v1270
        %v1273 = vunpack.c.l.s4 1934713408
        %v1274 = vunpack.c.0.s8 %v1273
        %v1275 = vlaneseq
        %v1276 = vshrl.u32 %v1275, 7
        %v1277 = vsub.s32 %v1274, %v1276
        %v1278 = vrot.slane %v1264, %v1277
        %v1279 = vcombine.low %v1214, %v1230
        %v1280 = vcombine.high %v1214, %v1230
        %v1282 = vunpack.c.l.s4 1934713408
        %v1283 = vunpack.c.0.s8 %v1282
        %v1284 = vlaneseq
        %v1285 = vshrl.u32 %v1284, 7
        %v1286 = vsub.s32 %v1283, %v1285
        %v1287 = vrot.slane %v1279, %v1286
        %v1289 = vunpack.c.l.s4 1934713408
        %v1290 = vunpack.c.0.s8 %v1289
        %v1291 = vlaneseq
        %v1292 = vshrl.u32 %v1291, 7
        %v1293 = vsub.s32 %v1290, %v1292
        %v1294 = vrot.slane %v1280, %v1293
        %v1295 = vcombine.low %v1239, %v1271
        %v1296 = vcombine.high %v1239, %v1271
        %v1297 = vcombine.low %v1246, %v1278
        %v1298 = vcombine.high %v1246, %v1278
        %v1299 = vcombine.low %v1255, %v1287
        %v1300 = vcombine.high %v1255, %v1287
        %v1301 = vcombine.low %v1262, %v1294
        %v1302 = vcombine.high %v1262, %v1294
        %v1303 = vcombine.low %v928, %v992
        %v1304 = vcombine.high %v928, %v992
        %v1306 = vunpack.c.l.s4 1983009808
        %v1307 = vunpack.c.0.s8 %v1306
        %v1308 = vlaneseq
        %v1309 = vshrl.u32 %v1308, 7
        %v1310 = vsub.s32 %v1307, %v1309
        %v1311 = vrot.slane %v1303, %v1310
        %v1313 = vunpack.c.l.s4 1983009808
        %v1314 = vunpack.c.0.s8 %v1313
        %v1315 = vlaneseq
        %v1316 = vshrl.u32 %v1315, 7
        %v1317 = vsub.s32 %v1314, %v1316
        %v1318 = vrot.slane %v1304, %v1317
        %v1319 = vcombine.low %v960, %v1024
        %v1320 = vcombine.high %v960, %v1024
        %v1322 = vunpack.c.l.s4 1983009808
        %v1323 = vunpack.c.0.s8 %v1322
        %v1324 = vlaneseq
        %v1325 = vshrl.u32 %v1324, 7
        %v1326 = vsub.s32 %v1323, %v1325
        %v1327 = vrot.slane %v1319, %v1326
        %v1329 = vunpack.c.l.s4 1983009808
        %v1330 = vunpack.c.0.s8 %v1329
        %v1331 = vlaneseq
        %v1332 = vshrl.u32 %v1331, 7
        %v1333 = vsub.s32 %v1330, %v1332
        %v1334 = vrot.slane %v1320, %v1333
        %v1335 = vcombine.low %v1056, %v1120
        %v1336 = vcombine.high %v1056, %v1120
        %v1338 = vunpack.c.l.s4 1983009808
        %v1339 = vunpack.c.0.s8 %v1338
        %v1340 = vlaneseq
        %v1341 = vshrl.u32 %v1340, 7
        %v1342 = vsub.s32 %v1339, %v1341
        %v1343 = vrot.slane %v1335, %v1342
        %v1345 = vunpack.c.l.s4 1983009808
        %v1346 = vunpack.c.0.s8 %v1345
        %v1347 = vlaneseq
        %v1348 = vshrl.u32 %v1347, 7
        %v1349 = vsub.s32 %v1346, %v1348
        %v1350 = vrot.slane %v1336, %v1349
        %v1351 = vcombine.low %v1088, %v1152
        %v1352 = vcombine.high %v1088, %v1152
        %v1354 = vunpack.c.l.s4 1983009808
        %v1355 = vunpack.c.0.s8 %v1354
        %v1356 = vlaneseq
        %v1357 = vshrl.u32 %v1356, 7
        %v1358 = vsub.s32 %v1355, %v1357
        %v1359 = vrot.slane %v1351, %v1358
        %v1361 = vunpack.c.l.s4 1983009808
        %v1362 = vunpack.c.0.s8 %v1361
        %v1363 = vlaneseq
        %v1364 = vshrl.u32 %v1363, 7
        %v1365 = vsub.s32 %v1362, %v1364
        %v1366 = vrot.slane %v1352, %v1365
        %v1367 = vcombine.low %v1311, %v1327
        %v1368 = vcombine.high %v1311, %v1327
        %v1370 = vunpack.c.l.s4 1934713408
        %v1371 = vunpack.c.0.s8 %v1370
        %v1372 = vlaneseq
        %v1373 = vshrl.u32 %v1372, 7
        %v1374 = vsub.s32 %v1371, %v1373
        %v1375 = vrot.slane %v1367, %v1374
        %v1377 = vunpack.c.l.s4 1934713408
        %v1378 = vunpack.c.0.s8 %v1377
        %v1379 = vlaneseq
        %v1380 = vshrl.u32 %v1379, 7
        %v1381 = vsub.s32 %v1378, %v1380
        %v1382 = vrot.slane %v1368, %v1381
        %v1383 = vcombine.low %v1318, %v1334
        %v1384 = vcombine.high %v1318, %v1334
        %v1386 = vunpack.c.l.s4 1934713408
        %v1387 = vunpack.c.0.s8 %v1386
        %v1388 = vlaneseq
        %v1389 = vshrl.u32 %v1388, 7
        %v1390 = vsub.s32 %v1387, %v1389
        %v1391 = vrot.slane %v1383, %v1390
        %v1393 = vunpack.c.l.s4 1934713408
        %v1394 = vunpack.c.0.s8 %v1393
        %v1395 = vlaneseq
        %v1396 = vshrl.u32 %v1395, 7
        %v1397 = vsub.s32 %v1394, %v1396
        %v1398 = vrot.slane %v1384, %v1397
        %v1399 = vcombine.low %v1343, %v1359
        %v1400 = vcombine.high %v1343, %v1359
        %v1402 = vunpack.c.l.s4 1934713408
        %v1403 = vunpack.c.0.s8 %v1402
        %v1404 = vlaneseq
        %v1405 = vshrl.u32 %v1404, 7
        %v1406 = vsub.s32 %v1403, %v1405
        %v1407 = vrot.slane %v1399, %v1406
        %v1409 = vunpack.c.l.s4 1934713408
        %v1410 = vunpack.c.0.s8 %v1409
        %v1411 = vlaneseq
        %v1412 = vshrl.u32 %v1411, 7
        %v1413 = vsub.s32 %v1410, %v1412
        %v1414 = vrot.slane %v1400, %v1413
        %v1415 = vcombine.low %v1350, %v1366
        %v1416 = vcombine.high %v1350, %v1366
        %v1418 = vunpack.c.l.s4 1934713408
        %v1419 = vunpack.c.0.s8 %v1418
        %v1420 = vlaneseq
        %v1421 = vshrl.u32 %v1420, 7
        %v1422 = vsub.s32 %v1419, %v1421
        %v1423 = vrot.slane %v1415, %v1422
        %v1425 = vunpack.c.l.s4 1934713408
        %v1426 = vunpack.c.0.s8 %v1425
        %v1427 = vlaneseq
        %v1428 = vshrl.u32 %v1427, 7
        %v1429 = vsub.s32 %v1426, %v1428
        %v1430 = vrot.slane %v1416, %v1429
        %v1431 = vcombine.low %v1375, %v1407
        %v1432 = vcombine.high %v1375, %v1407
        %v1433 = vcombine.low %v1382, %v1414
        %v1434 = vcombine.high %v1382, %v1414
        %v1435 = vcombine.low %v1391, %v1423
        %v1436 = vcombine.high %v1391, %v1423
        %v1437 = vcombine.low %v1398, %v1430
        %v1438 = vcombine.high %v1398, %v1430
        %v1439 = vcombine.low %v929, %v993
        %v1440 = vcombine.high %v929, %v993
        %v1442 = vunpack.c.l.s4 1983009808
        %v1443 = vunpack.c.0.s8 %v1442
        %v1444 = vlaneseq
        %v1445 = vshrl.u32 %v1444, 7
        %v1446 = vsub.s32 %v1443, %v1445
        %v1447 = vrot.slane %v1439, %v1446
        %v1449 = vunpack.c.l.s4 1983009808
        %v1450 = vunpack.c.0.s8 %v1449
        %v1451 = vlaneseq
        %v1452 = vshrl.u32 %v1451, 7
        %v1453 = vsub.s32 %v1450, %v1452
        %v1454 = vrot.slane %v1440, %v1453
        %v1455 = vcombine.low %v961, %v1025
        %v1456 = vcombine.high %v961, %v1025
        %v1458 = vunpack.c.l.s4 1983009808
        %v1459 = vunpack.c.0.s8 %v1458
        %v1460 = vlaneseq
        %v1461 = vshrl.u32 %v1460, 7
        %v1462 = vsub.s32 %v1459, %v1461
        %v1463 = vrot.slane %v1455, %v1462
        %v1465 = vunpack.c.l.s4 1983009808
        %v1466 = vunpack.c.0.s8 %v1465
        %v1467 = vlaneseq
        %v1468 = vshrl.u32 %v1467, 7
        %v1469 = vsub.s32 %v1466, %v1468
        %v1470 = vrot.slane %v1456, %v1469
        %v1471 = vcombine.low %v1057, %v1121
        %v1472 = vcombine.high %v1057, %v1121
        %v1474 = vunpack.c.l.s4 1983009808
        %v1475 = vunpack.c.0.s8 %v1474
        %v1476 = vlaneseq
        %v1477 = vshrl.u32 %v1476, 7
        %v1478 = vsub.s32 %v1475, %v1477
        %v1479 = vrot.slane %v1471, %v1478
        %v1481 = vunpack.c.l.s4 1983009808
        %v1482 = vunpack.c.0.s8 %v1481
        %v1483 = vlaneseq
        %v1484 = vshrl.u32 %v1483, 7
        %v1485 = vsub.s32 %v1482, %v1484
        %v1486 = vrot.slane %v1472, %v1485
        %v1487 = vcombine.low %v1089, %v1153
        %v1488 = vcombine.high %v1089, %v1153
        %v1490 = vunpack.c.l.s4 1983009808
        %v1491 = vunpack.c.0.s8 %v1490
        %v1492 = vlaneseq
        %v1493 = vshrl.u32 %v1492, 7
        %v1494 = vsub.s32 %v1491, %v1493
        %v1495 = vrot.slane %v1487, %v1494
        %v1497 = vunpack.c.l.s4 1983009808
        %v1498 = vunpack.c.0.s8 %v1497
        %v1499 = vlaneseq
        %v1500 = vshrl.u32 %v1499, 7
        %v1501 = vsub.s32 %v1498, %v1500
        %v1502 = vrot.slane %v1488, %v1501
        %v1503 = vcombine.low %v1447, %v1463
        %v1504 = vcombine.high %v1447, %v1463
        %v1506 = vunpack.c.l.s4 1934713408
        %v1507 = vunpack.c.0.s8 %v1506
        %v1508 = vlaneseq
        %v1509 = vshrl.u32 %v1508, 7
        %v1510 = vsub.s32 %v1507, %v1509
        %v1511 = vrot.slane %v1503, %v1510
        %v1513 = vunpack.c.l.s4 1934713408
        %v1514 = vunpack.c.0.s8 %v1513
        %v1515 = vlaneseq
        %v1516 = vshrl.u32 %v1515, 7
        %v1517 = vsub.s32 %v1514, %v1516
        %v1518 = vrot.slane %v1504, %v1517
        %v1519 = vcombine.low %v1454, %v1470
        %v1520 = vcombine.high %v1454, %v1470
        %v1522 = vunpack.c.l.s4 1934713408
        %v1523 = vunpack.c.0.s8 %v1522
        %v1524 = vlaneseq
        %v1525 = vshrl.u32 %v1524, 7
        %v1526 = vsub.s32 %v1523, %v1525
        %v1527 = vrot.slane %v1519, %v1526
        %v1529 = vunpack.c.l.s4 1934713408
        %v1530 = vunpack.c.0.s8 %v1529
        %v1531 = vlaneseq
        %v1532 = vshrl.u32 %v1531, 7
        %v1533 = vsub.s32 %v1530, %v1532
        %v1534 = vrot.slane %v1520, %v1533
        %v1535 = vcombine.low %v1479, %v1495
        %v1536 = vcombine.high %v1479, %v1495
        %v1538 = vunpack.c.l.s4 1934713408
        %v1539 = vunpack.c.0.s8 %v1538
        %v1540 = vlaneseq
        %v1541 = vshrl.u32 %v1540, 7
        %v1542 = vsub.s32 %v1539, %v1541
        %v1543 = vrot.slane %v1535, %v1542
        %v1545 = vunpack.c.l.s4 1934713408
        %v1546 = vunpack.c.0.s8 %v1545
        %v1547 = vlaneseq
        %v1548 = vshrl.u32 %v1547, 7
        %v1549 = vsub.s32 %v1546, %v1548
        %v1550 = vrot.slane %v1536, %v1549
        %v1551 = vcombine.low %v1486, %v1502
        %v1552 = vcombine.high %v1486, %v1502
        %v1554 = vunpack.c.l.s4 1934713408
        %v1555 = vunpack.c.0.s8 %v1554
        %v1556 = vlaneseq
        %v1557 = vshrl.u32 %v1556, 7
        %v1558 = vsub.s32 %v1555, %v1557
        %v1559 = vrot.slane %v1551, %v1558
        %v1561 = vunpack.c.l.s4 1934713408
        %v1562 = vunpack.c.0.s8 %v1561
        %v1563 = vlaneseq
        %v1564 = vshrl.u32 %v1563, 7
        %v1565 = vsub.s32 %v1562, %v1564
        %v1566 = vrot.slane %v1552, %v1565
        %v1567 = vcombine.low %v1511, %v1543
        %v1568 = vcombine.high %v1511, %v1543
        %v1569 = vcombine.low %v1518, %v1550
        %v1570 = vcombine.high %v1518, %v1550
        %v1571 = vcombine.low %v1527, %v1559
        %v1572 = vcombine.high %v1527, %v1559
        %v1573 = vcombine.low %v1534, %v1566
        %v1574 = vcombine.high %v1534, %v1566
        %v1575 = vcombine.low %v930, %v994
        %v1576 = vcombine.high %v930, %v994
        %v1578 = vunpack.c.l.s4 1983009808
        %v1579 = vunpack.c.0.s8 %v1578
        %v1580 = vlaneseq
        %v1581 = vshrl.u32 %v1580, 7
        %v1582 = vsub.s32 %v1579, %v1581
        %v1583 = vrot.slane %v1575, %v1582
        %v1585 = vunpack.c.l.s4 1983009808
        %v1586 = vunpack.c.0.s8 %v1585
        %v1587 = vlaneseq
        %v1588 = vshrl.u32 %v1587, 7
        %v1589 = vsub.s32 %v1586, %v1588
        %v1590 = vrot.slane %v1576, %v1589
        %v1591 = vcombine.low %v962, %v1026
        %v1592 = vcombine.high %v962, %v1026
        %v1594 = vunpack.c.l.s4 1983009808
        %v1595 = vunpack.c.0.s8 %v1594
        %v1596 = vlaneseq
        %v1597 = vshrl.u32 %v1596, 7
        %v1598 = vsub.s32 %v1595, %v1597
        %v1599 = vrot.slane %v1591, %v1598
        %v1601 = vunpack.c.l.s4 1983009808
        %v1602 = vunpack.c.0.s8 %v1601
        %v1603 = vlaneseq
        %v1604 = vshrl.u32 %v1603, 7
        %v1605 = vsub.s32 %v1602, %v1604
        %v1606 = vrot.slane %v1592, %v1605
        %v1607 = vcombine.low %v1058, %v1122
        %v1608 = vcombine.high %v1058, %v1122
        %v1610 = vunpack.c.l.s4 1983009808
        %v1611 = vunpack.c.0.s8 %v1610
        %v1612 = vlaneseq
        %v1613 = vshrl.u32 %v1612, 7
        %v1614 = vsub.s32 %v1611, %v1613
        %v1615 = vrot.slane %v1607, %v1614
        %v1617 = vunpack.c.l.s4 1983009808
        %v1618 = vunpack.c.0.s8 %v1617
        %v1619 = vlaneseq
        %v1620 = vshrl.u32 %v1619, 7
        %v1621 = vsub.s32 %v1618, %v1620
        %v1622 = vrot.slane %v1608, %v1621
        %v1623 = vcombine.low %v1090, %v1154
        %v1624 = vcombine.high %v1090, %v1154
        %v1626 = vunpack.c.l.s4 1983009808
        %v1627 = vunpack.c.0.s8 %v1626
        %v1628 = vlaneseq
        %v1629 = vshrl.u32 %v1628, 7
        %v1630 = vsub.s32 %v1627, %v1629
        %v1631 = vrot.slane %v1623, %v1630
        %v1633 = vunpack.c.l.s4 1983009808
        %v1634 = vunpack.c.0.s8 %v1633
        %v1635 = vlaneseq
        %v1636 = vshrl.u32 %v1635, 7
        %v1637 = vsub.s32 %v1634, %v1636
        %v1638 = vrot.slane %v1624, %v1637
        %v1639 = vcombine.low %v1583, %v1599
        %v1640 = vcombine.high %v1583, %v1599
        %v1642 = vunpack.c.l.s4 1934713408
        %v1643 = vunpack.c.0.s8 %v1642
        %v1644 = vlaneseq
        %v1645 = vshrl.u32 %v1644, 7
        %v1646 = vsub.s32 %v1643, %v1645
        %v1647 = vrot.slane %v1639, %v1646
        %v1649 = vunpack.c.l.s4 1934713408
        %v1650 = vunpack.c.0.s8 %v1649
        %v1651 = vlaneseq
        %v1652 = vshrl.u32 %v1651, 7
        %v1653 = vsub.s32 %v1650, %v1652
        %v1654 = vrot.slane %v1640, %v1653
        %v1655 = vcombine.low %v1590, %v1606
        %v1656 = vcombine.high %v1590, %v1606
        %v1658 = vunpack.c.l.s4 1934713408
        %v1659 = vunpack.c.0.s8 %v1658
        %v1660 = vlaneseq
        %v1661 = vshrl.u32 %v1660, 7
        %v1662 = vsub.s32 %v1659, %v1661
        %v1663 = vrot.slane %v1655, %v1662
        %v1665 = vunpack.c.l.s4 1934713408
        %v1666 = vunpack.c.0.s8 %v1665
        %v1667 = vlaneseq
        %v1668 = vshrl.u32 %v1667, 7
        %v1669 = vsub.s32 %v1666, %v1668
        %v1670 = vrot.slane %v1656, %v1669
        %v1671 = vcombine.low %v1615, %v1631
        %v1672 = vcombine.high %v1615, %v1631
        %v1674 = vunpack.c.l.s4 1934713408
        %v1675 = vunpack.c.0.s8 %v1674
        %v1676 = vlaneseq
        %v1677 = vshrl.u32 %v1676, 7
        %v1678 = vsub.s32 %v1675, %v1677
        %v1679 = vrot.slane %v1671, %v1678
        %v1681 = vunpack.c.l.s4 1934713408
        %v1682 = vunpack.c.0.s8 %v1681
        %v1683 = vlaneseq
        %v1684 = vshrl.u32 %v1683, 7
        %v1685 = vsub.s32 %v1682, %v1684
        %v1686 = vrot.slane %v1672, %v1685
        %v1687 = vcombine.low %v1622, %v1638
        %v1688 = vcombine.high %v1622, %v1638
        %v1690 = vunpack.c.l.s4 1934713408
        %v1691 = vunpack.c.0.s8 %v1690
        %v1692 = vlaneseq
        %v1693 = vshrl.u32 %v1692, 7
        %v1694 = vsub.s32 %v1691, %v1693
        %v1695 = vrot.slane %v1687, %v1694
        %v1697 = vunpack.c.l.s4 1934713408
        %v1698 = vunpack.c.0.s8 %v1697
        %v1699 = vlaneseq
        %v1700 = vshrl.u32 %v1699, 7
        %v1701 = vsub.s32 %v1698, %v1700
        %v1702 = vrot.slane %v1688, %v1701
        %v1703 = vcombine.low %v1647, %v1679
        %v1704 = vcombine.high %v1647, %v1679
        %v1705 = vcombine.low %v1654, %v1686
        %v1706 = vcombine.high %v1654, %v1686
        %v1707 = vcombine.low %v1663, %v1695
        %v1708 = vcombine.high %v1663, %v1695
        %v1709 = vcombine.low %v1670, %v1702
        %v1710 = vcombine.high %v1670, %v1702
        %1711 = vxpose.xlu0.b32.start [1/16] %v1295, 128
        %1712 = vxpose.xlu0.b32.cont [2/16] 0.0, 128
        %1713 = vxpose.xlu0.b32.cont [3/16] 0.0, 128
        %1714 = vxpose.xlu0.b32.cont [4/16] 0.0, 128
        %1715 = vxpose.xlu0.b32.cont [5/16] 0.0, 128
        %1716 = vxpose.xlu0.b32.cont [6/16] 0.0, 128
        %1717 = vxpose.xlu0.b32.cont [7/16] 0.0, 128
        %1718 = vxpose.xlu0.b32.cont [8/16] 0.0, 128
        %1719 = vxpose.xlu0.b32.cont [9/16] 0.0, 128
        %1720 = vxpose.xlu0.b32.cont [10/16] 0.0, 128
        %1721 = vxpose.xlu0.b32.cont [11/16] 0.0, 128
        %1722 = vxpose.xlu0.b32.cont [12/16] 0.0, 128
        %1723 = vxpose.xlu0.b32.cont [13/16] 0.0, 128
        %1724 = vxpose.xlu0.b32.cont [14/16] 0.0, 128
        %1725 = vxpose.xlu0.b32.cont [15/16] 0.0, 128
        %1726 = vxpose.xlu0.b32.end [16/16] 0.0, 128
        %v1727 = vpop.trf.xlu0
        %v1728 = vpop.trf.xlu0
        %v1729 = vpop.trf.xlu0
        %v1730 = vpop.trf.xlu0
        %v1731 = vpop.trf.xlu0
        %v1732 = vpop.trf.xlu0
        %v1733 = vpop.trf.xlu0
        %v1734 = vpop.trf.xlu0
        %v1735 = vpop.trf.xlu0
        %v1736 = vpop.trf.xlu0
        %v1737 = vpop.trf.xlu0
        %v1738 = vpop.trf.xlu0
        %v1739 = vpop.trf.xlu0
        %v1740 = vpop.trf.xlu0
        %v1741 = vpop.trf.xlu0
        %v1742 = vpop.trf.xlu0
        %1743 = vxpose.xlu0.b32.start [1/16] %v1296, 128
        %1744 = vxpose.xlu0.b32.cont [2/16] 0.0, 128
        %1745 = vxpose.xlu0.b32.cont [3/16] 0.0, 128
        %1746 = vxpose.xlu0.b32.cont [4/16] 0.0, 128
        %1747 = vxpose.xlu0.b32.cont [5/16] 0.0, 128
        %1748 = vxpose.xlu0.b32.cont [6/16] 0.0, 128
        %1749 = vxpose.xlu0.b32.cont [7/16] 0.0, 128
        %1750 = vxpose.xlu0.b32.cont [8/16] 0.0, 128
        %1751 = vxpose.xlu0.b32.cont [9/16] 0.0, 128
        %1752 = vxpose.xlu0.b32.cont [10/16] 0.0, 128
        %1753 = vxpose.xlu0.b32.cont [11/16] 0.0, 128
        %1754 = vxpose.xlu0.b32.cont [12/16] 0.0, 128
        %1755 = vxpose.xlu0.b32.cont [13/16] 0.0, 128
        %1756 = vxpose.xlu0.b32.cont [14/16] 0.0, 128
        %1757 = vxpose.xlu0.b32.cont [15/16] 0.0, 128
        %1758 = vxpose.xlu0.b32.end [16/16] 0.0, 128
        %v1759 = vpop.trf.xlu0
        %v1760 = vpop.trf.xlu0
        %v1761 = vpop.trf.xlu0
        %v1762 = vpop.trf.xlu0
        %v1763 = vpop.trf.xlu0
        %v1764 = vpop.trf.xlu0
        %v1765 = vpop.trf.xlu0
        %v1766 = vpop.trf.xlu0
        %v1767 = vpop.trf.xlu0
        %v1768 = vpop.trf.xlu0
        %v1769 = vpop.trf.xlu0
        %v1770 = vpop.trf.xlu0
        %v1771 = vpop.trf.xlu0
        %v1772 = vpop.trf.xlu0
        %v1773 = vpop.trf.xlu0
        %v1774 = vpop.trf.xlu0
        %1775 = vxpose.xlu0.b32.start [1/16] %v1297, 128
        %1776 = vxpose.xlu0.b32.cont [2/16] 0.0, 128
        %1777 = vxpose.xlu0.b32.cont [3/16] 0.0, 128
        %1778 = vxpose.xlu0.b32.cont [4/16] 0.0, 128
        %1779 = vxpose.xlu0.b32.cont [5/16] 0.0, 128
        %1780 = vxpose.xlu0.b32.cont [6/16] 0.0, 128
        %1781 = vxpose.xlu0.b32.cont [7/16] 0.0, 128
        %1782 = vxpose.xlu0.b32.cont [8/16] 0.0, 128
        %1783 = vxpose.xlu0.b32.cont [9/16] 0.0, 128
        %1784 = vxpose.xlu0.b32.cont [10/16] 0.0, 128
        %1785 = vxpose.xlu0.b32.cont [11/16] 0.0, 128
        %1786 = vxpose.xlu0.b32.cont [12/16] 0.0, 128
        %1787 = vxpose.xlu0.b32.cont [13/16] 0.0, 128
        %1788 = vxpose.xlu0.b32.cont [14/16] 0.0, 128
        %1789 = vxpose.xlu0.b32.cont [15/16] 0.0, 128
        %1790 = vxpose.xlu0.b32.end [16/16] 0.0, 128
        %v1791 = vpop.trf.xlu0
        %v1792 = vpop.trf.xlu0
        %v1793 = vpop.trf.xlu0
        %v1794 = vpop.trf.xlu0
        %v1795 = vpop.trf.xlu0
        %v1796 = vpop.trf.xlu0
        %v1797 = vpop.trf.xlu0
        %v1798 = vpop.trf.xlu0
        %v1799 = vpop.trf.xlu0
        %v1800 = vpop.trf.xlu0
        %v1801 = vpop.trf.xlu0
        %v1802 = vpop.trf.xlu0
        %v1803 = vpop.trf.xlu0
        %v1804 = vpop.trf.xlu0
        %v1805 = vpop.trf.xlu0
        %v1806 = vpop.trf.xlu0
        %1807 = vxpose.xlu0.b32.start [1/16] %v1298, 128
        %1808 = vxpose.xlu0.b32.cont [2/16] 0.0, 128
        %1809 = vxpose.xlu0.b32.cont [3/16] 0.0, 128
        %1810 = vxpose.xlu0.b32.cont [4/16] 0.0, 128
        %1811 = vxpose.xlu0.b32.cont [5/16] 0.0, 128
        %1812 = vxpose.xlu0.b32.cont [6/16] 0.0, 128
        %1813 = vxpose.xlu0.b32.cont [7/16] 0.0, 128
        %1814 = vxpose.xlu0.b32.cont [8/16] 0.0, 128
        %1815 = vxpose.xlu0.b32.cont [9/16] 0.0, 128
        %1816 = vxpose.xlu0.b32.cont [10/16] 0.0, 128
        %1817 = vxpose.xlu0.b32.cont [11/16] 0.0, 128
        %1818 = vxpose.xlu0.b32.cont [12/16] 0.0, 128
        %1819 = vxpose.xlu0.b32.cont [13/16] 0.0, 128
        %1820 = vxpose.xlu0.b32.cont [14/16] 0.0, 128
        %1821 = vxpose.xlu0.b32.cont [15/16] 0.0, 128
        %1822 = vxpose.xlu0.b32.end [16/16] 0.0, 128
        %v1823 = vpop.trf.xlu0
        %v1824 = vpop.trf.xlu0
        %v1825 = vpop.trf.xlu0
        %v1826 = vpop.trf.xlu0
        %v1827 = vpop.trf.xlu0
        %v1828 = vpop.trf.xlu0
        %v1829 = vpop.trf.xlu0
        %v1830 = vpop.trf.xlu0
        %v1831 = vpop.trf.xlu0
        %v1832 = vpop.trf.xlu0
        %v1833 = vpop.trf.xlu0
        %v1834 = vpop.trf.xlu0
        %v1835 = vpop.trf.xlu0
        %v1836 = vpop.trf.xlu0
        %v1837 = vpop.trf.xlu0
        %v1838 = vpop.trf.xlu0
        %1839 = vxpose.xlu0.b32.start [1/16] %v1299, 128
        %1840 = vxpose.xlu0.b32.cont [2/16] 0.0, 128
        %1841 = vxpose.xlu0.b32.cont [3/16] 0.0, 128
        %1842 = vxpose.xlu0.b32.cont [4/16] 0.0, 128
        %1843 = vxpose.xlu0.b32.cont [5/16] 0.0, 128
        %1844 = vxpose.xlu0.b32.cont [6/16] 0.0, 128
        %1845 = vxpose.xlu0.b32.cont [7/16] 0.0, 128
        %1846 = vxpose.xlu0.b32.cont [8/16] 0.0, 128
        %1847 = vxpose.xlu0.b32.cont [9/16] 0.0, 128
        %1848 = vxpose.xlu0.b32.cont [10/16] 0.0, 128
        %1849 = vxpose.xlu0.b32.cont [11/16] 0.0, 128
        %1850 = vxpose.xlu0.b32.cont [12/16] 0.0, 128
        %1851 = vxpose.xlu0.b32.cont [13/16] 0.0, 128
        %1852 = vxpose.xlu0.b32.cont [14/16] 0.0, 128
        %1853 = vxpose.xlu0.b32.cont [15/16] 0.0, 128
        %1854 = vxpose.xlu0.b32.end [16/16] 0.0, 128
        %v1855 = vpop.trf.xlu0
        %v1856 = vpop.trf.xlu0
        %v1857 = vpop.trf.xlu0
        %v1858 = vpop.trf.xlu0
        %v1859 = vpop.trf.xlu0
        %v1860 = vpop.trf.xlu0
        %v1861 = vpop.trf.xlu0
        %v1862 = vpop.trf.xlu0
        %v1863 = vpop.trf.xlu0
        %v1864 = vpop.trf.xlu0
        %v1865 = vpop.trf.xlu0
        %v1866 = vpop.trf.xlu0
        %v1867 = vpop.trf.xlu0
        %v1868 = vpop.trf.xlu0
        %v1869 = vpop.trf.xlu0
        %v1870 = vpop.trf.xlu0
        %1871 = vxpose.xlu0.b32.start [1/16] %v1300, 128
        %1872 = vxpose.xlu0.b32.cont [2/16] 0.0, 128
        %1873 = vxpose.xlu0.b32.cont [3/16] 0.0, 128
        %1874 = vxpose.xlu0.b32.cont [4/16] 0.0, 128
        %1875 = vxpose.xlu0.b32.cont [5/16] 0.0, 128
        %1876 = vxpose.xlu0.b32.cont [6/16] 0.0, 128
        %1877 = vxpose.xlu0.b32.cont [7/16] 0.0, 128
        %1878 = vxpose.xlu0.b32.cont [8/16] 0.0, 128
        %1879 = vxpose.xlu0.b32.cont [9/16] 0.0, 128
        %1880 = vxpose.xlu0.b32.cont [10/16] 0.0, 128
        %1881 = vxpose.xlu0.b32.cont [11/16] 0.0, 128
        %1882 = vxpose.xlu0.b32.cont [12/16] 0.0, 128
        %1883 = vxpose.xlu0.b32.cont [13/16] 0.0, 128
        %1884 = vxpose.xlu0.b32.cont [14/16] 0.0, 128
        %1885 = vxpose.xlu0.b32.cont [15/16] 0.0, 128
        %1886 = vxpose.xlu0.b32.end [16/16] 0.0, 128
        %v1887 = vpop.trf.xlu0
        %v1888 = vpop.trf.xlu0
        %v1889 = vpop.trf.xlu0
        %v1890 = vpop.trf.xlu0
        %v1891 = vpop.trf.xlu0
        %v1892 = vpop.trf.xlu0
        %v1893 = vpop.trf.xlu0
        %v1894 = vpop.trf.xlu0
        %v1895 = vpop.trf.xlu0
        %v1896 = vpop.trf.xlu0
        %v1897 = vpop.trf.xlu0
        %v1898 = vpop.trf.xlu0
        %v1899 = vpop.trf.xlu0
        %v1900 = vpop.trf.xlu0
        %v1901 = vpop.trf.xlu0
        %v1902 = vpop.trf.xlu0
        %1903 = vxpose.xlu0.b32.start [1/16] %v1301, 128
        %1904 = vxpose.xlu0.b32.cont [2/16] 0.0, 128
        %1905 = vxpose.xlu0.b32.cont [3/16] 0.0, 128
        %1906 = vxpose.xlu0.b32.cont [4/16] 0.0, 128
        %1907 = vxpose.xlu0.b32.cont [5/16] 0.0, 128
        %1908 = vxpose.xlu0.b32.cont [6/16] 0.0, 128
        %1909 = vxpose.xlu0.b32.cont [7/16] 0.0, 128
        %1910 = vxpose.xlu0.b32.cont [8/16] 0.0, 128
        %1911 = vxpose.xlu0.b32.cont [9/16] 0.0, 128
        %1912 = vxpose.xlu0.b32.cont [10/16] 0.0, 128
        %1913 = vxpose.xlu0.b32.cont [11/16] 0.0, 128
        %1914 = vxpose.xlu0.b32.cont [12/16] 0.0, 128
        %1915 = vxpose.xlu0.b32.cont [13/16] 0.0, 128
        %1916 = vxpose.xlu0.b32.cont [14/16] 0.0, 128
        %1917 = vxpose.xlu0.b32.cont [15/16] 0.0, 128
        %1918 = vxpose.xlu0.b32.end [16/16] 0.0, 128
        %v1919 = vpop.trf.xlu0
        %v1920 = vpop.trf.xlu0
        %v1921 = vpop.trf.xlu0
        %v1922 = vpop.trf.xlu0
        %v1923 = vpop.trf.xlu0
        %v1924 = vpop.trf.xlu0
        %v1925 = vpop.trf.xlu0
        %v1926 = vpop.trf.xlu0
        %v1927 = vpop.trf.xlu0
        %v1928 = vpop.trf.xlu0
        %v1929 = vpop.trf.xlu0
        %v1930 = vpop.trf.xlu0
        %v1931 = vpop.trf.xlu0
        %v1932 = vpop.trf.xlu0
        %v1933 = vpop.trf.xlu0
        %v1934 = vpop.trf.xlu0
        %1935 = vxpose.xlu0.b32.start [1/16] %v1302, 128
        %1936 = vxpose.xlu0.b32.cont [2/16] 0.0, 128
        %1937 = vxpose.xlu0.b32.cont [3/16] 0.0, 128
        %1938 = vxpose.xlu0.b32.cont [4/16] 0.0, 128
        %1939 = vxpose.xlu0.b32.cont [5/16] 0.0, 128
        %1940 = vxpose.xlu0.b32.cont [6/16] 0.0, 128
        %1941 = vxpose.xlu0.b32.cont [7/16] 0.0, 128
        %1942 = vxpose.xlu0.b32.cont [8/16] 0.0, 128
        %1943 = vxpose.xlu0.b32.cont [9/16] 0.0, 128
        %1944 = vxpose.xlu0.b32.cont [10/16] 0.0, 128
        %1945 = vxpose.xlu0.b32.cont [11/16] 0.0, 128
        %1946 = vxpose.xlu0.b32.cont [12/16] 0.0, 128
        %1947 = vxpose.xlu0.b32.cont [13/16] 0.0, 128
        %1948 = vxpose.xlu0.b32.cont [14/16] 0.0, 128
        %1949 = vxpose.xlu0.b32.cont [15/16] 0.0, 128
        %1950 = vxpose.xlu0.b32.end [16/16] 0.0, 128
        %v1951 = vpop.trf.xlu0
        %v1952 = vpop.trf.xlu0
        %v1953 = vpop.trf.xlu0
        %v1954 = vpop.trf.xlu0
        %v1955 = vpop.trf.xlu0
        %v1956 = vpop.trf.xlu0
        %v1957 = vpop.trf.xlu0
        %v1958 = vpop.trf.xlu0
        %v1959 = vpop.trf.xlu0
        %v1960 = vpop.trf.xlu0
        %v1961 = vpop.trf.xlu0
        %v1962 = vpop.trf.xlu0
        %v1963 = vpop.trf.xlu0
        %v1964 = vpop.trf.xlu0
        %v1965 = vpop.trf.xlu0
        %v1966 = vpop.trf.xlu0
        %1967 = vxpose.xlu0.b32.start [1/16] %v1431, 128
        %1968 = vxpose.xlu0.b32.cont [2/16] 0.0, 128
        %1969 = vxpose.xlu0.b32.cont [3/16] 0.0, 128
        %1970 = vxpose.xlu0.b32.cont [4/16] 0.0, 128
        %1971 = vxpose.xlu0.b32.cont [5/16] 0.0, 128
        %1972 = vxpose.xlu0.b32.cont [6/16] 0.0, 128
        %1973 = vxpose.xlu0.b32.cont [7/16] 0.0, 128
        %1974 = vxpose.xlu0.b32.cont [8/16] 0.0, 128
        %1975 = vxpose.xlu0.b32.cont [9/16] 0.0, 128
        %1976 = vxpose.xlu0.b32.cont [10/16] 0.0, 128
        %1977 = vxpose.xlu0.b32.cont [11/16] 0.0, 128
        %1978 = vxpose.xlu0.b32.cont [12/16] 0.0, 128
        %1979 = vxpose.xlu0.b32.cont [13/16] 0.0, 128
        %1980 = vxpose.xlu0.b32.cont [14/16] 0.0, 128
        %1981 = vxpose.xlu0.b32.cont [15/16] 0.0, 128
        %1982 = vxpose.xlu0.b32.end [16/16] 0.0, 128
        %v1983 = vpop.trf.xlu0
        %v1984 = vpop.trf.xlu0
        %v1985 = vpop.trf.xlu0
        %v1986 = vpop.trf.xlu0
        %v1987 = vpop.trf.xlu0
        %v1988 = vpop.trf.xlu0
        %v1989 = vpop.trf.xlu0
        %v1990 = vpop.trf.xlu0
        %v1991 = vpop.trf.xlu0
        %v1992 = vpop.trf.xlu0
        %v1993 = vpop.trf.xlu0
        %v1994 = vpop.trf.xlu0
        %v1995 = vpop.trf.xlu0
        %v1996 = vpop.trf.xlu0
        %v1997 = vpop.trf.xlu0
        %v1998 = vpop.trf.xlu0
        %1999 = vxpose.xlu0.b32.start [1/16] %v1432, 128
        %2000 = vxpose.xlu0.b32.cont [2/16] 0.0, 128
        %2001 = vxpose.xlu0.b32.cont [3/16] 0.0, 128
        %2002 = vxpose.xlu0.b32.cont [4/16] 0.0, 128
        %2003 = vxpose.xlu0.b32.cont [5/16] 0.0, 128
        %2004 = vxpose.xlu0.b32.cont [6/16] 0.0, 128
        %2005 = vxpose.xlu0.b32.cont [7/16] 0.0, 128
        %2006 = vxpose.xlu0.b32.cont [8/16] 0.0, 128
        %2007 = vxpose.xlu0.b32.cont [9/16] 0.0, 128
        %2008 = vxpose.xlu0.b32.cont [10/16] 0.0, 128
        %2009 = vxpose.xlu0.b32.cont [11/16] 0.0, 128
        %2010 = vxpose.xlu0.b32.cont [12/16] 0.0, 128
        %2011 = vxpose.xlu0.b32.cont [13/16] 0.0, 128
        %2012 = vxpose.xlu0.b32.cont [14/16] 0.0, 128
        %2013 = vxpose.xlu0.b32.cont [15/16] 0.0, 128
        %2014 = vxpose.xlu0.b32.end [16/16] 0.0, 128
        %v2015 = vpop.trf.xlu0
        %v2016 = vpop.trf.xlu0
        %v2017 = vpop.trf.xlu0
        %v2018 = vpop.trf.xlu0
        %v2019 = vpop.trf.xlu0
        %v2020 = vpop.trf.xlu0
        %v2021 = vpop.trf.xlu0
        %v2022 = vpop.trf.xlu0
        %v2023 = vpop.trf.xlu0
        %v2024 = vpop.trf.xlu0
        %v2025 = vpop.trf.xlu0
        %v2026 = vpop.trf.xlu0
        %v2027 = vpop.trf.xlu0
        %v2028 = vpop.trf.xlu0
        %v2029 = vpop.trf.xlu0
        %v2030 = vpop.trf.xlu0
        %2031 = vxpose.xlu0.b32.start [1/16] %v1433, 128
        %2032 = vxpose.xlu0.b32.cont [2/16] 0.0, 128
        %2033 = vxpose.xlu0.b32.cont [3/16] 0.0, 128
        %2034 = vxpose.xlu0.b32.cont [4/16] 0.0, 128
        %2035 = vxpose.xlu0.b32.cont [5/16] 0.0, 128
        %2036 = vxpose.xlu0.b32.cont [6/16] 0.0, 128
        %2037 = vxpose.xlu0.b32.cont [7/16] 0.0, 128
        %2038 = vxpose.xlu0.b32.cont [8/16] 0.0, 128
        %2039 = vxpose.xlu0.b32.cont [9/16] 0.0, 128
        %2040 = vxpose.xlu0.b32.cont [10/16] 0.0, 128
        %2041 = vxpose.xlu0.b32.cont [11/16] 0.0, 128
        %2042 = vxpose.xlu0.b32.cont [12/16] 0.0, 128
        %2043 = vxpose.xlu0.b32.cont [13/16] 0.0, 128
        %2044 = vxpose.xlu0.b32.cont [14/16] 0.0, 128
        %2045 = vxpose.xlu0.b32.cont [15/16] 0.0, 128
        %2046 = vxpose.xlu0.b32.end [16/16] 0.0, 128
        %v2047 = vpop.trf.xlu0
        %v2048 = vpop.trf.xlu0
        %v2049 = vpop.trf.xlu0
        %v2050 = vpop.trf.xlu0
        %v2051 = vpop.trf.xlu0
        %v2052 = vpop.trf.xlu0
        %v2053 = vpop.trf.xlu0
        %v2054 = vpop.trf.xlu0
        %v2055 = vpop.trf.xlu0
        %v2056 = vpop.trf.xlu0
        %v2057 = vpop.trf.xlu0
        %v2058 = vpop.trf.xlu0
        %v2059 = vpop.trf.xlu0
        %v2060 = vpop.trf.xlu0
        %v2061 = vpop.trf.xlu0
        %v2062 = vpop.trf.xlu0
        %2063 = vxpose.xlu0.b32.start [1/16] %v1434, 128
        %2064 = vxpose.xlu0.b32.cont [2/16] 0.0, 128
        %2065 = vxpose.xlu0.b32.cont [3/16] 0.0, 128
        %2066 = vxpose.xlu0.b32.cont [4/16] 0.0, 128
        %2067 = vxpose.xlu0.b32.cont [5/16] 0.0, 128
        %2068 = vxpose.xlu0.b32.cont [6/16] 0.0, 128
        %2069 = vxpose.xlu0.b32.cont [7/16] 0.0, 128
        %2070 = vxpose.xlu0.b32.cont [8/16] 0.0, 128
        %2071 = vxpose.xlu0.b32.cont [9/16] 0.0, 128
        %2072 = vxpose.xlu0.b32.cont [10/16] 0.0, 128
        %2073 = vxpose.xlu0.b32.cont [11/16] 0.0, 128
        %2074 = vxpose.xlu0.b32.cont [12/16] 0.0, 128
        %2075 = vxpose.xlu0.b32.cont [13/16] 0.0, 128
        %2076 = vxpose.xlu0.b32.cont [14/16] 0.0, 128
        %2077 = vxpose.xlu0.b32.cont [15/16] 0.0, 128
        %2078 = vxpose.xlu0.b32.end [16/16] 0.0, 128
        %v2079 = vpop.trf.xlu0
        %v2080 = vpop.trf.xlu0
        %v2081 = vpop.trf.xlu0
        %v2082 = vpop.trf.xlu0
        %v2083 = vpop.trf.xlu0
        %v2084 = vpop.trf.xlu0
        %v2085 = vpop.trf.xlu0
        %v2086 = vpop.trf.xlu0
        %v2087 = vpop.trf.xlu0
        %v2088 = vpop.trf.xlu0
        %v2089 = vpop.trf.xlu0
        %v2090 = vpop.trf.xlu0
        %v2091 = vpop.trf.xlu0
        %v2092 = vpop.trf.xlu0
        %v2093 = vpop.trf.xlu0
        %v2094 = vpop.trf.xlu0
        %2095 = vxpose.xlu0.b32.start [1/16] %v1435, 128
        %2096 = vxpose.xlu0.b32.cont [2/16] 0.0, 128
        %2097 = vxpose.xlu0.b32.cont [3/16] 0.0, 128
        %2098 = vxpose.xlu0.b32.cont [4/16] 0.0, 128
        %2099 = vxpose.xlu0.b32.cont [5/16] 0.0, 128
        %2100 = vxpose.xlu0.b32.cont [6/16] 0.0, 128
        %2101 = vxpose.xlu0.b32.cont [7/16] 0.0, 128
        %2102 = vxpose.xlu0.b32.cont [8/16] 0.0, 128
        %2103 = vxpose.xlu0.b32.cont [9/16] 0.0, 128
        %2104 = vxpose.xlu0.b32.cont [10/16] 0.0, 128
        %2105 = vxpose.xlu0.b32.cont [11/16] 0.0, 128
        %2106 = vxpose.xlu0.b32.cont [12/16] 0.0, 128
        %2107 = vxpose.xlu0.b32.cont [13/16] 0.0, 128
        %2108 = vxpose.xlu0.b32.cont [14/16] 0.0, 128
        %2109 = vxpose.xlu0.b32.cont [15/16] 0.0, 128
        %2110 = vxpose.xlu0.b32.end [16/16] 0.0, 128
        %v2111 = vpop.trf.xlu0
        %v2112 = vpop.trf.xlu0
        %v2113 = vpop.trf.xlu0
        %v2114 = vpop.trf.xlu0
        %v2115 = vpop.trf.xlu0
        %v2116 = vpop.trf.xlu0
        %v2117 = vpop.trf.xlu0
        %v2118 = vpop.trf.xlu0
        %v2119 = vpop.trf.xlu0
        %v2120 = vpop.trf.xlu0
        %v2121 = vpop.trf.xlu0
        %v2122 = vpop.trf.xlu0
        %v2123 = vpop.trf.xlu0
        %v2124 = vpop.trf.xlu0
        %v2125 = vpop.trf.xlu0
        %v2126 = vpop.trf.xlu0
        %2127 = vxpose.xlu0.b32.start [1/16] %v1436, 128
        %2128 = vxpose.xlu0.b32.cont [2/16] 0.0, 128
        %2129 = vxpose.xlu0.b32.cont [3/16] 0.0, 128
        %2130 = vxpose.xlu0.b32.cont [4/16] 0.0, 128
        %2131 = vxpose.xlu0.b32.cont [5/16] 0.0, 128
        %2132 = vxpose.xlu0.b32.cont [6/16] 0.0, 128
        %2133 = vxpose.xlu0.b32.cont [7/16] 0.0, 128
        %2134 = vxpose.xlu0.b32.cont [8/16] 0.0, 128
        %2135 = vxpose.xlu0.b32.cont [9/16] 0.0, 128
        %2136 = vxpose.xlu0.b32.cont [10/16] 0.0, 128
        %2137 = vxpose.xlu0.b32.cont [11/16] 0.0, 128
        %2138 = vxpose.xlu0.b32.cont [12/16] 0.0, 128
        %2139 = vxpose.xlu0.b32.cont [13/16] 0.0, 128
        %2140 = vxpose.xlu0.b32.cont [14/16] 0.0, 128
        %2141 = vxpose.xlu0.b32.cont [15/16] 0.0, 128
        %2142 = vxpose.xlu0.b32.end [16/16] 0.0, 128
        %v2143 = vpop.trf.xlu0
        %v2144 = vpop.trf.xlu0
        %v2145 = vpop.trf.xlu0
        %v2146 = vpop.trf.xlu0
        %v2147 = vpop.trf.xlu0
        %v2148 = vpop.trf.xlu0
        %v2149 = vpop.trf.xlu0
        %v2150 = vpop.trf.xlu0
        %v2151 = vpop.trf.xlu0
        %v2152 = vpop.trf.xlu0
        %v2153 = vpop.trf.xlu0
        %v2154 = vpop.trf.xlu0
        %v2155 = vpop.trf.xlu0
        %v2156 = vpop.trf.xlu0
        %v2157 = vpop.trf.xlu0
        %v2158 = vpop.trf.xlu0
        %2159 = vxpose.xlu0.b32.start [1/16] %v1437, 128
        %2160 = vxpose.xlu0.b32.cont [2/16] 0.0, 128
        %2161 = vxpose.xlu0.b32.cont [3/16] 0.0, 128
        %2162 = vxpose.xlu0.b32.cont [4/16] 0.0, 128
        %2163 = vxpose.xlu0.b32.cont [5/16] 0.0, 128
        %2164 = vxpose.xlu0.b32.cont [6/16] 0.0, 128
        %2165 = vxpose.xlu0.b32.cont [7/16] 0.0, 128
        %2166 = vxpose.xlu0.b32.cont [8/16] 0.0, 128
        %2167 = vxpose.xlu0.b32.cont [9/16] 0.0, 128
        %2168 = vxpose.xlu0.b32.cont [10/16] 0.0, 128
        %2169 = vxpose.xlu0.b32.cont [11/16] 0.0, 128
        %2170 = vxpose.xlu0.b32.cont [12/16] 0.0, 128
        %2171 = vxpose.xlu0.b32.cont [13/16] 0.0, 128
        %2172 = vxpose.xlu0.b32.cont [14/16] 0.0, 128
        %2173 = vxpose.xlu0.b32.cont [15/16] 0.0, 128
        %2174 = vxpose.xlu0.b32.end [16/16] 0.0, 128
        %v2175 = vpop.trf.xlu0
        %v2176 = vpop.trf.xlu0
        %v2177 = vpop.trf.xlu0
        %v2178 = vpop.trf.xlu0
        %v2179 = vpop.trf.xlu0
        %v2180 = vpop.trf.xlu0
        %v2181 = vpop.trf.xlu0
        %v2182 = vpop.trf.xlu0
        %v2183 = vpop.trf.xlu0
        %v2184 = vpop.trf.xlu0
        %v2185 = vpop.trf.xlu0
        %v2186 = vpop.trf.xlu0
        %v2187 = vpop.trf.xlu0
        %v2188 = vpop.trf.xlu0
        %v2189 = vpop.trf.xlu0
        %v2190 = vpop.trf.xlu0
        %2191 = vxpose.xlu0.b32.start [1/16] %v1438, 128
        %2192 = vxpose.xlu0.b32.cont [2/16] 0.0, 128
        %2193 = vxpose.xlu0.b32.cont [3/16] 0.0, 128
        %2194 = vxpose.xlu0.b32.cont [4/16] 0.0, 128
        %2195 = vxpose.xlu0.b32.cont [5/16] 0.0, 128
        %2196 = vxpose.xlu0.b32.cont [6/16] 0.0, 128
        %2197 = vxpose.xlu0.b32.cont [7/16] 0.0, 128
        %2198 = vxpose.xlu0.b32.cont [8/16] 0.0, 128
        %2199 = vxpose.xlu0.b32.cont [9/16] 0.0, 128
        %2200 = vxpose.xlu0.b32.cont [10/16] 0.0, 128
        %2201 = vxpose.xlu0.b32.cont [11/16] 0.0, 128
        %2202 = vxpose.xlu0.b32.cont [12/16] 0.0, 128
        %2203 = vxpose.xlu0.b32.cont [13/16] 0.0, 128
        %2204 = vxpose.xlu0.b32.cont [14/16] 0.0, 128
        %2205 = vxpose.xlu0.b32.cont [15/16] 0.0, 128
        %2206 = vxpose.xlu0.b32.end [16/16] 0.0, 128
        %v2207 = vpop.trf.xlu0
        %v2208 = vpop.trf.xlu0
        %v2209 = vpop.trf.xlu0
        %v2210 = vpop.trf.xlu0
        %v2211 = vpop.trf.xlu0
        %v2212 = vpop.trf.xlu0
        %v2213 = vpop.trf.xlu0
        %v2214 = vpop.trf.xlu0
        %v2215 = vpop.trf.xlu0
        %v2216 = vpop.trf.xlu0
        %v2217 = vpop.trf.xlu0
        %v2218 = vpop.trf.xlu0
        %v2219 = vpop.trf.xlu0
        %v2220 = vpop.trf.xlu0
        %v2221 = vpop.trf.xlu0
        %v2222 = vpop.trf.xlu0
        %2223 = vxpose.xlu0.b32.start [1/16] %v1567, 128
        %2224 = vxpose.xlu0.b32.cont [2/16] 0.0, 128
        %2225 = vxpose.xlu0.b32.cont [3/16] 0.0, 128
        %2226 = vxpose.xlu0.b32.cont [4/16] 0.0, 128
        %2227 = vxpose.xlu0.b32.cont [5/16] 0.0, 128
        %2228 = vxpose.xlu0.b32.cont [6/16] 0.0, 128
        %2229 = vxpose.xlu0.b32.cont [7/16] 0.0, 128
        %2230 = vxpose.xlu0.b32.cont [8/16] 0.0, 128
        %2231 = vxpose.xlu0.b32.cont [9/16] 0.0, 128
        %2232 = vxpose.xlu0.b32.cont [10/16] 0.0, 128
        %2233 = vxpose.xlu0.b32.cont [11/16] 0.0, 128
        %2234 = vxpose.xlu0.b32.cont [12/16] 0.0, 128
        %2235 = vxpose.xlu0.b32.cont [13/16] 0.0, 128
        %2236 = vxpose.xlu0.b32.cont [14/16] 0.0, 128
        %2237 = vxpose.xlu0.b32.cont [15/16] 0.0, 128
        %2238 = vxpose.xlu0.b32.end [16/16] 0.0, 128
        %v2239 = vpop.trf.xlu0
        %v2240 = vpop.trf.xlu0
        %v2241 = vpop.trf.xlu0
        %v2242 = vpop.trf.xlu0
        %v2243 = vpop.trf.xlu0
        %v2244 = vpop.trf.xlu0
        %v2245 = vpop.trf.xlu0
        %v2246 = vpop.trf.xlu0
        %v2247 = vpop.trf.xlu0
        %v2248 = vpop.trf.xlu0
        %v2249 = vpop.trf.xlu0
        %v2250 = vpop.trf.xlu0
        %v2251 = vpop.trf.xlu0
        %v2252 = vpop.trf.xlu0
        %v2253 = vpop.trf.xlu0
        %v2254 = vpop.trf.xlu0
        %2255 = vxpose.xlu0.b32.start [1/16] %v1568, 128
        %2256 = vxpose.xlu0.b32.cont [2/16] 0.0, 128
        %2257 = vxpose.xlu0.b32.cont [3/16] 0.0, 128
        %2258 = vxpose.xlu0.b32.cont [4/16] 0.0, 128
        %2259 = vxpose.xlu0.b32.cont [5/16] 0.0, 128
        %2260 = vxpose.xlu0.b32.cont [6/16] 0.0, 128
        %2261 = vxpose.xlu0.b32.cont [7/16] 0.0, 128
        %2262 = vxpose.xlu0.b32.cont [8/16] 0.0, 128
        %2263 = vxpose.xlu0.b32.cont [9/16] 0.0, 128
        %2264 = vxpose.xlu0.b32.cont [10/16] 0.0, 128
        %2265 = vxpose.xlu0.b32.cont [11/16] 0.0, 128
        %2266 = vxpose.xlu0.b32.cont [12/16] 0.0, 128
        %2267 = vxpose.xlu0.b32.cont [13/16] 0.0, 128
        %2268 = vxpose.xlu0.b32.cont [14/16] 0.0, 128
        %2269 = vxpose.xlu0.b32.cont [15/16] 0.0, 128
        %2270 = vxpose.xlu0.b32.end [16/16] 0.0, 128
        %v2271 = vpop.trf.xlu0
        %v2272 = vpop.trf.xlu0
        %v2273 = vpop.trf.xlu0
        %v2274 = vpop.trf.xlu0
        %v2275 = vpop.trf.xlu0
        %v2276 = vpop.trf.xlu0
        %v2277 = vpop.trf.xlu0
        %v2278 = vpop.trf.xlu0
        %v2279 = vpop.trf.xlu0
        %v2280 = vpop.trf.xlu0
        %v2281 = vpop.trf.xlu0
        %v2282 = vpop.trf.xlu0
        %v2283 = vpop.trf.xlu0
        %v2284 = vpop.trf.xlu0
        %v2285 = vpop.trf.xlu0
        %v2286 = vpop.trf.xlu0
        %2287 = vxpose.xlu0.b32.start [1/16] %v1569, 128
        %2288 = vxpose.xlu0.b32.cont [2/16] 0.0, 128
        %2289 = vxpose.xlu0.b32.cont [3/16] 0.0, 128
        %2290 = vxpose.xlu0.b32.cont [4/16] 0.0, 128
        %2291 = vxpose.xlu0.b32.cont [5/16] 0.0, 128
        %2292 = vxpose.xlu0.b32.cont [6/16] 0.0, 128
        %2293 = vxpose.xlu0.b32.cont [7/16] 0.0, 128
        %2294 = vxpose.xlu0.b32.cont [8/16] 0.0, 128
        %2295 = vxpose.xlu0.b32.cont [9/16] 0.0, 128
        %2296 = vxpose.xlu0.b32.cont [10/16] 0.0, 128
        %2297 = vxpose.xlu0.b32.cont [11/16] 0.0, 128
        %2298 = vxpose.xlu0.b32.cont [12/16] 0.0, 128
        %2299 = vxpose.xlu0.b32.cont [13/16] 0.0, 128
        %2300 = vxpose.xlu0.b32.cont [14/16] 0.0, 128
        %2301 = vxpose.xlu0.b32.cont [15/16] 0.0, 128
        %2302 = vxpose.xlu0.b32.end [16/16] 0.0, 128
        %v2303 = vpop.trf.xlu0
        %v2304 = vpop.trf.xlu0
        %v2305 = vpop.trf.xlu0
        %v2306 = vpop.trf.xlu0
        %v2307 = vpop.trf.xlu0
        %v2308 = vpop.trf.xlu0
        %v2309 = vpop.trf.xlu0
        %v2310 = vpop.trf.xlu0
        %v2311 = vpop.trf.xlu0
        %v2312 = vpop.trf.xlu0
        %v2313 = vpop.trf.xlu0
        %v2314 = vpop.trf.xlu0
        %v2315 = vpop.trf.xlu0
        %v2316 = vpop.trf.xlu0
        %v2317 = vpop.trf.xlu0
        %v2318 = vpop.trf.xlu0
        %2319 = vxpose.xlu0.b32.start [1/16] %v1570, 128
        %2320 = vxpose.xlu0.b32.cont [2/16] 0.0, 128
        %2321 = vxpose.xlu0.b32.cont [3/16] 0.0, 128
        %2322 = vxpose.xlu0.b32.cont [4/16] 0.0, 128
        %2323 = vxpose.xlu0.b32.cont [5/16] 0.0, 128
        %2324 = vxpose.xlu0.b32.cont [6/16] 0.0, 128
        %2325 = vxpose.xlu0.b32.cont [7/16] 0.0, 128
        %2326 = vxpose.xlu0.b32.cont [8/16] 0.0, 128
        %2327 = vxpose.xlu0.b32.cont [9/16] 0.0, 128
        %2328 = vxpose.xlu0.b32.cont [10/16] 0.0, 128
        %2329 = vxpose.xlu0.b32.cont [11/16] 0.0, 128
        %2330 = vxpose.xlu0.b32.cont [12/16] 0.0, 128
        %2331 = vxpose.xlu0.b32.cont [13/16] 0.0, 128
        %2332 = vxpose.xlu0.b32.cont [14/16] 0.0, 128
        %2333 = vxpose.xlu0.b32.cont [15/16] 0.0, 128
        %2334 = vxpose.xlu0.b32.end [16/16] 0.0, 128
        %v2335 = vpop.trf.xlu0
        %v2336 = vpop.trf.xlu0
        %v2337 = vpop.trf.xlu0
        %v2338 = vpop.trf.xlu0
        %v2339 = vpop.trf.xlu0
        %v2340 = vpop.trf.xlu0
        %v2341 = vpop.trf.xlu0
        %v2342 = vpop.trf.xlu0
        %v2343 = vpop.trf.xlu0
        %v2344 = vpop.trf.xlu0
        %v2345 = vpop.trf.xlu0
        %v2346 = vpop.trf.xlu0
        %v2347 = vpop.trf.xlu0
        %v2348 = vpop.trf.xlu0
        %v2349 = vpop.trf.xlu0
        %v2350 = vpop.trf.xlu0
        %2351 = vxpose.xlu0.b32.start [1/16] %v1571, 128
        %2352 = vxpose.xlu0.b32.cont [2/16] 0.0, 128
        %2353 = vxpose.xlu0.b32.cont [3/16] 0.0, 128
        %2354 = vxpose.xlu0.b32.cont [4/16] 0.0, 128
        %2355 = vxpose.xlu0.b32.cont [5/16] 0.0, 128
        %2356 = vxpose.xlu0.b32.cont [6/16] 0.0, 128
        %2357 = vxpose.xlu0.b32.cont [7/16] 0.0, 128
        %2358 = vxpose.xlu0.b32.cont [8/16] 0.0, 128
        %2359 = vxpose.xlu0.b32.cont [9/16] 0.0, 128
        %2360 = vxpose.xlu0.b32.cont [10/16] 0.0, 128
        %2361 = vxpose.xlu0.b32.cont [11/16] 0.0, 128
        %2362 = vxpose.xlu0.b32.cont [12/16] 0.0, 128
        %2363 = vxpose.xlu0.b32.cont [13/16] 0.0, 128
        %2364 = vxpose.xlu0.b32.cont [14/16] 0.0, 128
        %2365 = vxpose.xlu0.b32.cont [15/16] 0.0, 128
        %2366 = vxpose.xlu0.b32.end [16/16] 0.0, 128
        %v2367 = vpop.trf.xlu0
        %v2368 = vpop.trf.xlu0
        %v2369 = vpop.trf.xlu0
        %v2370 = vpop.trf.xlu0
        %v2371 = vpop.trf.xlu0
        %v2372 = vpop.trf.xlu0
        %v2373 = vpop.trf.xlu0
        %v2374 = vpop.trf.xlu0
        %v2375 = vpop.trf.xlu0
        %v2376 = vpop.trf.xlu0
        %v2377 = vpop.trf.xlu0
        %v2378 = vpop.trf.xlu0
        %v2379 = vpop.trf.xlu0
        %v2380 = vpop.trf.xlu0
        %v2381 = vpop.trf.xlu0
        %v2382 = vpop.trf.xlu0
        %2383 = vxpose.xlu0.b32.start [1/16] %v1572, 128
        %2384 = vxpose.xlu0.b32.cont [2/16] 0.0, 128
        %2385 = vxpose.xlu0.b32.cont [3/16] 0.0, 128
        %2386 = vxpose.xlu0.b32.cont [4/16] 0.0, 128
        %2387 = vxpose.xlu0.b32.cont [5/16] 0.0, 128
        %2388 = vxpose.xlu0.b32.cont [6/16] 0.0, 128
        %2389 = vxpose.xlu0.b32.cont [7/16] 0.0, 128
        %2390 = vxpose.xlu0.b32.cont [8/16] 0.0, 128
        %2391 = vxpose.xlu0.b32.cont [9/16] 0.0, 128
        %2392 = vxpose.xlu0.b32.cont [10/16] 0.0, 128
        %2393 = vxpose.xlu0.b32.cont [11/16] 0.0, 128
        %2394 = vxpose.xlu0.b32.cont [12/16] 0.0, 128
        %2395 = vxpose.xlu0.b32.cont [13/16] 0.0, 128
        %2396 = vxpose.xlu0.b32.cont [14/16] 0.0, 128
        %2397 = vxpose.xlu0.b32.cont [15/16] 0.0, 128
        %2398 = vxpose.xlu0.b32.end [16/16] 0.0, 128
        %v2399 = vpop.trf.xlu0
        %v2400 = vpop.trf.xlu0
        %v2401 = vpop.trf.xlu0
        %v2402 = vpop.trf.xlu0
        %v2403 = vpop.trf.xlu0
        %v2404 = vpop.trf.xlu0
        %v2405 = vpop.trf.xlu0
        %v2406 = vpop.trf.xlu0
        %v2407 = vpop.trf.xlu0
        %v2408 = vpop.trf.xlu0
        %v2409 = vpop.trf.xlu0
        %v2410 = vpop.trf.xlu0
        %v2411 = vpop.trf.xlu0
        %v2412 = vpop.trf.xlu0
        %v2413 = vpop.trf.xlu0
        %v2414 = vpop.trf.xlu0
        %2415 = vxpose.xlu0.b32.start [1/16] %v1573, 128
        %2416 = vxpose.xlu0.b32.cont [2/16] 0.0, 128
        %2417 = vxpose.xlu0.b32.cont [3/16] 0.0, 128
        %2418 = vxpose.xlu0.b32.cont [4/16] 0.0, 128
        %2419 = vxpose.xlu0.b32.cont [5/16] 0.0, 128
        %2420 = vxpose.xlu0.b32.cont [6/16] 0.0, 128
        %2421 = vxpose.xlu0.b32.cont [7/16] 0.0, 128
        %2422 = vxpose.xlu0.b32.cont [8/16] 0.0, 128
        %2423 = vxpose.xlu0.b32.cont [9/16] 0.0, 128
        %2424 = vxpose.xlu0.b32.cont [10/16] 0.0, 128
        %2425 = vxpose.xlu0.b32.cont [11/16] 0.0, 128
        %2426 = vxpose.xlu0.b32.cont [12/16] 0.0, 128
        %2427 = vxpose.xlu0.b32.cont [13/16] 0.0, 128
        %2428 = vxpose.xlu0.b32.cont [14/16] 0.0, 128
        %2429 = vxpose.xlu0.b32.cont [15/16] 0.0, 128
        %2430 = vxpose.xlu0.b32.end [16/16] 0.0, 128
        %v2431 = vpop.trf.xlu0
        %v2432 = vpop.trf.xlu0
        %v2433 = vpop.trf.xlu0
        %v2434 = vpop.trf.xlu0
        %v2435 = vpop.trf.xlu0
        %v2436 = vpop.trf.xlu0
        %v2437 = vpop.trf.xlu0
        %v2438 = vpop.trf.xlu0
        %v2439 = vpop.trf.xlu0
        %v2440 = vpop.trf.xlu0
        %v2441 = vpop.trf.xlu0
        %v2442 = vpop.trf.xlu0
        %v2443 = vpop.trf.xlu0
        %v2444 = vpop.trf.xlu0
        %v2445 = vpop.trf.xlu0
        %v2446 = vpop.trf.xlu0
        %2447 = vxpose.xlu0.b32.start [1/16] %v1574, 128
        %2448 = vxpose.xlu0.b32.cont [2/16] 0.0, 128
        %2449 = vxpose.xlu0.b32.cont [3/16] 0.0, 128
        %2450 = vxpose.xlu0.b32.cont [4/16] 0.0, 128
        %2451 = vxpose.xlu0.b32.cont [5/16] 0.0, 128
        %2452 = vxpose.xlu0.b32.cont [6/16] 0.0, 128
        %2453 = vxpose.xlu0.b32.cont [7/16] 0.0, 128
        %2454 = vxpose.xlu0.b32.cont [8/16] 0.0, 128
        %2455 = vxpose.xlu0.b32.cont [9/16] 0.0, 128
        %2456 = vxpose.xlu0.b32.cont [10/16] 0.0, 128
        %2457 = vxpose.xlu0.b32.cont [11/16] 0.0, 128
        %2458 = vxpose.xlu0.b32.cont [12/16] 0.0, 128
        %2459 = vxpose.xlu0.b32.cont [13/16] 0.0, 128
        %2460 = vxpose.xlu0.b32.cont [14/16] 0.0, 128
        %2461 = vxpose.xlu0.b32.cont [15/16] 0.0, 128
        %2462 = vxpose.xlu0.b32.end [16/16] 0.0, 128
        %v2463 = vpop.trf.xlu0
        %v2464 = vpop.trf.xlu0
        %v2465 = vpop.trf.xlu0
        %v2466 = vpop.trf.xlu0
        %v2467 = vpop.trf.xlu0
        %v2468 = vpop.trf.xlu0
        %v2469 = vpop.trf.xlu0
        %v2470 = vpop.trf.xlu0
        %v2471 = vpop.trf.xlu0
        %v2472 = vpop.trf.xlu0
        %v2473 = vpop.trf.xlu0
        %v2474 = vpop.trf.xlu0
        %v2475 = vpop.trf.xlu0
        %v2476 = vpop.trf.xlu0
        %v2477 = vpop.trf.xlu0
        %v2478 = vpop.trf.xlu0
        %2479 = vxpose.xlu0.b32.start [1/16] %v1703, 128
        %2480 = vxpose.xlu0.b32.cont [2/16] 0.0, 128
        %2481 = vxpose.xlu0.b32.cont [3/16] 0.0, 128
        %2482 = vxpose.xlu0.b32.cont [4/16] 0.0, 128
        %2483 = vxpose.xlu0.b32.cont [5/16] 0.0, 128
        %2484 = vxpose.xlu0.b32.cont [6/16] 0.0, 128
        %2485 = vxpose.xlu0.b32.cont [7/16] 0.0, 128
        %2486 = vxpose.xlu0.b32.cont [8/16] 0.0, 128
        %2487 = vxpose.xlu0.b32.cont [9/16] 0.0, 128
        %2488 = vxpose.xlu0.b32.cont [10/16] 0.0, 128
        %2489 = vxpose.xlu0.b32.cont [11/16] 0.0, 128
        %2490 = vxpose.xlu0.b32.cont [12/16] 0.0, 128
        %2491 = vxpose.xlu0.b32.cont [13/16] 0.0, 128
        %2492 = vxpose.xlu0.b32.cont [14/16] 0.0, 128
        %2493 = vxpose.xlu0.b32.cont [15/16] 0.0, 128
        %2494 = vxpose.xlu0.b32.end [16/16] 0.0, 128
        %v2495 = vpop.trf.xlu0
        %v2496 = vpop.trf.xlu0
        %v2497 = vpop.trf.xlu0
        %v2498 = vpop.trf.xlu0
        %v2499 = vpop.trf.xlu0
        %v2500 = vpop.trf.xlu0
        %v2501 = vpop.trf.xlu0
        %v2502 = vpop.trf.xlu0
        %v2503 = vpop.trf.xlu0
        %v2504 = vpop.trf.xlu0
        %v2505 = vpop.trf.xlu0
        %v2506 = vpop.trf.xlu0
        %v2507 = vpop.trf.xlu0
        %v2508 = vpop.trf.xlu0
        %v2509 = vpop.trf.xlu0
        %v2510 = vpop.trf.xlu0
        %2511 = vxpose.xlu0.b32.start [1/16] %v1704, 128
        %2512 = vxpose.xlu0.b32.cont [2/16] 0.0, 128
        %2513 = vxpose.xlu0.b32.cont [3/16] 0.0, 128
        %2514 = vxpose.xlu0.b32.cont [4/16] 0.0, 128
        %2515 = vxpose.xlu0.b32.cont [5/16] 0.0, 128
        %2516 = vxpose.xlu0.b32.cont [6/16] 0.0, 128
        %2517 = vxpose.xlu0.b32.cont [7/16] 0.0, 128
        %2518 = vxpose.xlu0.b32.cont [8/16] 0.0, 128
        %2519 = vxpose.xlu0.b32.cont [9/16] 0.0, 128
        %2520 = vxpose.xlu0.b32.cont [10/16] 0.0, 128
        %2521 = vxpose.xlu0.b32.cont [11/16] 0.0, 128
        %2522 = vxpose.xlu0.b32.cont [12/16] 0.0, 128
        %2523 = vxpose.xlu0.b32.cont [13/16] 0.0, 128
        %2524 = vxpose.xlu0.b32.cont [14/16] 0.0, 128
        %2525 = vxpose.xlu0.b32.cont [15/16] 0.0, 128
        %2526 = vxpose.xlu0.b32.end [16/16] 0.0, 128
        %v2527 = vpop.trf.xlu0
        %v2528 = vpop.trf.xlu0
        %v2529 = vpop.trf.xlu0
        %v2530 = vpop.trf.xlu0
        %v2531 = vpop.trf.xlu0
        %v2532 = vpop.trf.xlu0
        %v2533 = vpop.trf.xlu0
        %v2534 = vpop.trf.xlu0
        %v2535 = vpop.trf.xlu0
        %v2536 = vpop.trf.xlu0
        %v2537 = vpop.trf.xlu0
        %v2538 = vpop.trf.xlu0
        %v2539 = vpop.trf.xlu0
        %v2540 = vpop.trf.xlu0
        %v2541 = vpop.trf.xlu0
        %v2542 = vpop.trf.xlu0
        %2543 = vxpose.xlu0.b32.start [1/16] %v1705, 128
        %2544 = vxpose.xlu0.b32.cont [2/16] 0.0, 128
        %2545 = vxpose.xlu0.b32.cont [3/16] 0.0, 128
        %2546 = vxpose.xlu0.b32.cont [4/16] 0.0, 128
        %2547 = vxpose.xlu0.b32.cont [5/16] 0.0, 128
        %2548 = vxpose.xlu0.b32.cont [6/16] 0.0, 128
        %2549 = vxpose.xlu0.b32.cont [7/16] 0.0, 128
        %2550 = vxpose.xlu0.b32.cont [8/16] 0.0, 128
        %2551 = vxpose.xlu0.b32.cont [9/16] 0.0, 128
        %2552 = vxpose.xlu0.b32.cont [10/16] 0.0, 128
        %2553 = vxpose.xlu0.b32.cont [11/16] 0.0, 128
        %2554 = vxpose.xlu0.b32.cont [12/16] 0.0, 128
        %2555 = vxpose.xlu0.b32.cont [13/16] 0.0, 128
        %2556 = vxpose.xlu0.b32.cont [14/16] 0.0, 128
        %2557 = vxpose.xlu0.b32.cont [15/16] 0.0, 128
        %2558 = vxpose.xlu0.b32.end [16/16] 0.0, 128
        %v2559 = vpop.trf.xlu0
        %v2560 = vpop.trf.xlu0
        %v2561 = vpop.trf.xlu0
        %v2562 = vpop.trf.xlu0
        %v2563 = vpop.trf.xlu0
        %v2564 = vpop.trf.xlu0
        %v2565 = vpop.trf.xlu0
        %v2566 = vpop.trf.xlu0
        %v2567 = vpop.trf.xlu0
        %v2568 = vpop.trf.xlu0
        %v2569 = vpop.trf.xlu0
        %v2570 = vpop.trf.xlu0
        %v2571 = vpop.trf.xlu0
        %v2572 = vpop.trf.xlu0
        %v2573 = vpop.trf.xlu0
        %v2574 = vpop.trf.xlu0
        %2575 = vxpose.xlu0.b32.start [1/16] %v1706, 128
        %2576 = vxpose.xlu0.b32.cont [2/16] 0.0, 128
        %2577 = vxpose.xlu0.b32.cont [3/16] 0.0, 128
        %2578 = vxpose.xlu0.b32.cont [4/16] 0.0, 128
        %2579 = vxpose.xlu0.b32.cont [5/16] 0.0, 128
        %2580 = vxpose.xlu0.b32.cont [6/16] 0.0, 128
        %2581 = vxpose.xlu0.b32.cont [7/16] 0.0, 128
        %2582 = vxpose.xlu0.b32.cont [8/16] 0.0, 128
        %2583 = vxpose.xlu0.b32.cont [9/16] 0.0, 128
        %2584 = vxpose.xlu0.b32.cont [10/16] 0.0, 128
        %2585 = vxpose.xlu0.b32.cont [11/16] 0.0, 128
        %2586 = vxpose.xlu0.b32.cont [12/16] 0.0, 128
        %2587 = vxpose.xlu0.b32.cont [13/16] 0.0, 128
        %2588 = vxpose.xlu0.b32.cont [14/16] 0.0, 128
        %2589 = vxpose.xlu0.b32.cont [15/16] 0.0, 128
        %2590 = vxpose.xlu0.b32.end [16/16] 0.0, 128
        %v2591 = vpop.trf.xlu0
        %v2592 = vpop.trf.xlu0
        %v2593 = vpop.trf.xlu0
        %v2594 = vpop.trf.xlu0
        %v2595 = vpop.trf.xlu0
        %v2596 = vpop.trf.xlu0
        %v2597 = vpop.trf.xlu0
        %v2598 = vpop.trf.xlu0
        %v2599 = vpop.trf.xlu0
        %v2600 = vpop.trf.xlu0
        %v2601 = vpop.trf.xlu0
        %v2602 = vpop.trf.xlu0
        %v2603 = vpop.trf.xlu0
        %v2604 = vpop.trf.xlu0
        %v2605 = vpop.trf.xlu0
        %v2606 = vpop.trf.xlu0
        %2607 = vxpose.xlu0.b32.start [1/16] %v1707, 128
        %2608 = vxpose.xlu0.b32.cont [2/16] 0.0, 128
        %2609 = vxpose.xlu0.b32.cont [3/16] 0.0, 128
        %2610 = vxpose.xlu0.b32.cont [4/16] 0.0, 128
        %2611 = vxpose.xlu0.b32.cont [5/16] 0.0, 128
        %2612 = vxpose.xlu0.b32.cont [6/16] 0.0, 128
        %2613 = vxpose.xlu0.b32.cont [7/16] 0.0, 128
        %2614 = vxpose.xlu0.b32.cont [8/16] 0.0, 128
        %2615 = vxpose.xlu0.b32.cont [9/16] 0.0, 128
        %2616 = vxpose.xlu0.b32.cont [10/16] 0.0, 128
        %2617 = vxpose.xlu0.b32.cont [11/16] 0.0, 128
        %2618 = vxpose.xlu0.b32.cont [12/16] 0.0, 128
        %2619 = vxpose.xlu0.b32.cont [13/16] 0.0, 128
        %2620 = vxpose.xlu0.b32.cont [14/16] 0.0, 128
        %2621 = vxpose.xlu0.b32.cont [15/16] 0.0, 128
        %2622 = vxpose.xlu0.b32.end [16/16] 0.0, 128
        %v2623 = vpop.trf.xlu0
        %v2624 = vpop.trf.xlu0
        %v2625 = vpop.trf.xlu0
        %v2626 = vpop.trf.xlu0
        %v2627 = vpop.trf.xlu0
        %v2628 = vpop.trf.xlu0
        %v2629 = vpop.trf.xlu0
        %v2630 = vpop.trf.xlu0
        %v2631 = vpop.trf.xlu0
        %v2632 = vpop.trf.xlu0
        %v2633 = vpop.trf.xlu0
        %v2634 = vpop.trf.xlu0
        %v2635 = vpop.trf.xlu0
        %v2636 = vpop.trf.xlu0
        %v2637 = vpop.trf.xlu0
        %v2638 = vpop.trf.xlu0
        %2639 = vxpose.xlu0.b32.start [1/16] %v1708, 128
        %2640 = vxpose.xlu0.b32.cont [2/16] 0.0, 128
        %2641 = vxpose.xlu0.b32.cont [3/16] 0.0, 128
        %2642 = vxpose.xlu0.b32.cont [4/16] 0.0, 128
        %2643 = vxpose.xlu0.b32.cont [5/16] 0.0, 128
        %2644 = vxpose.xlu0.b32.cont [6/16] 0.0, 128
        %2645 = vxpose.xlu0.b32.cont [7/16] 0.0, 128
        %2646 = vxpose.xlu0.b32.cont [8/16] 0.0, 128
        %2647 = vxpose.xlu0.b32.cont [9/16] 0.0, 128
        %2648 = vxpose.xlu0.b32.cont [10/16] 0.0, 128
        %2649 = vxpose.xlu0.b32.cont [11/16] 0.0, 128
        %2650 = vxpose.xlu0.b32.cont [12/16] 0.0, 128
        %2651 = vxpose.xlu0.b32.cont [13/16] 0.0, 128
        %2652 = vxpose.xlu0.b32.cont [14/16] 0.0, 128
        %2653 = vxpose.xlu0.b32.cont [15/16] 0.0, 128
        %2654 = vxpose.xlu0.b32.end [16/16] 0.0, 128
        %v2655 = vpop.trf.xlu0
        %v2656 = vpop.trf.xlu0
        %v2657 = vpop.trf.xlu0
        %v2658 = vpop.trf.xlu0
        %v2659 = vpop.trf.xlu0
        %v2660 = vpop.trf.xlu0
        %v2661 = vpop.trf.xlu0
        %v2662 = vpop.trf.xlu0
        %v2663 = vpop.trf.xlu0
        %v2664 = vpop.trf.xlu0
        %v2665 = vpop.trf.xlu0
        %v2666 = vpop.trf.xlu0
        %v2667 = vpop.trf.xlu0
        %v2668 = vpop.trf.xlu0
        %v2669 = vpop.trf.xlu0
        %v2670 = vpop.trf.xlu0
        %2671 = vxpose.xlu0.b32.start [1/16] %v1709, 128
        %2672 = vxpose.xlu0.b32.cont [2/16] 0.0, 128
        %2673 = vxpose.xlu0.b32.cont [3/16] 0.0, 128
        %2674 = vxpose.xlu0.b32.cont [4/16] 0.0, 128
        %2675 = vxpose.xlu0.b32.cont [5/16] 0.0, 128
        %2676 = vxpose.xlu0.b32.cont [6/16] 0.0, 128
        %2677 = vxpose.xlu0.b32.cont [7/16] 0.0, 128
        %2678 = vxpose.xlu0.b32.cont [8/16] 0.0, 128
        %2679 = vxpose.xlu0.b32.cont [9/16] 0.0, 128
        %2680 = vxpose.xlu0.b32.cont [10/16] 0.0, 128
        %2681 = vxpose.xlu0.b32.cont [11/16] 0.0, 128
        %2682 = vxpose.xlu0.b32.cont [12/16] 0.0, 128
        %2683 = vxpose.xlu0.b32.cont [13/16] 0.0, 128
        %2684 = vxpose.xlu0.b32.cont [14/16] 0.0, 128
        %2685 = vxpose.xlu0.b32.cont [15/16] 0.0, 128
        %2686 = vxpose.xlu0.b32.end [16/16] 0.0, 128
        %v2687 = vpop.trf.xlu0
        %v2688 = vpop.trf.xlu0
        %v2689 = vpop.trf.xlu0
        %v2690 = vpop.trf.xlu0
        %v2691 = vpop.trf.xlu0
        %v2692 = vpop.trf.xlu0
        %v2693 = vpop.trf.xlu0
        %v2694 = vpop.trf.xlu0
        %v2695 = vpop.trf.xlu0
        %v2696 = vpop.trf.xlu0
        %v2697 = vpop.trf.xlu0
        %v2698 = vpop.trf.xlu0
        %v2699 = vpop.trf.xlu0
        %v2700 = vpop.trf.xlu0
        %v2701 = vpop.trf.xlu0
        %v2702 = vpop.trf.xlu0
        %2703 = vxpose.xlu0.b32.start [1/16] %v1710, 128
        %2704 = vxpose.xlu0.b32.cont [2/16] 0.0, 128
        %2705 = vxpose.xlu0.b32.cont [3/16] 0.0, 128
        %2706 = vxpose.xlu0.b32.cont [4/16] 0.0, 128
        %2707 = vxpose.xlu0.b32.cont [5/16] 0.0, 128
        %2708 = vxpose.xlu0.b32.cont [6/16] 0.0, 128
        %2709 = vxpose.xlu0.b32.cont [7/16] 0.0, 128
        %2710 = vxpose.xlu0.b32.cont [8/16] 0.0, 128
        %2711 = vxpose.xlu0.b32.cont [9/16] 0.0, 128
        %2712 = vxpose.xlu0.b32.cont [10/16] 0.0, 128
        %2713 = vxpose.xlu0.b32.cont [11/16] 0.0, 128
        %2714 = vxpose.xlu0.b32.cont [12/16] 0.0, 128
        %2715 = vxpose.xlu0.b32.cont [13/16] 0.0, 128
        %2716 = vxpose.xlu0.b32.cont [14/16] 0.0, 128
        %2717 = vxpose.xlu0.b32.cont [15/16] 0.0, 128
        %2718 = vxpose.xlu0.b32.end [16/16] 0.0, 128
        %v2719 = vpop.trf.xlu0
        %v2720 = vpop.trf.xlu0
        %v2721 = vpop.trf.xlu0
        %v2722 = vpop.trf.xlu0
        %v2723 = vpop.trf.xlu0
        %v2724 = vpop.trf.xlu0
        %v2725 = vpop.trf.xlu0
        %v2726 = vpop.trf.xlu0
        %v2727 = vpop.trf.xlu0
        %v2728 = vpop.trf.xlu0
        %v2729 = vpop.trf.xlu0
        %v2730 = vpop.trf.xlu0
        %v2731 = vpop.trf.xlu0
        %v2732 = vpop.trf.xlu0
        %v2733 = vpop.trf.xlu0
        %v2734 = vpop.trf.xlu0
        %v2735 = vcombine.low %v1727, %v1791
        %v2736 = vcombine.high %v1727, %v1791
        %v2738 = vunpack.c.l.s4 1983009808
        %v2739 = vunpack.c.0.s8 %v2738
        %v2740 = vlaneseq
        %v2741 = vshrl.u32 %v2740, 7
        %v2742 = vsub.s32 %v2739, %v2741
        %v2743 = vrot.slane %v2735, %v2742
        %v2745 = vunpack.c.l.s4 1983009808
        %v2746 = vunpack.c.0.s8 %v2745
        %v2747 = vlaneseq
        %v2748 = vshrl.u32 %v2747, 7
        %v2749 = vsub.s32 %v2746, %v2748
        %v2750 = vrot.slane %v2736, %v2749
        %v2751 = vcombine.low %v1759, %v1823
        %v2752 = vcombine.high %v1759, %v1823
        %v2754 = vunpack.c.l.s4 1983009808
        %v2755 = vunpack.c.0.s8 %v2754
        %v2756 = vlaneseq
        %v2757 = vshrl.u32 %v2756, 7
        %v2758 = vsub.s32 %v2755, %v2757
        %v2759 = vrot.slane %v2751, %v2758
        %v2761 = vunpack.c.l.s4 1983009808
        %v2762 = vunpack.c.0.s8 %v2761
        %v2763 = vlaneseq
        %v2764 = vshrl.u32 %v2763, 7
        %v2765 = vsub.s32 %v2762, %v2764
        %v2766 = vrot.slane %v2752, %v2765
        %v2767 = vcombine.low %v1855, %v1919
        %v2768 = vcombine.high %v1855, %v1919
        %v2770 = vunpack.c.l.s4 1983009808
        %v2771 = vunpack.c.0.s8 %v2770
        %v2772 = vlaneseq
        %v2773 = vshrl.u32 %v2772, 7
        %v2774 = vsub.s32 %v2771, %v2773
        %v2775 = vrot.slane %v2767, %v2774
        %v2777 = vunpack.c.l.s4 1983009808
        %v2778 = vunpack.c.0.s8 %v2777
        %v2779 = vlaneseq
        %v2780 = vshrl.u32 %v2779, 7
        %v2781 = vsub.s32 %v2778, %v2780
        %v2782 = vrot.slane %v2768, %v2781
        %v2783 = vcombine.low %v1887, %v1951
        %v2784 = vcombine.high %v1887, %v1951
        %v2786 = vunpack.c.l.s4 1983009808
        %v2787 = vunpack.c.0.s8 %v2786
        %v2788 = vlaneseq
        %v2789 = vshrl.u32 %v2788, 7
        %v2790 = vsub.s32 %v2787, %v2789
        %v2791 = vrot.slane %v2783, %v2790
        %v2793 = vunpack.c.l.s4 1983009808
        %v2794 = vunpack.c.0.s8 %v2793
        %v2795 = vlaneseq
        %v2796 = vshrl.u32 %v2795, 7
        %v2797 = vsub.s32 %v2794, %v2796
        %v2798 = vrot.slane %v2784, %v2797
        %v2799 = vcombine.low %v2743, %v2759
        %v2800 = vcombine.high %v2743, %v2759
        %v2802 = vunpack.c.l.s4 1934713408
        %v2803 = vunpack.c.0.s8 %v2802
        %v2804 = vlaneseq
        %v2805 = vshrl.u32 %v2804, 7
        %v2806 = vsub.s32 %v2803, %v2805
        %v2807 = vrot.slane %v2799, %v2806
        %v2809 = vunpack.c.l.s4 1934713408
        %v2810 = vunpack.c.0.s8 %v2809
        %v2811 = vlaneseq
        %v2812 = vshrl.u32 %v2811, 7
        %v2813 = vsub.s32 %v2810, %v2812
        %v2814 = vrot.slane %v2800, %v2813
        %v2815 = vcombine.low %v2750, %v2766
        %v2816 = vcombine.high %v2750, %v2766
        %v2818 = vunpack.c.l.s4 1934713408
        %v2819 = vunpack.c.0.s8 %v2818
        %v2820 = vlaneseq
        %v2821 = vshrl.u32 %v2820, 7
        %v2822 = vsub.s32 %v2819, %v2821
        %v2823 = vrot.slane %v2815, %v2822
        %v2825 = vunpack.c.l.s4 1934713408
        %v2826 = vunpack.c.0.s8 %v2825
        %v2827 = vlaneseq
        %v2828 = vshrl.u32 %v2827, 7
        %v2829 = vsub.s32 %v2826, %v2828
        %v2830 = vrot.slane %v2816, %v2829
        %v2831 = vcombine.low %v2775, %v2791
        %v2832 = vcombine.high %v2775, %v2791
        %v2834 = vunpack.c.l.s4 1934713408
        %v2835 = vunpack.c.0.s8 %v2834
        %v2836 = vlaneseq
        %v2837 = vshrl.u32 %v2836, 7
        %v2838 = vsub.s32 %v2835, %v2837
        %v2839 = vrot.slane %v2831, %v2838
        %v2841 = vunpack.c.l.s4 1934713408
        %v2842 = vunpack.c.0.s8 %v2841
        %v2843 = vlaneseq
        %v2844 = vshrl.u32 %v2843, 7
        %v2845 = vsub.s32 %v2842, %v2844
        %v2846 = vrot.slane %v2832, %v2845
        %v2847 = vcombine.low %v2782, %v2798
        %v2848 = vcombine.high %v2782, %v2798
        %v2850 = vunpack.c.l.s4 1934713408
        %v2851 = vunpack.c.0.s8 %v2850
        %v2852 = vlaneseq
        %v2853 = vshrl.u32 %v2852, 7
        %v2854 = vsub.s32 %v2851, %v2853
        %v2855 = vrot.slane %v2847, %v2854
        %v2857 = vunpack.c.l.s4 1934713408
        %v2858 = vunpack.c.0.s8 %v2857
        %v2859 = vlaneseq
        %v2860 = vshrl.u32 %v2859, 7
        %v2861 = vsub.s32 %v2858, %v2860
        %v2862 = vrot.slane %v2848, %v2861
        %v2863 = vcombine.low %v2807, %v2839
        %v2864 = vcombine.high %v2807, %v2839
        %v2865 = vcombine.low %v2814, %v2846
        %v2866 = vcombine.high %v2814, %v2846
        %v2867 = vcombine.low %v2823, %v2855
        %v2868 = vcombine.high %v2823, %v2855
        %v2869 = vcombine.low %v2830, %v2862
        %v2870 = vcombine.high %v2830, %v2862
        %v2871 = vcombine.low %v1983, %v2047
        %v2872 = vcombine.high %v1983, %v2047
        %v2874 = vunpack.c.l.s4 1983009808
        %v2875 = vunpack.c.0.s8 %v2874
        %v2876 = vlaneseq
        %v2877 = vshrl.u32 %v2876, 7
        %v2878 = vsub.s32 %v2875, %v2877
        %v2879 = vrot.slane %v2871, %v2878
        %v2881 = vunpack.c.l.s4 1983009808
        %v2882 = vunpack.c.0.s8 %v2881
        %v2883 = vlaneseq
        %v2884 = vshrl.u32 %v2883, 7
        %v2885 = vsub.s32 %v2882, %v2884
        %v2886 = vrot.slane %v2872, %v2885
        %v2887 = vcombine.low %v2015, %v2079
        %v2888 = vcombine.high %v2015, %v2079
        %v2890 = vunpack.c.l.s4 1983009808
        %v2891 = vunpack.c.0.s8 %v2890
        %v2892 = vlaneseq
        %v2893 = vshrl.u32 %v2892, 7
        %v2894 = vsub.s32 %v2891, %v2893
        %v2895 = vrot.slane %v2887, %v2894
        %v2897 = vunpack.c.l.s4 1983009808
        %v2898 = vunpack.c.0.s8 %v2897
        %v2899 = vlaneseq
        %v2900 = vshrl.u32 %v2899, 7
        %v2901 = vsub.s32 %v2898, %v2900
        %v2902 = vrot.slane %v2888, %v2901
        %v2903 = vcombine.low %v2111, %v2175
        %v2904 = vcombine.high %v2111, %v2175
        %v2906 = vunpack.c.l.s4 1983009808
        %v2907 = vunpack.c.0.s8 %v2906
        %v2908 = vlaneseq
        %v2909 = vshrl.u32 %v2908, 7
        %v2910 = vsub.s32 %v2907, %v2909
        %v2911 = vrot.slane %v2903, %v2910
        %v2913 = vunpack.c.l.s4 1983009808
        %v2914 = vunpack.c.0.s8 %v2913
        %v2915 = vlaneseq
        %v2916 = vshrl.u32 %v2915, 7
        %v2917 = vsub.s32 %v2914, %v2916
        %v2918 = vrot.slane %v2904, %v2917
        %v2919 = vcombine.low %v2143, %v2207
        %v2920 = vcombine.high %v2143, %v2207
        %v2922 = vunpack.c.l.s4 1983009808
        %v2923 = vunpack.c.0.s8 %v2922
        %v2924 = vlaneseq
        %v2925 = vshrl.u32 %v2924, 7
        %v2926 = vsub.s32 %v2923, %v2925
        %v2927 = vrot.slane %v2919, %v2926
        %v2929 = vunpack.c.l.s4 1983009808
        %v2930 = vunpack.c.0.s8 %v2929
        %v2931 = vlaneseq
        %v2932 = vshrl.u32 %v2931, 7
        %v2933 = vsub.s32 %v2930, %v2932
        %v2934 = vrot.slane %v2920, %v2933
        %v2935 = vcombine.low %v2879, %v2895
        %v2936 = vcombine.high %v2879, %v2895
        %v2938 = vunpack.c.l.s4 1934713408
        %v2939 = vunpack.c.0.s8 %v2938
        %v2940 = vlaneseq
        %v2941 = vshrl.u32 %v2940, 7
        %v2942 = vsub.s32 %v2939, %v2941
        %v2943 = vrot.slane %v2935, %v2942
        %v2945 = vunpack.c.l.s4 1934713408
        %v2946 = vunpack.c.0.s8 %v2945
        %v2947 = vlaneseq
        %v2948 = vshrl.u32 %v2947, 7
        %v2949 = vsub.s32 %v2946, %v2948
        %v2950 = vrot.slane %v2936, %v2949
        %v2951 = vcombine.low %v2886, %v2902
        %v2952 = vcombine.high %v2886, %v2902
        %v2954 = vunpack.c.l.s4 1934713408
        %v2955 = vunpack.c.0.s8 %v2954
        %v2956 = vlaneseq
        %v2957 = vshrl.u32 %v2956, 7
        %v2958 = vsub.s32 %v2955, %v2957
        %v2959 = vrot.slane %v2951, %v2958
        %v2961 = vunpack.c.l.s4 1934713408
        %v2962 = vunpack.c.0.s8 %v2961
        %v2963 = vlaneseq
        %v2964 = vshrl.u32 %v2963, 7
        %v2965 = vsub.s32 %v2962, %v2964
        %v2966 = vrot.slane %v2952, %v2965
        %v2967 = vcombine.low %v2911, %v2927
        %v2968 = vcombine.high %v2911, %v2927
        %v2970 = vunpack.c.l.s4 1934713408
        %v2971 = vunpack.c.0.s8 %v2970
        %v2972 = vlaneseq
        %v2973 = vshrl.u32 %v2972, 7
        %v2974 = vsub.s32 %v2971, %v2973
        %v2975 = vrot.slane %v2967, %v2974
        %v2977 = vunpack.c.l.s4 1934713408
        %v2978 = vunpack.c.0.s8 %v2977
        %v2979 = vlaneseq
        %v2980 = vshrl.u32 %v2979, 7
        %v2981 = vsub.s32 %v2978, %v2980
        %v2982 = vrot.slane %v2968, %v2981
        %v2983 = vcombine.low %v2918, %v2934
        %v2984 = vcombine.high %v2918, %v2934
        %v2986 = vunpack.c.l.s4 1934713408
        %v2987 = vunpack.c.0.s8 %v2986
        %v2988 = vlaneseq
        %v2989 = vshrl.u32 %v2988, 7
        %v2990 = vsub.s32 %v2987, %v2989
        %v2991 = vrot.slane %v2983, %v2990
        %v2993 = vunpack.c.l.s4 1934713408
        %v2994 = vunpack.c.0.s8 %v2993
        %v2995 = vlaneseq
        %v2996 = vshrl.u32 %v2995, 7
        %v2997 = vsub.s32 %v2994, %v2996
        %v2998 = vrot.slane %v2984, %v2997
        %v2999 = vcombine.low %v2943, %v2975
        %v3000 = vcombine.high %v2943, %v2975
        %v3001 = vcombine.low %v2950, %v2982
        %v3002 = vcombine.high %v2950, %v2982
        %v3003 = vcombine.low %v2959, %v2991
        %v3004 = vcombine.high %v2959, %v2991
        %v3005 = vcombine.low %v2966, %v2998
        %v3006 = vcombine.high %v2966, %v2998
        %v3007 = vcombine.low %v2239, %v2303
        %v3008 = vcombine.high %v2239, %v2303
        %v3010 = vunpack.c.l.s4 1983009808
        %v3011 = vunpack.c.0.s8 %v3010
        %v3012 = vlaneseq
        %v3013 = vshrl.u32 %v3012, 7
        %v3014 = vsub.s32 %v3011, %v3013
        %v3015 = vrot.slane %v3007, %v3014
        %v3017 = vunpack.c.l.s4 1983009808
        %v3018 = vunpack.c.0.s8 %v3017
        %v3019 = vlaneseq
        %v3020 = vshrl.u32 %v3019, 7
        %v3021 = vsub.s32 %v3018, %v3020
        %v3022 = vrot.slane %v3008, %v3021
        %v3023 = vcombine.low %v2271, %v2335
        %v3024 = vcombine.high %v2271, %v2335
        %v3026 = vunpack.c.l.s4 1983009808
        %v3027 = vunpack.c.0.s8 %v3026
        %v3028 = vlaneseq
        %v3029 = vshrl.u32 %v3028, 7
        %v3030 = vsub.s32 %v3027, %v3029
        %v3031 = vrot.slane %v3023, %v3030
        %v3033 = vunpack.c.l.s4 1983009808
        %v3034 = vunpack.c.0.s8 %v3033
        %v3035 = vlaneseq
        %v3036 = vshrl.u32 %v3035, 7
        %v3037 = vsub.s32 %v3034, %v3036
        %v3038 = vrot.slane %v3024, %v3037
        %v3039 = vcombine.low %v2367, %v2431
        %v3040 = vcombine.high %v2367, %v2431
        %v3042 = vunpack.c.l.s4 1983009808
        %v3043 = vunpack.c.0.s8 %v3042
        %v3044 = vlaneseq
        %v3045 = vshrl.u32 %v3044, 7
        %v3046 = vsub.s32 %v3043, %v3045
        %v3047 = vrot.slane %v3039, %v3046
        %v3049 = vunpack.c.l.s4 1983009808
        %v3050 = vunpack.c.0.s8 %v3049
        %v3051 = vlaneseq
        %v3052 = vshrl.u32 %v3051, 7
        %v3053 = vsub.s32 %v3050, %v3052
        %v3054 = vrot.slane %v3040, %v3053
        %v3055 = vcombine.low %v2399, %v2463
        %v3056 = vcombine.high %v2399, %v2463
        %v3058 = vunpack.c.l.s4 1983009808
        %v3059 = vunpack.c.0.s8 %v3058
        %v3060 = vlaneseq
        %v3061 = vshrl.u32 %v3060, 7
        %v3062 = vsub.s32 %v3059, %v3061
        %v3063 = vrot.slane %v3055, %v3062
        %v3065 = vunpack.c.l.s4 1983009808
        %v3066 = vunpack.c.0.s8 %v3065
        %v3067 = vlaneseq
        %v3068 = vshrl.u32 %v3067, 7
        %v3069 = vsub.s32 %v3066, %v3068
        %v3070 = vrot.slane %v3056, %v3069
        %v3071 = vcombine.low %v3015, %v3031
        %v3072 = vcombine.high %v3015, %v3031
        %v3074 = vunpack.c.l.s4 1934713408
        %v3075 = vunpack.c.0.s8 %v3074
        %v3076 = vlaneseq
        %v3077 = vshrl.u32 %v3076, 7
        %v3078 = vsub.s32 %v3075, %v3077
        %v3079 = vrot.slane %v3071, %v3078
        %v3081 = vunpack.c.l.s4 1934713408
        %v3082 = vunpack.c.0.s8 %v3081
        %v3083 = vlaneseq
        %v3084 = vshrl.u32 %v3083, 7
        %v3085 = vsub.s32 %v3082, %v3084
        %v3086 = vrot.slane %v3072, %v3085
        %v3087 = vcombine.low %v3022, %v3038
        %v3088 = vcombine.high %v3022, %v3038
        %v3090 = vunpack.c.l.s4 1934713408
        %v3091 = vunpack.c.0.s8 %v3090
        %v3092 = vlaneseq
        %v3093 = vshrl.u32 %v3092, 7
        %v3094 = vsub.s32 %v3091, %v3093
        %v3095 = vrot.slane %v3087, %v3094
        %v3097 = vunpack.c.l.s4 1934713408
        %v3098 = vunpack.c.0.s8 %v3097
        %v3099 = vlaneseq
        %v3100 = vshrl.u32 %v3099, 7
        %v3101 = vsub.s32 %v3098, %v3100
        %v3102 = vrot.slane %v3088, %v3101
        %v3103 = vcombine.low %v3047, %v3063
        %v3104 = vcombine.high %v3047, %v3063
        %v3106 = vunpack.c.l.s4 1934713408
        %v3107 = vunpack.c.0.s8 %v3106
        %v3108 = vlaneseq
        %v3109 = vshrl.u32 %v3108, 7
        %v3110 = vsub.s32 %v3107, %v3109
        %v3111 = vrot.slane %v3103, %v3110
        %v3113 = vunpack.c.l.s4 1934713408
        %v3114 = vunpack.c.0.s8 %v3113
        %v3115 = vlaneseq
        %v3116 = vshrl.u32 %v3115, 7
        %v3117 = vsub.s32 %v3114, %v3116
        %v3118 = vrot.slane %v3104, %v3117
        %v3119 = vcombine.low %v3054, %v3070
        %v3120 = vcombine.high %v3054, %v3070
        %v3122 = vunpack.c.l.s4 1934713408
        %v3123 = vunpack.c.0.s8 %v3122
        %v3124 = vlaneseq
        %v3125 = vshrl.u32 %v3124, 7
        %v3126 = vsub.s32 %v3123, %v3125
        %v3127 = vrot.slane %v3119, %v3126
        %v3129 = vunpack.c.l.s4 1934713408
        %v3130 = vunpack.c.0.s8 %v3129
        %v3131 = vlaneseq
        %v3132 = vshrl.u32 %v3131, 7
        %v3133 = vsub.s32 %v3130, %v3132
        %v3134 = vrot.slane %v3120, %v3133
        %v3135 = vcombine.low %v3079, %v3111
        %v3136 = vcombine.high %v3079, %v3111
        %v3137 = vcombine.low %v3086, %v3118
        %v3138 = vcombine.high %v3086, %v3118
        %v3139 = vcombine.low %v3095, %v3127
        %v3140 = vcombine.high %v3095, %v3127
        %v3141 = vcombine.low %v3102, %v3134
        %v3142 = vcombine.high %v3102, %v3134
        %v3143 = vcombine.low %v2495, %v2559
        %v3144 = vcombine.high %v2495, %v2559
        %v3146 = vunpack.c.l.s4 1983009808
        %v3147 = vunpack.c.0.s8 %v3146
        %v3148 = vlaneseq
        %v3149 = vshrl.u32 %v3148, 7
        %v3150 = vsub.s32 %v3147, %v3149
        %v3151 = vrot.slane %v3143, %v3150
        %v3153 = vunpack.c.l.s4 1983009808
        %v3154 = vunpack.c.0.s8 %v3153
        %v3155 = vlaneseq
        %v3156 = vshrl.u32 %v3155, 7
        %v3157 = vsub.s32 %v3154, %v3156
        %v3158 = vrot.slane %v3144, %v3157
        %v3159 = vcombine.low %v2527, %v2591
        %v3160 = vcombine.high %v2527, %v2591
        %v3162 = vunpack.c.l.s4 1983009808
        %v3163 = vunpack.c.0.s8 %v3162
        %v3164 = vlaneseq
        %v3165 = vshrl.u32 %v3164, 7
        %v3166 = vsub.s32 %v3163, %v3165
        %v3167 = vrot.slane %v3159, %v3166
        %v3169 = vunpack.c.l.s4 1983009808
        %v3170 = vunpack.c.0.s8 %v3169
        %v3171 = vlaneseq
        %v3172 = vshrl.u32 %v3171, 7
        %v3173 = vsub.s32 %v3170, %v3172
        %v3174 = vrot.slane %v3160, %v3173
        %v3175 = vcombine.low %v2623, %v2687
        %v3176 = vcombine.high %v2623, %v2687
        %v3178 = vunpack.c.l.s4 1983009808
        %v3179 = vunpack.c.0.s8 %v3178
        %v3180 = vlaneseq
        %v3181 = vshrl.u32 %v3180, 7
        %v3182 = vsub.s32 %v3179, %v3181
        %v3183 = vrot.slane %v3175, %v3182
        %v3185 = vunpack.c.l.s4 1983009808
        %v3186 = vunpack.c.0.s8 %v3185
        %v3187 = vlaneseq
        %v3188 = vshrl.u32 %v3187, 7
        %v3189 = vsub.s32 %v3186, %v3188
        %v3190 = vrot.slane %v3176, %v3189
        %v3191 = vcombine.low %v2655, %v2719
        %v3192 = vcombine.high %v2655, %v2719
        %v3194 = vunpack.c.l.s4 1983009808
        %v3195 = vunpack.c.0.s8 %v3194
        %v3196 = vlaneseq
        %v3197 = vshrl.u32 %v3196, 7
        %v3198 = vsub.s32 %v3195, %v3197
        %v3199 = vrot.slane %v3191, %v3198
        %v3201 = vunpack.c.l.s4 1983009808
        %v3202 = vunpack.c.0.s8 %v3201
        %v3203 = vlaneseq
        %v3204 = vshrl.u32 %v3203, 7
        %v3205 = vsub.s32 %v3202, %v3204
        %v3206 = vrot.slane %v3192, %v3205
        %v3207 = vcombine.low %v3151, %v3167
        %v3208 = vcombine.high %v3151, %v3167
        %v3210 = vunpack.c.l.s4 1934713408
        %v3211 = vunpack.c.0.s8 %v3210
        %v3212 = vlaneseq
        %v3213 = vshrl.u32 %v3212, 7
        %v3214 = vsub.s32 %v3211, %v3213
        %v3215 = vrot.slane %v3207, %v3214
        %v3217 = vunpack.c.l.s4 1934713408
        %v3218 = vunpack.c.0.s8 %v3217
        %v3219 = vlaneseq
        %v3220 = vshrl.u32 %v3219, 7
        %v3221 = vsub.s32 %v3218, %v3220
        %v3222 = vrot.slane %v3208, %v3221
        %v3223 = vcombine.low %v3158, %v3174
        %v3224 = vcombine.high %v3158, %v3174
        %v3226 = vunpack.c.l.s4 1934713408
        %v3227 = vunpack.c.0.s8 %v3226
        %v3228 = vlaneseq
        %v3229 = vshrl.u32 %v3228, 7
        %v3230 = vsub.s32 %v3227, %v3229
        %v3231 = vrot.slane %v3223, %v3230
        %v3233 = vunpack.c.l.s4 1934713408
        %v3234 = vunpack.c.0.s8 %v3233
        %v3235 = vlaneseq
        %v3236 = vshrl.u32 %v3235, 7
        %v3237 = vsub.s32 %v3234, %v3236
        %v3238 = vrot.slane %v3224, %v3237
        %v3239 = vcombine.low %v3183, %v3199
        %v3240 = vcombine.high %v3183, %v3199
        %v3242 = vunpack.c.l.s4 1934713408
        %v3243 = vunpack.c.0.s8 %v3242
        %v3244 = vlaneseq
        %v3245 = vshrl.u32 %v3244, 7
        %v3246 = vsub.s32 %v3243, %v3245
        %v3247 = vrot.slane %v3239, %v3246
        %v3249 = vunpack.c.l.s4 1934713408
        %v3250 = vunpack.c.0.s8 %v3249
        %v3251 = vlaneseq
        %v3252 = vshrl.u32 %v3251, 7
        %v3253 = vsub.s32 %v3250, %v3252
        %v3254 = vrot.slane %v3240, %v3253
        %v3255 = vcombine.low %v3190, %v3206
        %v3256 = vcombine.high %v3190, %v3206
        %v3258 = vunpack.c.l.s4 1934713408
        %v3259 = vunpack.c.0.s8 %v3258
        %v3260 = vlaneseq
        %v3261 = vshrl.u32 %v3260, 7
        %v3262 = vsub.s32 %v3259, %v3261
        %v3263 = vrot.slane %v3255, %v3262
        %v3265 = vunpack.c.l.s4 1934713408
        %v3266 = vunpack.c.0.s8 %v3265
        %v3267 = vlaneseq
        %v3268 = vshrl.u32 %v3267, 7
        %v3269 = vsub.s32 %v3266, %v3268
        %v3270 = vrot.slane %v3256, %v3269
        %v3271 = vcombine.low %v3215, %v3247
        %v3272 = vcombine.high %v3215, %v3247
        %v3273 = vcombine.low %v3222, %v3254
        %v3274 = vcombine.high %v3222, %v3254
        %v3275 = vcombine.low %v3231, %v3263
        %v3276 = vcombine.high %v3231, %v3263
        %v3277 = vcombine.low %v3238, %v3270
        %v3278 = vcombine.high %v3238, %v3270
        %3279 = vxpose.xlu0.b32.start [1/16] %v292, 128
        %3280 = vxpose.xlu0.b32.cont [2/16] %v293, 128
        %3281 = vxpose.xlu0.b32.cont [3/16] %v294, 128
        %3282 = vxpose.xlu0.b32.cont [4/16] %v295, 128
        %3283 = vxpose.xlu0.b32.cont [5/16] 0.0, 128
        %3284 = vxpose.xlu0.b32.cont [6/16] 0.0, 128
        %3285 = vxpose.xlu0.b32.cont [7/16] 0.0, 128
        %3286 = vxpose.xlu0.b32.cont [8/16] 0.0, 128
        %3287 = vxpose.xlu0.b32.cont [9/16] 0.0, 128
        %3288 = vxpose.xlu0.b32.cont [10/16] 0.0, 128
        %3289 = vxpose.xlu0.b32.cont [11/16] 0.0, 128
        %3290 = vxpose.xlu0.b32.cont [12/16] 0.0, 128
        %3291 = vxpose.xlu0.b32.cont [13/16] 0.0, 128
        %3292 = vxpose.xlu0.b32.cont [14/16] 0.0, 128
        %3293 = vxpose.xlu0.b32.cont [15/16] 0.0, 128
        %3294 = vxpose.xlu0.b32.end [16/16] 0.0, 128
        %v3295 = vpop.trf.xlu0
        %v3296 = vpop.trf.xlu0
        %v3297 = vpop.trf.xlu0
        %v3298 = vpop.trf.xlu0
        %v3299 = vpop.trf.xlu0
        %v3300 = vpop.trf.xlu0
        %v3301 = vpop.trf.xlu0
        %v3302 = vpop.trf.xlu0
        %v3303 = vpop.trf.xlu0
        %v3304 = vpop.trf.xlu0
        %v3305 = vpop.trf.xlu0
        %v3306 = vpop.trf.xlu0
        %v3307 = vpop.trf.xlu0
        %v3308 = vpop.trf.xlu0
        %v3309 = vpop.trf.xlu0
        %v3310 = vpop.trf.xlu0
        %v3312 = vsel %vm326, %v3295, 0
        %3314 = vmatprep.subr.mxu0 0.0
        %3315 = vmatpush1.msra.mxu0 %v2863
        %3316 = vmatprep.subr.mxu0 0.0
        %3317 = vmatpush1.msra.mxu0 %v2999
        %3318 = vmatprep.subr.mxu0 0.0
        %3319 = vmatpush1.msra.mxu0 %v3135
        %3320 = vmatprep.subr.mxu0 0.0
        %3321 = vmatpush1.msra.mxu0 %v3271
        %3322 = vmatprep.subr.mxu0 0.0
        %3323 = vmatpush1.msra.mxu0 0.0
        %3324 = vmatprep.subr.mxu0 0.0
        %3325 = vmatpush1.msra.mxu0 0.0
        %3326 = vmatprep.subr.mxu0 0.0
        %3327 = vmatpush1.msra.mxu0 0.0
        %3328 = vmatprep.subr.mxu0 0.0
        %3329 = vmatpush1.msra.mxu0 0.0
        %3330 = vmatprep.subr.mxu0 0.0
        %3331 = vmatpush1.msra.mxu0 0.0
        %3332 = vmatprep.subr.mxu0 0.0
        %3333 = vmatpush1.msra.mxu0 0.0
        %3334 = vmatprep.subr.mxu0 0.0
        %3335 = vmatpush1.msra.mxu0 0.0
        %3336 = vmatprep.subr.mxu0 0.0
        %3337 = vmatpush1.msra.mxu0 0.0
        %3338 = vmatprep.subr.mxu0 0.0
        %3339 = vmatpush1.msra.mxu0 0.0
        %3340 = vmatprep.subr.mxu0 0.0
        %3341 = vmatpush1.msra.mxu0 0.0
        %3342 = vmatprep.subr.mxu0 0.0
        %3343 = vmatpush1.msra.mxu0 0.0
        %3344 = vmatprep.subr.mxu0 0.0
        %3345 = vmatpush1.msra.mxu0 0.0
        %3346 = vmatprep.subr.mxu0 0.0
        %3347 = vmatpush1.msra.mxu0 0.0
        %3348 = vmatprep.subr.mxu0 0.0
        %3349 = vmatpush1.msra.mxu0 0.0
        %3350 = vmatprep.subr.mxu0 0.0
        %3351 = vmatpush1.msra.mxu0 0.0
        %3352 = vmatprep.subr.mxu0 0.0
        %3353 = vmatpush1.msra.mxu0 0.0
        %3354 = vmatprep.subr.mxu0 0.0
        %3355 = vmatpush1.msra.mxu0 0.0
        %3356 = vmatprep.subr.mxu0 0.0
        %3357 = vmatpush1.msra.mxu0 0.0
        %3358 = vmatprep.subr.mxu0 0.0
        %3359 = vmatpush1.msra.mxu0 0.0
        %3360 = vmatprep.subr.mxu0 0.0
        %3361 = vmatpush1.msra.mxu0 0.0
        %3362 = vmatprep.subr.mxu0 0.0
        %3363 = vmatpush1.msra.mxu0 0.0
        %3364 = vmatprep.subr.mxu0 0.0
        %3365 = vmatpush1.msra.mxu0 0.0
        %3366 = vmatprep.subr.mxu0 0.0
        %3367 = vmatpush1.msra.mxu0 0.0
        %3368 = vmatprep.subr.mxu0 0.0
        %3369 = vmatpush1.msra.mxu0 0.0
        %3370 = vmatprep.subr.mxu0 0.0
        %3371 = vmatpush1.msra.mxu0 0.0
        %3372 = vmatprep.subr.mxu0 0.0
        %3373 = vmatpush1.msra.mxu0 0.0
        %3374 = vmatprep.subr.mxu0 0.0
        %3375 = vmatpush1.msra.mxu0 0.0
        %3376 = vmatprep.subr.mxu0 0.0
        %3377 = vmatpush1.msra.mxu0 0.0
        %3378 = vmatprep.mubr.f32.mxu0 0.0
        %3379 = vmatmul.mubr.f32.gmra.mrb[0].mxu0 %v3312
        %v3380 = vpop.f32.mrb[0].mxu0
        %v3381 = vadd.f32 0.0, %v3380
        %v3382 = vpop.f32.mrb[0].mxu0
        %3383 = vdwg.mxu0
        %3384 = vxpose.xlu0.b32.start [1/16] %v296, 128
        %3385 = vxpose.xlu0.b32.cont [2/16] %v297, 128
        %3386 = vxpose.xlu0.b32.cont [3/16] %v298, 128
        %3387 = vxpose.xlu0.b32.cont [4/16] %v299, 128
        %3388 = vxpose.xlu0.b32.cont [5/16] 0.0, 128
        %3389 = vxpose.xlu0.b32.cont [6/16] 0.0, 128
        %3390 = vxpose.xlu0.b32.cont [7/16] 0.0, 128
        %3391 = vxpose.xlu0.b32.cont [8/16] 0.0, 128
        %3392 = vxpose.xlu0.b32.cont [9/16] 0.0, 128
        %3393 = vxpose.xlu0.b32.cont [10/16] 0.0, 128
        %3394 = vxpose.xlu0.b32.cont [11/16] 0.0, 128
        %3395 = vxpose.xlu0.b32.cont [12/16] 0.0, 128
        %3396 = vxpose.xlu0.b32.cont [13/16] 0.0, 128
        %3397 = vxpose.xlu0.b32.cont [14/16] 0.0, 128
        %3398 = vxpose.xlu0.b32.cont [15/16] 0.0, 128
        %3399 = vxpose.xlu0.b32.end [16/16] 0.0, 128
        %v3400 = vpop.trf.xlu0
        %v3401 = vpop.trf.xlu0
        %v3402 = vpop.trf.xlu0
        %v3403 = vpop.trf.xlu0
        %v3404 = vpop.trf.xlu0
        %v3405 = vpop.trf.xlu0
        %v3406 = vpop.trf.xlu0
        %v3407 = vpop.trf.xlu0
        %v3408 = vpop.trf.xlu0
        %v3409 = vpop.trf.xlu0
        %v3410 = vpop.trf.xlu0
        %v3411 = vpop.trf.xlu0
        %v3412 = vpop.trf.xlu0
        %v3413 = vpop.trf.xlu0
        %v3414 = vpop.trf.xlu0
        %v3415 = vpop.trf.xlu0
        %v3417 = vsel %vm326, %v3400, 0
        %3419 = vmatprep.subr.mxu0 0.0
        %3420 = vmatpush1.msra.mxu0 %v2864
        %3421 = vmatprep.subr.mxu0 0.0
        %3422 = vmatpush1.msra.mxu0 %v3000
        %3423 = vmatprep.subr.mxu0 0.0
        %3424 = vmatpush1.msra.mxu0 %v3136
        %3425 = vmatprep.subr.mxu0 0.0
        %3426 = vmatpush1.msra.mxu0 %v3272
        %3427 = vmatprep.subr.mxu0 0.0
        %3428 = vmatpush1.msra.mxu0 0.0
        %3429 = vmatprep.subr.mxu0 0.0
        %3430 = vmatpush1.msra.mxu0 0.0
        %3431 = vmatprep.subr.mxu0 0.0
        %3432 = vmatpush1.msra.mxu0 0.0
        %3433 = vmatprep.subr.mxu0 0.0
        %3434 = vmatpush1.msra.mxu0 0.0
        %3435 = vmatprep.subr.mxu0 0.0
        %3436 = vmatpush1.msra.mxu0 0.0
        %3437 = vmatprep.subr.mxu0 0.0
        %3438 = vmatpush1.msra.mxu0 0.0
        %3439 = vmatprep.subr.mxu0 0.0
        %3440 = vmatpush1.msra.mxu0 0.0
        %3441 = vmatprep.subr.mxu0 0.0
        %3442 = vmatpush1.msra.mxu0 0.0
        %3443 = vmatprep.subr.mxu0 0.0
        %3444 = vmatpush1.msra.mxu0 0.0
        %3445 = vmatprep.subr.mxu0 0.0
        %3446 = vmatpush1.msra.mxu0 0.0
        %3447 = vmatprep.subr.mxu0 0.0
        %3448 = vmatpush1.msra.mxu0 0.0
        %3449 = vmatprep.subr.mxu0 0.0
        %3450 = vmatpush1.msra.mxu0 0.0
        %3451 = vmatprep.subr.mxu0 0.0
        %3452 = vmatpush1.msra.mxu0 0.0
        %3453 = vmatprep.subr.mxu0 0.0
        %3454 = vmatpush1.msra.mxu0 0.0
        %3455 = vmatprep.subr.mxu0 0.0
        %3456 = vmatpush1.msra.mxu0 0.0
        %3457 = vmatprep.subr.mxu0 0.0
        %3458 = vmatpush1.msra.mxu0 0.0
        %3459 = vmatprep.subr.mxu0 0.0
        %3460 = vmatpush1.msra.mxu0 0.0
        %3461 = vmatprep.subr.mxu0 0.0
        %3462 = vmatpush1.msra.mxu0 0.0
        %3463 = vmatprep.subr.mxu0 0.0
        %3464 = vmatpush1.msra.mxu0 0.0
        %3465 = vmatprep.subr.mxu0 0.0
        %3466 = vmatpush1.msra.mxu0 0.0
        %3467 = vmatprep.subr.mxu0 0.0
        %3468 = vmatpush1.msra.mxu0 0.0
        %3469 = vmatprep.subr.mxu0 0.0
        %3470 = vmatpush1.msra.mxu0 0.0
        %3471 = vmatprep.subr.mxu0 0.0
        %3472 = vmatpush1.msra.mxu0 0.0
        %3473 = vmatprep.subr.mxu0 0.0
        %3474 = vmatpush1.msra.mxu0 0.0
        %3475 = vmatprep.subr.mxu0 0.0
        %3476 = vmatpush1.msra.mxu0 0.0
        %3477 = vmatprep.subr.mxu0 0.0
        %3478 = vmatpush1.msra.mxu0 0.0
        %3479 = vmatprep.subr.mxu0 0.0
        %3480 = vmatpush1.msra.mxu0 0.0
        %3481 = vmatprep.subr.mxu0 0.0
        %3482 = vmatpush1.msra.mxu0 0.0
        %3483 = vmatprep.mubr.f32.mxu0 0.0
        %3484 = vmatmul.mubr.f32.gmra.mrb[0].mxu0 %v3417
        %v3485 = vpop.f32.mrb[0].mxu0
        %v3486 = vadd.f32 0.0, %v3485
        %v3487 = vpop.f32.mrb[0].mxu0
        %3488 = vdwg.mxu0
        %3489 = vxpose.xlu0.b32.start [1/16] %v300, 128
        %3490 = vxpose.xlu0.b32.cont [2/16] %v301, 128
        %3491 = vxpose.xlu0.b32.cont [3/16] %v302, 128
        %3492 = vxpose.xlu0.b32.cont [4/16] %v303, 128
        %3493 = vxpose.xlu0.b32.cont [5/16] 0.0, 128
        %3494 = vxpose.xlu0.b32.cont [6/16] 0.0, 128
        %3495 = vxpose.xlu0.b32.cont [7/16] 0.0, 128
        %3496 = vxpose.xlu0.b32.cont [8/16] 0.0, 128
        %3497 = vxpose.xlu0.b32.cont [9/16] 0.0, 128
        %3498 = vxpose.xlu0.b32.cont [10/16] 0.0, 128
        %3499 = vxpose.xlu0.b32.cont [11/16] 0.0, 128
        %3500 = vxpose.xlu0.b32.cont [12/16] 0.0, 128
        %3501 = vxpose.xlu0.b32.cont [13/16] 0.0, 128
        %3502 = vxpose.xlu0.b32.cont [14/16] 0.0, 128
        %3503 = vxpose.xlu0.b32.cont [15/16] 0.0, 128
        %3504 = vxpose.xlu0.b32.end [16/16] 0.0, 128
        %v3505 = vpop.trf.xlu0
        %v3506 = vpop.trf.xlu0
        %v3507 = vpop.trf.xlu0
        %v3508 = vpop.trf.xlu0
        %v3509 = vpop.trf.xlu0
        %v3510 = vpop.trf.xlu0
        %v3511 = vpop.trf.xlu0
        %v3512 = vpop.trf.xlu0
        %v3513 = vpop.trf.xlu0
        %v3514 = vpop.trf.xlu0
        %v3515 = vpop.trf.xlu0
        %v3516 = vpop.trf.xlu0
        %v3517 = vpop.trf.xlu0
        %v3518 = vpop.trf.xlu0
        %v3519 = vpop.trf.xlu0
        %v3520 = vpop.trf.xlu0
        %v3522 = vsel %vm326, %v3505, 0
        %3524 = vmatprep.subr.mxu0 0.0
        %3525 = vmatpush1.msra.mxu0 %v2865
        %3526 = vmatprep.subr.mxu0 0.0
        %3527 = vmatpush1.msra.mxu0 %v3001
        %3528 = vmatprep.subr.mxu0 0.0
        %3529 = vmatpush1.msra.mxu0 %v3137
        %3530 = vmatprep.subr.mxu0 0.0
        %3531 = vmatpush1.msra.mxu0 %v3273
        %3532 = vmatprep.subr.mxu0 0.0
        %3533 = vmatpush1.msra.mxu0 0.0
        %3534 = vmatprep.subr.mxu0 0.0
        %3535 = vmatpush1.msra.mxu0 0.0
        %3536 = vmatprep.subr.mxu0 0.0
        %3537 = vmatpush1.msra.mxu0 0.0
        %3538 = vmatprep.subr.mxu0 0.0
        %3539 = vmatpush1.msra.mxu0 0.0
        %3540 = vmatprep.subr.mxu0 0.0
        %3541 = vmatpush1.msra.mxu0 0.0
        %3542 = vmatprep.subr.mxu0 0.0
        %3543 = vmatpush1.msra.mxu0 0.0
        %3544 = vmatprep.subr.mxu0 0.0
        %3545 = vmatpush1.msra.mxu0 0.0
        %3546 = vmatprep.subr.mxu0 0.0
        %3547 = vmatpush1.msra.mxu0 0.0
        %3548 = vmatprep.subr.mxu0 0.0
        %3549 = vmatpush1.msra.mxu0 0.0
        %3550 = vmatprep.subr.mxu0 0.0
        %3551 = vmatpush1.msra.mxu0 0.0
        %3552 = vmatprep.subr.mxu0 0.0
        %3553 = vmatpush1.msra.mxu0 0.0
        %3554 = vmatprep.subr.mxu0 0.0
        %3555 = vmatpush1.msra.mxu0 0.0
        %3556 = vmatprep.subr.mxu0 0.0
        %3557 = vmatpush1.msra.mxu0 0.0
        %3558 = vmatprep.subr.mxu0 0.0
        %3559 = vmatpush1.msra.mxu0 0.0
        %3560 = vmatprep.subr.mxu0 0.0
        %3561 = vmatpush1.msra.mxu0 0.0
        %3562 = vmatprep.subr.mxu0 0.0
        %3563 = vmatpush1.msra.mxu0 0.0
        %3564 = vmatprep.subr.mxu0 0.0
        %3565 = vmatpush1.msra.mxu0 0.0
        %3566 = vmatprep.subr.mxu0 0.0
        %3567 = vmatpush1.msra.mxu0 0.0
        %3568 = vmatprep.subr.mxu0 0.0
        %3569 = vmatpush1.msra.mxu0 0.0
        %3570 = vmatprep.subr.mxu0 0.0
        %3571 = vmatpush1.msra.mxu0 0.0
        %3572 = vmatprep.subr.mxu0 0.0
        %3573 = vmatpush1.msra.mxu0 0.0
        %3574 = vmatprep.subr.mxu0 0.0
        %3575 = vmatpush1.msra.mxu0 0.0
        %3576 = vmatprep.subr.mxu0 0.0
        %3577 = vmatpush1.msra.mxu0 0.0
        %3578 = vmatprep.subr.mxu0 0.0
        %3579 = vmatpush1.msra.mxu0 0.0
        %3580 = vmatprep.subr.mxu0 0.0
        %3581 = vmatpush1.msra.mxu0 0.0
        %3582 = vmatprep.subr.mxu0 0.0
        %3583 = vmatpush1.msra.mxu0 0.0
        %3584 = vmatprep.subr.mxu0 0.0
        %3585 = vmatpush1.msra.mxu0 0.0
        %3586 = vmatprep.subr.mxu0 0.0
        %3587 = vmatpush1.msra.mxu0 0.0
        %3588 = vmatprep.mubr.f32.mxu0 0.0
        %3589 = vmatmul.mubr.f32.gmra.mrb[0].mxu0 %v3522
        %v3590 = vpop.f32.mrb[0].mxu0
        %v3591 = vadd.f32 0.0, %v3590
        %v3592 = vpop.f32.mrb[0].mxu0
        %3593 = vdwg.mxu0
        %3594 = vxpose.xlu0.b32.start [1/16] %v304, 128
        %3595 = vxpose.xlu0.b32.cont [2/16] %v305, 128
        %3596 = vxpose.xlu0.b32.cont [3/16] %v306, 128
        %3597 = vxpose.xlu0.b32.cont [4/16] %v307, 128
        %3598 = vxpose.xlu0.b32.cont [5/16] 0.0, 128
        %3599 = vxpose.xlu0.b32.cont [6/16] 0.0, 128
        %3600 = vxpose.xlu0.b32.cont [7/16] 0.0, 128
        %3601 = vxpose.xlu0.b32.cont [8/16] 0.0, 128
        %3602 = vxpose.xlu0.b32.cont [9/16] 0.0, 128
        %3603 = vxpose.xlu0.b32.cont [10/16] 0.0, 128
        %3604 = vxpose.xlu0.b32.cont [11/16] 0.0, 128
        %3605 = vxpose.xlu0.b32.cont [12/16] 0.0, 128
        %3606 = vxpose.xlu0.b32.cont [13/16] 0.0, 128
        %3607 = vxpose.xlu0.b32.cont [14/16] 0.0, 128
        %3608 = vxpose.xlu0.b32.cont [15/16] 0.0, 128
        %3609 = vxpose.xlu0.b32.end [16/16] 0.0, 128
        %v3610 = vpop.trf.xlu0
        %v3611 = vpop.trf.xlu0
        %v3612 = vpop.trf.xlu0
        %v3613 = vpop.trf.xlu0
        %v3614 = vpop.trf.xlu0
        %v3615 = vpop.trf.xlu0
        %v3616 = vpop.trf.xlu0
        %v3617 = vpop.trf.xlu0
        %v3618 = vpop.trf.xlu0
        %v3619 = vpop.trf.xlu0
        %v3620 = vpop.trf.xlu0
        %v3621 = vpop.trf.xlu0
        %v3622 = vpop.trf.xlu0
        %v3623 = vpop.trf.xlu0
        %v3624 = vpop.trf.xlu0
        %v3625 = vpop.trf.xlu0
        %v3627 = vsel %vm326, %v3610, 0
        %3629 = vmatprep.subr.mxu0 0.0
        %3630 = vmatpush1.msra.mxu0 %v2866
        %3631 = vmatprep.subr.mxu0 0.0
        %3632 = vmatpush1.msra.mxu0 %v3002
        %3633 = vmatprep.subr.mxu0 0.0
        %3634 = vmatpush1.msra.mxu0 %v3138
        %3635 = vmatprep.subr.mxu0 0.0
        %3636 = vmatpush1.msra.mxu0 %v3274
        %3637 = vmatprep.subr.mxu0 0.0
        %3638 = vmatpush1.msra.mxu0 0.0
        %3639 = vmatprep.subr.mxu0 0.0
        %3640 = vmatpush1.msra.mxu0 0.0
        %3641 = vmatprep.subr.mxu0 0.0
        %3642 = vmatpush1.msra.mxu0 0.0
        %3643 = vmatprep.subr.mxu0 0.0
        %3644 = vmatpush1.msra.mxu0 0.0
        %3645 = vmatprep.subr.mxu0 0.0
        %3646 = vmatpush1.msra.mxu0 0.0
        %3647 = vmatprep.subr.mxu0 0.0
        %3648 = vmatpush1.msra.mxu0 0.0
        %3649 = vmatprep.subr.mxu0 0.0
        %3650 = vmatpush1.msra.mxu0 0.0
        %3651 = vmatprep.subr.mxu0 0.0
        %3652 = vmatpush1.msra.mxu0 0.0
        %3653 = vmatprep.subr.mxu0 0.0
        %3654 = vmatpush1.msra.mxu0 0.0
        %3655 = vmatprep.subr.mxu0 0.0
        %3656 = vmatpush1.msra.mxu0 0.0
        %3657 = vmatprep.subr.mxu0 0.0
        %3658 = vmatpush1.msra.mxu0 0.0
        %3659 = vmatprep.subr.mxu0 0.0
        %3660 = vmatpush1.msra.mxu0 0.0
        %3661 = vmatprep.subr.mxu0 0.0
        %3662 = vmatpush1.msra.mxu0 0.0
        %3663 = vmatprep.subr.mxu0 0.0
        %3664 = vmatpush1.msra.mxu0 0.0
        %3665 = vmatprep.subr.mxu0 0.0
        %3666 = vmatpush1.msra.mxu0 0.0
        %3667 = vmatprep.subr.mxu0 0.0
        %3668 = vmatpush1.msra.mxu0 0.0
        %3669 = vmatprep.subr.mxu0 0.0
        %3670 = vmatpush1.msra.mxu0 0.0
        %3671 = vmatprep.subr.mxu0 0.0
        %3672 = vmatpush1.msra.mxu0 0.0
        %3673 = vmatprep.subr.mxu0 0.0
        %3674 = vmatpush1.msra.mxu0 0.0
        %3675 = vmatprep.subr.mxu0 0.0
        %3676 = vmatpush1.msra.mxu0 0.0
        %3677 = vmatprep.subr.mxu0 0.0
        %3678 = vmatpush1.msra.mxu0 0.0
        %3679 = vmatprep.subr.mxu0 0.0
        %3680 = vmatpush1.msra.mxu0 0.0
        %3681 = vmatprep.subr.mxu0 0.0
        %3682 = vmatpush1.msra.mxu0 0.0
        %3683 = vmatprep.subr.mxu0 0.0
        %3684 = vmatpush1.msra.mxu0 0.0
        %3685 = vmatprep.subr.mxu0 0.0
        %3686 = vmatpush1.msra.mxu0 0.0
        %3687 = vmatprep.subr.mxu0 0.0
        %3688 = vmatpush1.msra.mxu0 0.0
        %3689 = vmatprep.subr.mxu0 0.0
        %3690 = vmatpush1.msra.mxu0 0.0
        %3691 = vmatprep.subr.mxu0 0.0
        %3692 = vmatpush1.msra.mxu0 0.0
        %3693 = vmatprep.mubr.f32.mxu0 0.0
        %3694 = vmatmul.mubr.f32.gmra.mrb[0].mxu0 %v3627
        %v3695 = vpop.f32.mrb[0].mxu0
        %v3696 = vadd.f32 0.0, %v3695
        %v3697 = vpop.f32.mrb[0].mxu0
        %3698 = vdwg.mxu0
        %3699 = vxpose.xlu0.b32.start [1/16] %v308, 128
        %3700 = vxpose.xlu0.b32.cont [2/16] %v309, 128
        %3701 = vxpose.xlu0.b32.cont [3/16] %v310, 128
        %3702 = vxpose.xlu0.b32.cont [4/16] %v311, 128
        %3703 = vxpose.xlu0.b32.cont [5/16] 0.0, 128
        %3704 = vxpose.xlu0.b32.cont [6/16] 0.0, 128
        %3705 = vxpose.xlu0.b32.cont [7/16] 0.0, 128
        %3706 = vxpose.xlu0.b32.cont [8/16] 0.0, 128
        %3707 = vxpose.xlu0.b32.cont [9/16] 0.0, 128
        %3708 = vxpose.xlu0.b32.cont [10/16] 0.0, 128
        %3709 = vxpose.xlu0.b32.cont [11/16] 0.0, 128
        %3710 = vxpose.xlu0.b32.cont [12/16] 0.0, 128
        %3711 = vxpose.xlu0.b32.cont [13/16] 0.0, 128
        %3712 = vxpose.xlu0.b32.cont [14/16] 0.0, 128
        %3713 = vxpose.xlu0.b32.cont [15/16] 0.0, 128
        %3714 = vxpose.xlu0.b32.end [16/16] 0.0, 128
        %v3715 = vpop.trf.xlu0
        %v3716 = vpop.trf.xlu0
        %v3717 = vpop.trf.xlu0
        %v3718 = vpop.trf.xlu0
        %v3719 = vpop.trf.xlu0
        %v3720 = vpop.trf.xlu0
        %v3721 = vpop.trf.xlu0
        %v3722 = vpop.trf.xlu0
        %v3723 = vpop.trf.xlu0
        %v3724 = vpop.trf.xlu0
        %v3725 = vpop.trf.xlu0
        %v3726 = vpop.trf.xlu0
        %v3727 = vpop.trf.xlu0
        %v3728 = vpop.trf.xlu0
        %v3729 = vpop.trf.xlu0
        %v3730 = vpop.trf.xlu0
        %v3732 = vsel %vm326, %v3715, 0
        %3734 = vmatprep.subr.mxu0 0.0
        %3735 = vmatpush1.msra.mxu0 %v2867
        %3736 = vmatprep.subr.mxu0 0.0
        %3737 = vmatpush1.msra.mxu0 %v3003
        %3738 = vmatprep.subr.mxu0 0.0
        %3739 = vmatpush1.msra.mxu0 %v3139
        %3740 = vmatprep.subr.mxu0 0.0
        %3741 = vmatpush1.msra.mxu0 %v3275
        %3742 = vmatprep.subr.mxu0 0.0
        %3743 = vmatpush1.msra.mxu0 0.0
        %3744 = vmatprep.subr.mxu0 0.0
        %3745 = vmatpush1.msra.mxu0 0.0
        %3746 = vmatprep.subr.mxu0 0.0
        %3747 = vmatpush1.msra.mxu0 0.0
        %3748 = vmatprep.subr.mxu0 0.0
        %3749 = vmatpush1.msra.mxu0 0.0
        %3750 = vmatprep.subr.mxu0 0.0
        %3751 = vmatpush1.msra.mxu0 0.0
        %3752 = vmatprep.subr.mxu0 0.0
        %3753 = vmatpush1.msra.mxu0 0.0
        %3754 = vmatprep.subr.mxu0 0.0
        %3755 = vmatpush1.msra.mxu0 0.0
        %3756 = vmatprep.subr.mxu0 0.0
        %3757 = vmatpush1.msra.mxu0 0.0
        %3758 = vmatprep.subr.mxu0 0.0
        %3759 = vmatpush1.msra.mxu0 0.0
        %3760 = vmatprep.subr.mxu0 0.0
        %3761 = vmatpush1.msra.mxu0 0.0
        %3762 = vmatprep.subr.mxu0 0.0
        %3763 = vmatpush1.msra.mxu0 0.0
        %3764 = vmatprep.subr.mxu0 0.0
        %3765 = vmatpush1.msra.mxu0 0.0
        %3766 = vmatprep.subr.mxu0 0.0
        %3767 = vmatpush1.msra.mxu0 0.0
        %3768 = vmatprep.subr.mxu0 0.0
        %3769 = vmatpush1.msra.mxu0 0.0
        %3770 = vmatprep.subr.mxu0 0.0
        %3771 = vmatpush1.msra.mxu0 0.0
        %3772 = vmatprep.subr.mxu0 0.0
        %3773 = vmatpush1.msra.mxu0 0.0
        %3774 = vmatprep.subr.mxu0 0.0
        %3775 = vmatpush1.msra.mxu0 0.0
        %3776 = vmatprep.subr.mxu0 0.0
        %3777 = vmatpush1.msra.mxu0 0.0
        %3778 = vmatprep.subr.mxu0 0.0
        %3779 = vmatpush1.msra.mxu0 0.0
        %3780 = vmatprep.subr.mxu0 0.0
        %3781 = vmatpush1.msra.mxu0 0.0
        %3782 = vmatprep.subr.mxu0 0.0
        %3783 = vmatpush1.msra.mxu0 0.0
        %3784 = vmatprep.subr.mxu0 0.0
        %3785 = vmatpush1.msra.mxu0 0.0
        %3786 = vmatprep.subr.mxu0 0.0
        %3787 = vmatpush1.msra.mxu0 0.0
        %3788 = vmatprep.subr.mxu0 0.0
        %3789 = vmatpush1.msra.mxu0 0.0
        %3790 = vmatprep.subr.mxu0 0.0
        %3791 = vmatpush1.msra.mxu0 0.0
        %3792 = vmatprep.subr.mxu0 0.0
        %3793 = vmatpush1.msra.mxu0 0.0
        %3794 = vmatprep.subr.mxu0 0.0
        %3795 = vmatpush1.msra.mxu0 0.0
        %3796 = vmatprep.subr.mxu0 0.0
        %3797 = vmatpush1.msra.mxu0 0.0
        %3798 = vmatprep.mubr.f32.mxu0 0.0
        %3799 = vmatmul.mubr.f32.gmra.mrb[0].mxu0 %v3732
        %v3800 = vpop.f32.mrb[0].mxu0
        %v3801 = vadd.f32 0.0, %v3800
        %v3802 = vpop.f32.mrb[0].mxu0
        %3803 = vdwg.mxu0
        %3804 = vxpose.xlu0.b32.start [1/16] %v312, 128
        %3805 = vxpose.xlu0.b32.cont [2/16] %v313, 128
        %3806 = vxpose.xlu0.b32.cont [3/16] %v314, 128
        %3807 = vxpose.xlu0.b32.cont [4/16] %v315, 128
        %3808 = vxpose.xlu0.b32.cont [5/16] 0.0, 128
        %3809 = vxpose.xlu0.b32.cont [6/16] 0.0, 128
        %3810 = vxpose.xlu0.b32.cont [7/16] 0.0, 128
        %3811 = vxpose.xlu0.b32.cont [8/16] 0.0, 128
        %3812 = vxpose.xlu0.b32.cont [9/16] 0.0, 128
        %3813 = vxpose.xlu0.b32.cont [10/16] 0.0, 128
        %3814 = vxpose.xlu0.b32.cont [11/16] 0.0, 128
        %3815 = vxpose.xlu0.b32.cont [12/16] 0.0, 128
        %3816 = vxpose.xlu0.b32.cont [13/16] 0.0, 128
        %3817 = vxpose.xlu0.b32.cont [14/16] 0.0, 128
        %3818 = vxpose.xlu0.b32.cont [15/16] 0.0, 128
        %3819 = vxpose.xlu0.b32.end [16/16] 0.0, 128
        %v3820 = vpop.trf.xlu0
        %v3821 = vpop.trf.xlu0
        %v3822 = vpop.trf.xlu0
        %v3823 = vpop.trf.xlu0
        %v3824 = vpop.trf.xlu0
        %v3825 = vpop.trf.xlu0
        %v3826 = vpop.trf.xlu0
        %v3827 = vpop.trf.xlu0
        %v3828 = vpop.trf.xlu0
        %v3829 = vpop.trf.xlu0
        %v3830 = vpop.trf.xlu0
        %v3831 = vpop.trf.xlu0
        %v3832 = vpop.trf.xlu0
        %v3833 = vpop.trf.xlu0
        %v3834 = vpop.trf.xlu0
        %v3835 = vpop.trf.xlu0
        %v3837 = vsel %vm326, %v3820, 0
        %3839 = vmatprep.subr.mxu0 0.0
        %3840 = vmatpush1.msra.mxu0 %v2868
        %3841 = vmatprep.subr.mxu0 0.0
        %3842 = vmatpush1.msra.mxu0 %v3004
        %3843 = vmatprep.subr.mxu0 0.0
        %3844 = vmatpush1.msra.mxu0 %v3140
        %3845 = vmatprep.subr.mxu0 0.0
        %3846 = vmatpush1.msra.mxu0 %v3276
        %3847 = vmatprep.subr.mxu0 0.0
        %3848 = vmatpush1.msra.mxu0 0.0
        %3849 = vmatprep.subr.mxu0 0.0
        %3850 = vmatpush1.msra.mxu0 0.0
        %3851 = vmatprep.subr.mxu0 0.0
        %3852 = vmatpush1.msra.mxu0 0.0
        %3853 = vmatprep.subr.mxu0 0.0
        %3854 = vmatpush1.msra.mxu0 0.0
        %3855 = vmatprep.subr.mxu0 0.0
        %3856 = vmatpush1.msra.mxu0 0.0
        %3857 = vmatprep.subr.mxu0 0.0
        %3858 = vmatpush1.msra.mxu0 0.0
        %3859 = vmatprep.subr.mxu0 0.0
        %3860 = vmatpush1.msra.mxu0 0.0
        %3861 = vmatprep.subr.mxu0 0.0
        %3862 = vmatpush1.msra.mxu0 0.0
        %3863 = vmatprep.subr.mxu0 0.0
        %3864 = vmatpush1.msra.mxu0 0.0
        %3865 = vmatprep.subr.mxu0 0.0
        %3866 = vmatpush1.msra.mxu0 0.0
        %3867 = vmatprep.subr.mxu0 0.0
        %3868 = vmatpush1.msra.mxu0 0.0
        %3869 = vmatprep.subr.mxu0 0.0
        %3870 = vmatpush1.msra.mxu0 0.0
        %3871 = vmatprep.subr.mxu0 0.0
        %3872 = vmatpush1.msra.mxu0 0.0
        %3873 = vmatprep.subr.mxu0 0.0
        %3874 = vmatpush1.msra.mxu0 0.0
        %3875 = vmatprep.subr.mxu0 0.0
        %3876 = vmatpush1.msra.mxu0 0.0
        %3877 = vmatprep.subr.mxu0 0.0
        %3878 = vmatpush1.msra.mxu0 0.0
        %3879 = vmatprep.subr.mxu0 0.0
        %3880 = vmatpush1.msra.mxu0 0.0
        %3881 = vmatprep.subr.mxu0 0.0
        %3882 = vmatpush1.msra.mxu0 0.0
        %3883 = vmatprep.subr.mxu0 0.0
        %3884 = vmatpush1.msra.mxu0 0.0
        %3885 = vmatprep.subr.mxu0 0.0
        %3886 = vmatpush1.msra.mxu0 0.0
        %3887 = vmatprep.subr.mxu0 0.0
        %3888 = vmatpush1.msra.mxu0 0.0
        %3889 = vmatprep.subr.mxu0 0.0
        %3890 = vmatpush1.msra.mxu0 0.0
        %3891 = vmatprep.subr.mxu0 0.0
        %3892 = vmatpush1.msra.mxu0 0.0
        %3893 = vmatprep.subr.mxu0 0.0
        %3894 = vmatpush1.msra.mxu0 0.0
        %3895 = vmatprep.subr.mxu0 0.0
        %3896 = vmatpush1.msra.mxu0 0.0
        %3897 = vmatprep.subr.mxu0 0.0
        %3898 = vmatpush1.msra.mxu0 0.0
        %3899 = vmatprep.subr.mxu0 0.0
        %3900 = vmatpush1.msra.mxu0 0.0
        %3901 = vmatprep.subr.mxu0 0.0
        %3902 = vmatpush1.msra.mxu0 0.0
        %3903 = vmatprep.mubr.f32.mxu0 0.0
        %3904 = vmatmul.mubr.f32.gmra.mrb[0].mxu0 %v3837
        %v3905 = vpop.f32.mrb[0].mxu0
        %v3906 = vadd.f32 0.0, %v3905
        %v3907 = vpop.f32.mrb[0].mxu0
        %3908 = vdwg.mxu0
        %3909 = vxpose.xlu0.b32.start [1/16] %v316, 128
        %3910 = vxpose.xlu0.b32.cont [2/16] %v317, 128
        %3911 = vxpose.xlu0.b32.cont [3/16] %v318, 128
        %3912 = vxpose.xlu0.b32.cont [4/16] %v319, 128
        %3913 = vxpose.xlu0.b32.cont [5/16] 0.0, 128
        %3914 = vxpose.xlu0.b32.cont [6/16] 0.0, 128
        %3915 = vxpose.xlu0.b32.cont [7/16] 0.0, 128
        %3916 = vxpose.xlu0.b32.cont [8/16] 0.0, 128
        %3917 = vxpose.xlu0.b32.cont [9/16] 0.0, 128
        %3918 = vxpose.xlu0.b32.cont [10/16] 0.0, 128
        %3919 = vxpose.xlu0.b32.cont [11/16] 0.0, 128
        %3920 = vxpose.xlu0.b32.cont [12/16] 0.0, 128
        %3921 = vxpose.xlu0.b32.cont [13/16] 0.0, 128
        %3922 = vxpose.xlu0.b32.cont [14/16] 0.0, 128
        %3923 = vxpose.xlu0.b32.cont [15/16] 0.0, 128
        %3924 = vxpose.xlu0.b32.end [16/16] 0.0, 128
        %v3925 = vpop.trf.xlu0
        %v3926 = vpop.trf.xlu0
        %v3927 = vpop.trf.xlu0
        %v3928 = vpop.trf.xlu0
        %v3929 = vpop.trf.xlu0
        %v3930 = vpop.trf.xlu0
        %v3931 = vpop.trf.xlu0
        %v3932 = vpop.trf.xlu0
        %v3933 = vpop.trf.xlu0
        %v3934 = vpop.trf.xlu0
        %v3935 = vpop.trf.xlu0
        %v3936 = vpop.trf.xlu0
        %v3937 = vpop.trf.xlu0
        %v3938 = vpop.trf.xlu0
        %v3939 = vpop.trf.xlu0
        %v3940 = vpop.trf.xlu0
        %v3942 = vsel %vm326, %v3925, 0
        %3944 = vmatprep.subr.mxu0 0.0
        %3945 = vmatpush1.msra.mxu0 %v2869
        %3946 = vmatprep.subr.mxu0 0.0
        %3947 = vmatpush1.msra.mxu0 %v3005
        %3948 = vmatprep.subr.mxu0 0.0
        %3949 = vmatpush1.msra.mxu0 %v3141
        %3950 = vmatprep.subr.mxu0 0.0
        %3951 = vmatpush1.msra.mxu0 %v3277
        %3952 = vmatprep.subr.mxu0 0.0
        %3953 = vmatpush1.msra.mxu0 0.0
        %3954 = vmatprep.subr.mxu0 0.0
        %3955 = vmatpush1.msra.mxu0 0.0
        %3956 = vmatprep.subr.mxu0 0.0
        %3957 = vmatpush1.msra.mxu0 0.0
        %3958 = vmatprep.subr.mxu0 0.0
        %3959 = vmatpush1.msra.mxu0 0.0
        %3960 = vmatprep.subr.mxu0 0.0
        %3961 = vmatpush1.msra.mxu0 0.0
        %3962 = vmatprep.subr.mxu0 0.0
        %3963 = vmatpush1.msra.mxu0 0.0
        %3964 = vmatprep.subr.mxu0 0.0
        %3965 = vmatpush1.msra.mxu0 0.0
        %3966 = vmatprep.subr.mxu0 0.0
        %3967 = vmatpush1.msra.mxu0 0.0
        %3968 = vmatprep.subr.mxu0 0.0
        %3969 = vmatpush1.msra.mxu0 0.0
        %3970 = vmatprep.subr.mxu0 0.0
        %3971 = vmatpush1.msra.mxu0 0.0
        %3972 = vmatprep.subr.mxu0 0.0
        %3973 = vmatpush1.msra.mxu0 0.0
        %3974 = vmatprep.subr.mxu0 0.0
        %3975 = vmatpush1.msra.mxu0 0.0
        %3976 = vmatprep.subr.mxu0 0.0
        %3977 = vmatpush1.msra.mxu0 0.0
        %3978 = vmatprep.subr.mxu0 0.0
        %3979 = vmatpush1.msra.mxu0 0.0
        %3980 = vmatprep.subr.mxu0 0.0
        %3981 = vmatpush1.msra.mxu0 0.0
        %3982 = vmatprep.subr.mxu0 0.0
        %3983 = vmatpush1.msra.mxu0 0.0
        %3984 = vmatprep.subr.mxu0 0.0
        %3985 = vmatpush1.msra.mxu0 0.0
        %3986 = vmatprep.subr.mxu0 0.0
        %3987 = vmatpush1.msra.mxu0 0.0
        %3988 = vmatprep.subr.mxu0 0.0
        %3989 = vmatpush1.msra.mxu0 0.0
        %3990 = vmatprep.subr.mxu0 0.0
        %3991 = vmatpush1.msra.mxu0 0.0
        %3992 = vmatprep.subr.mxu0 0.0
        %3993 = vmatpush1.msra.mxu0 0.0
        %3994 = vmatprep.subr.mxu0 0.0
        %3995 = vmatpush1.msra.mxu0 0.0
        %3996 = vmatprep.subr.mxu0 0.0
        %3997 = vmatpush1.msra.mxu0 0.0
        %3998 = vmatprep.subr.mxu0 0.0
        %3999 = vmatpush1.msra.mxu0 0.0
        %4000 = vmatprep.subr.mxu0 0.0
        %4001 = vmatpush1.msra.mxu0 0.0
        %4002 = vmatprep.subr.mxu0 0.0
        %4003 = vmatpush1.msra.mxu0 0.0
        %4004 = vmatprep.subr.mxu0 0.0
        %4005 = vmatpush1.msra.mxu0 0.0
        %4006 = vmatprep.subr.mxu0 0.0
        %4007 = vmatpush1.msra.mxu0 0.0
        %4008 = vmatprep.mubr.f32.mxu0 0.0
        %4009 = vmatmul.mubr.f32.gmra.mrb[0].mxu0 %v3942
        %v4010 = vpop.f32.mrb[0].mxu0
        %v4011 = vadd.f32 0.0, %v4010
        %v4012 = vpop.f32.mrb[0].mxu0
        %4013 = vdwg.mxu0
        %4014 = vxpose.xlu0.b32.start [1/16] %v320, 128
        %4015 = vxpose.xlu0.b32.cont [2/16] %v321, 128
        %4016 = vxpose.xlu0.b32.cont [3/16] %v322, 128
        %4017 = vxpose.xlu0.b32.cont [4/16] %v323, 128
        %4018 = vxpose.xlu0.b32.cont [5/16] 0.0, 128
        %4019 = vxpose.xlu0.b32.cont [6/16] 0.0, 128
        %4020 = vxpose.xlu0.b32.cont [7/16] 0.0, 128
        %4021 = vxpose.xlu0.b32.cont [8/16] 0.0, 128
        %4022 = vxpose.xlu0.b32.cont [9/16] 0.0, 128
        %4023 = vxpose.xlu0.b32.cont [10/16] 0.0, 128
        %4024 = vxpose.xlu0.b32.cont [11/16] 0.0, 128
        %4025 = vxpose.xlu0.b32.cont [12/16] 0.0, 128
        %4026 = vxpose.xlu0.b32.cont [13/16] 0.0, 128
        %4027 = vxpose.xlu0.b32.cont [14/16] 0.0, 128
        %4028 = vxpose.xlu0.b32.cont [15/16] 0.0, 128
        %4029 = vxpose.xlu0.b32.end [16/16] 0.0, 128
        %v4030 = vpop.trf.xlu0
        %v4031 = vpop.trf.xlu0
        %v4032 = vpop.trf.xlu0
        %v4033 = vpop.trf.xlu0
        %v4034 = vpop.trf.xlu0
        %v4035 = vpop.trf.xlu0
        %v4036 = vpop.trf.xlu0
        %v4037 = vpop.trf.xlu0
        %v4038 = vpop.trf.xlu0
        %v4039 = vpop.trf.xlu0
        %v4040 = vpop.trf.xlu0
        %v4041 = vpop.trf.xlu0
        %v4042 = vpop.trf.xlu0
        %v4043 = vpop.trf.xlu0
        %v4044 = vpop.trf.xlu0
        %v4045 = vpop.trf.xlu0
        %v4047 = vsel %vm326, %v4030, 0
        %4049 = vmatprep.subr.mxu0 0.0
        %4050 = vmatpush1.msra.mxu0 %v2870
        %4051 = vmatprep.subr.mxu0 0.0
        %4052 = vmatpush1.msra.mxu0 %v3006
        %4053 = vmatprep.subr.mxu0 0.0
        %4054 = vmatpush1.msra.mxu0 %v3142
        %4055 = vmatprep.subr.mxu0 0.0
        %4056 = vmatpush1.msra.mxu0 %v3278
        %4057 = vmatprep.subr.mxu0 0.0
        %4058 = vmatpush1.msra.mxu0 0.0
        %4059 = vmatprep.subr.mxu0 0.0
        %4060 = vmatpush1.msra.mxu0 0.0
        %4061 = vmatprep.subr.mxu0 0.0
        %4062 = vmatpush1.msra.mxu0 0.0
        %4063 = vmatprep.subr.mxu0 0.0
        %4064 = vmatpush1.msra.mxu0 0.0
        %4065 = vmatprep.subr.mxu0 0.0
        %4066 = vmatpush1.msra.mxu0 0.0
        %4067 = vmatprep.subr.mxu0 0.0
        %4068 = vmatpush1.msra.mxu0 0.0
        %4069 = vmatprep.subr.mxu0 0.0
        %4070 = vmatpush1.msra.mxu0 0.0
        %4071 = vmatprep.subr.mxu0 0.0
        %4072 = vmatpush1.msra.mxu0 0.0
        %4073 = vmatprep.subr.mxu0 0.0
        %4074 = vmatpush1.msra.mxu0 0.0
        %4075 = vmatprep.subr.mxu0 0.0
        %4076 = vmatpush1.msra.mxu0 0.0
        %4077 = vmatprep.subr.mxu0 0.0
        %4078 = vmatpush1.msra.mxu0 0.0
        %4079 = vmatprep.subr.mxu0 0.0
        %4080 = vmatpush1.msra.mxu0 0.0
        %4081 = vmatprep.subr.mxu0 0.0
        %4082 = vmatpush1.msra.mxu0 0.0
        %4083 = vmatprep.subr.mxu0 0.0
        %4084 = vmatpush1.msra.mxu0 0.0
        %4085 = vmatprep.subr.mxu0 0.0
        %4086 = vmatpush1.msra.mxu0 0.0
        %4087 = vmatprep.subr.mxu0 0.0
        %4088 = vmatpush1.msra.mxu0 0.0
        %4089 = vmatprep.subr.mxu0 0.0
        %4090 = vmatpush1.msra.mxu0 0.0
        %4091 = vmatprep.subr.mxu0 0.0
        %4092 = vmatpush1.msra.mxu0 0.0
        %4093 = vmatprep.subr.mxu0 0.0
        %4094 = vmatpush1.msra.mxu0 0.0
        %4095 = vmatprep.subr.mxu0 0.0
        %4096 = vmatpush1.msra.mxu0 0.0
        %4097 = vmatprep.subr.mxu0 0.0
        %4098 = vmatpush1.msra.mxu0 0.0
        %4099 = vmatprep.subr.mxu0 0.0
        %4100 = vmatpush1.msra.mxu0 0.0
        %4101 = vmatprep.subr.mxu0 0.0
        %4102 = vmatpush1.msra.mxu0 0.0
        %4103 = vmatprep.subr.mxu0 0.0
        %4104 = vmatpush1.msra.mxu0 0.0
        %4105 = vmatprep.subr.mxu0 0.0
        %4106 = vmatpush1.msra.mxu0 0.0
        %4107 = vmatprep.subr.mxu0 0.0
        %4108 = vmatpush1.msra.mxu0 0.0
        %4109 = vmatprep.subr.mxu0 0.0
        %4110 = vmatpush1.msra.mxu0 0.0
        %4111 = vmatprep.subr.mxu0 0.0
        %4112 = vmatpush1.msra.mxu0 0.0
        %4113 = vmatprep.mubr.f32.mxu0 0.0
        %4114 = vmatmul.mubr.f32.gmra.mrb[0].mxu0 %v4047
        %v4115 = vpop.f32.mrb[0].mxu0
        %v4116 = vadd.f32 0.0, %v4115
        %v4117 = vpop.f32.mrb[0].mxu0
        %4118 = vdwg.mxu0
        %4119 = vxpose.xlu0.b32.start [1/16] %v3381, 128
        %4120 = vxpose.xlu0.b32.cont [2/16] 0.0, 128
        %4121 = vxpose.xlu0.b32.cont [3/16] 0.0, 128
        %4122 = vxpose.xlu0.b32.cont [4/16] 0.0, 128
        %4123 = vxpose.xlu0.b32.cont [5/16] 0.0, 128
        %4124 = vxpose.xlu0.b32.cont [6/16] 0.0, 128
        %4125 = vxpose.xlu0.b32.cont [7/16] 0.0, 128
        %4126 = vxpose.xlu0.b32.cont [8/16] 0.0, 128
        %4127 = vxpose.xlu0.b32.cont [9/16] 0.0, 128
        %4128 = vxpose.xlu0.b32.cont [10/16] 0.0, 128
        %4129 = vxpose.xlu0.b32.cont [11/16] 0.0, 128
        %4130 = vxpose.xlu0.b32.cont [12/16] 0.0, 128
        %4131 = vxpose.xlu0.b32.cont [13/16] 0.0, 128
        %4132 = vxpose.xlu0.b32.cont [14/16] 0.0, 128
        %4133 = vxpose.xlu0.b32.cont [15/16] 0.0, 128
        %4134 = vxpose.xlu0.b32.end [16/16] 0.0, 128
        %v4135 = vpop.trf.xlu0
        %v4136 = vpop.trf.xlu0
        %v4137 = vpop.trf.xlu0
        %v4138 = vpop.trf.xlu0
        %v4139 = vpop.trf.xlu0
        %v4140 = vpop.trf.xlu0
        %v4141 = vpop.trf.xlu0
        %v4142 = vpop.trf.xlu0
        %v4143 = vpop.trf.xlu0
        %v4144 = vpop.trf.xlu0
        %v4145 = vpop.trf.xlu0
        %v4146 = vpop.trf.xlu0
        %v4147 = vpop.trf.xlu0
        %v4148 = vpop.trf.xlu0
        %v4149 = vpop.trf.xlu0
        %v4150 = vpop.trf.xlu0
        %4151 = vxpose.xlu0.b32.start [1/16] %v3486, 128
        %4152 = vxpose.xlu0.b32.cont [2/16] 0.0, 128
        %4153 = vxpose.xlu0.b32.cont [3/16] 0.0, 128
        %4154 = vxpose.xlu0.b32.cont [4/16] 0.0, 128
        %4155 = vxpose.xlu0.b32.cont [5/16] 0.0, 128
        %4156 = vxpose.xlu0.b32.cont [6/16] 0.0, 128
        %4157 = vxpose.xlu0.b32.cont [7/16] 0.0, 128
        %4158 = vxpose.xlu0.b32.cont [8/16] 0.0, 128
        %4159 = vxpose.xlu0.b32.cont [9/16] 0.0, 128
        %4160 = vxpose.xlu0.b32.cont [10/16] 0.0, 128
        %4161 = vxpose.xlu0.b32.cont [11/16] 0.0, 128
        %4162 = vxpose.xlu0.b32.cont [12/16] 0.0, 128
        %4163 = vxpose.xlu0.b32.cont [13/16] 0.0, 128
        %4164 = vxpose.xlu0.b32.cont [14/16] 0.0, 128
        %4165 = vxpose.xlu0.b32.cont [15/16] 0.0, 128
        %4166 = vxpose.xlu0.b32.end [16/16] 0.0, 128
        %v4167 = vpop.trf.xlu0
        %v4168 = vpop.trf.xlu0
        %v4169 = vpop.trf.xlu0
        %v4170 = vpop.trf.xlu0
        %v4171 = vpop.trf.xlu0
        %v4172 = vpop.trf.xlu0
        %v4173 = vpop.trf.xlu0
        %v4174 = vpop.trf.xlu0
        %v4175 = vpop.trf.xlu0
        %v4176 = vpop.trf.xlu0
        %v4177 = vpop.trf.xlu0
        %v4178 = vpop.trf.xlu0
        %v4179 = vpop.trf.xlu0
        %v4180 = vpop.trf.xlu0
        %v4181 = vpop.trf.xlu0
        %v4182 = vpop.trf.xlu0
        %4183 = vxpose.xlu0.b32.start [1/16] %v3591, 128
        %4184 = vxpose.xlu0.b32.cont [2/16] 0.0, 128
        %4185 = vxpose.xlu0.b32.cont [3/16] 0.0, 128
        %4186 = vxpose.xlu0.b32.cont [4/16] 0.0, 128
        %4187 = vxpose.xlu0.b32.cont [5/16] 0.0, 128
        %4188 = vxpose.xlu0.b32.cont [6/16] 0.0, 128
        %4189 = vxpose.xlu0.b32.cont [7/16] 0.0, 128
        %4190 = vxpose.xlu0.b32.cont [8/16] 0.0, 128
        %4191 = vxpose.xlu0.b32.cont [9/16] 0.0, 128
        %4192 = vxpose.xlu0.b32.cont [10/16] 0.0, 128
        %4193 = vxpose.xlu0.b32.cont [11/16] 0.0, 128
        %4194 = vxpose.xlu0.b32.cont [12/16] 0.0, 128
        %4195 = vxpose.xlu0.b32.cont [13/16] 0.0, 128
        %4196 = vxpose.xlu0.b32.cont [14/16] 0.0, 128
        %4197 = vxpose.xlu0.b32.cont [15/16] 0.0, 128
        %4198 = vxpose.xlu0.b32.end [16/16] 0.0, 128
        %v4199 = vpop.trf.xlu0
        %v4200 = vpop.trf.xlu0
        %v4201 = vpop.trf.xlu0
        %v4202 = vpop.trf.xlu0
        %v4203 = vpop.trf.xlu0
        %v4204 = vpop.trf.xlu0
        %v4205 = vpop.trf.xlu0
        %v4206 = vpop.trf.xlu0
        %v4207 = vpop.trf.xlu0
        %v4208 = vpop.trf.xlu0
        %v4209 = vpop.trf.xlu0
        %v4210 = vpop.trf.xlu0
        %v4211 = vpop.trf.xlu0
        %v4212 = vpop.trf.xlu0
        %v4213 = vpop.trf.xlu0
        %v4214 = vpop.trf.xlu0
        %4215 = vxpose.xlu0.b32.start [1/16] %v3696, 128
        %4216 = vxpose.xlu0.b32.cont [2/16] 0.0, 128
        %4217 = vxpose.xlu0.b32.cont [3/16] 0.0, 128
        %4218 = vxpose.xlu0.b32.cont [4/16] 0.0, 128
        %4219 = vxpose.xlu0.b32.cont [5/16] 0.0, 128
        %4220 = vxpose.xlu0.b32.cont [6/16] 0.0, 128
        %4221 = vxpose.xlu0.b32.cont [7/16] 0.0, 128
        %4222 = vxpose.xlu0.b32.cont [8/16] 0.0, 128
        %4223 = vxpose.xlu0.b32.cont [9/16] 0.0, 128
        %4224 = vxpose.xlu0.b32.cont [10/16] 0.0, 128
        %4225 = vxpose.xlu0.b32.cont [11/16] 0.0, 128
        %4226 = vxpose.xlu0.b32.cont [12/16] 0.0, 128
        %4227 = vxpose.xlu0.b32.cont [13/16] 0.0, 128
        %4228 = vxpose.xlu0.b32.cont [14/16] 0.0, 128
        %4229 = vxpose.xlu0.b32.cont [15/16] 0.0, 128
        %4230 = vxpose.xlu0.b32.end [16/16] 0.0, 128
        %v4231 = vpop.trf.xlu0
        %v4232 = vpop.trf.xlu0
        %v4233 = vpop.trf.xlu0
        %v4234 = vpop.trf.xlu0
        %v4235 = vpop.trf.xlu0
        %v4236 = vpop.trf.xlu0
        %v4237 = vpop.trf.xlu0
        %v4238 = vpop.trf.xlu0
        %v4239 = vpop.trf.xlu0
        %v4240 = vpop.trf.xlu0
        %v4241 = vpop.trf.xlu0
        %v4242 = vpop.trf.xlu0
        %v4243 = vpop.trf.xlu0
        %v4244 = vpop.trf.xlu0
        %v4245 = vpop.trf.xlu0
        %v4246 = vpop.trf.xlu0
        %4247 = vxpose.xlu0.b32.start [1/16] %v3801, 128
        %4248 = vxpose.xlu0.b32.cont [2/16] 0.0, 128
        %4249 = vxpose.xlu0.b32.cont [3/16] 0.0, 128
        %4250 = vxpose.xlu0.b32.cont [4/16] 0.0, 128
        %4251 = vxpose.xlu0.b32.cont [5/16] 0.0, 128
        %4252 = vxpose.xlu0.b32.cont [6/16] 0.0, 128
        %4253 = vxpose.xlu0.b32.cont [7/16] 0.0, 128
        %4254 = vxpose.xlu0.b32.cont [8/16] 0.0, 128
        %4255 = vxpose.xlu0.b32.cont [9/16] 0.0, 128
        %4256 = vxpose.xlu0.b32.cont [10/16] 0.0, 128
        %4257 = vxpose.xlu0.b32.cont [11/16] 0.0, 128
        %4258 = vxpose.xlu0.b32.cont [12/16] 0.0, 128
        %4259 = vxpose.xlu0.b32.cont [13/16] 0.0, 128
        %4260 = vxpose.xlu0.b32.cont [14/16] 0.0, 128
        %4261 = vxpose.xlu0.b32.cont [15/16] 0.0, 128
        %4262 = vxpose.xlu0.b32.end [16/16] 0.0, 128
        %v4263 = vpop.trf.xlu0
        %v4264 = vpop.trf.xlu0
        %v4265 = vpop.trf.xlu0
        %v4266 = vpop.trf.xlu0
        %v4267 = vpop.trf.xlu0
        %v4268 = vpop.trf.xlu0
        %v4269 = vpop.trf.xlu0
        %v4270 = vpop.trf.xlu0
        %v4271 = vpop.trf.xlu0
        %v4272 = vpop.trf.xlu0
        %v4273 = vpop.trf.xlu0
        %v4274 = vpop.trf.xlu0
        %v4275 = vpop.trf.xlu0
        %v4276 = vpop.trf.xlu0
        %v4277 = vpop.trf.xlu0
        %v4278 = vpop.trf.xlu0
        %4279 = vxpose.xlu0.b32.start [1/16] %v3906, 128
        %4280 = vxpose.xlu0.b32.cont [2/16] 0.0, 128
        %4281 = vxpose.xlu0.b32.cont [3/16] 0.0, 128
        %4282 = vxpose.xlu0.b32.cont [4/16] 0.0, 128
        %4283 = vxpose.xlu0.b32.cont [5/16] 0.0, 128
        %4284 = vxpose.xlu0.b32.cont [6/16] 0.0, 128
        %4285 = vxpose.xlu0.b32.cont [7/16] 0.0, 128
        %4286 = vxpose.xlu0.b32.cont [8/16] 0.0, 128
        %4287 = vxpose.xlu0.b32.cont [9/16] 0.0, 128
        %4288 = vxpose.xlu0.b32.cont [10/16] 0.0, 128
        %4289 = vxpose.xlu0.b32.cont [11/16] 0.0, 128
        %4290 = vxpose.xlu0.b32.cont [12/16] 0.0, 128
        %4291 = vxpose.xlu0.b32.cont [13/16] 0.0, 128
        %4292 = vxpose.xlu0.b32.cont [14/16] 0.0, 128
        %4293 = vxpose.xlu0.b32.cont [15/16] 0.0, 128
        %4294 = vxpose.xlu0.b32.end [16/16] 0.0, 128
        %v4295 = vpop.trf.xlu0
        %v4296 = vpop.trf.xlu0
        %v4297 = vpop.trf.xlu0
        %v4298 = vpop.trf.xlu0
        %v4299 = vpop.trf.xlu0
        %v4300 = vpop.trf.xlu0
        %v4301 = vpop.trf.xlu0
        %v4302 = vpop.trf.xlu0
        %v4303 = vpop.trf.xlu0
        %v4304 = vpop.trf.xlu0
        %v4305 = vpop.trf.xlu0
        %v4306 = vpop.trf.xlu0
        %v4307 = vpop.trf.xlu0
        %v4308 = vpop.trf.xlu0
        %v4309 = vpop.trf.xlu0
        %v4310 = vpop.trf.xlu0
        %4311 = vxpose.xlu0.b32.start [1/16] %v4011, 128
        %4312 = vxpose.xlu0.b32.cont [2/16] 0.0, 128
        %4313 = vxpose.xlu0.b32.cont [3/16] 0.0, 128
        %4314 = vxpose.xlu0.b32.cont [4/16] 0.0, 128
        %4315 = vxpose.xlu0.b32.cont [5/16] 0.0, 128
        %4316 = vxpose.xlu0.b32.cont [6/16] 0.0, 128
        %4317 = vxpose.xlu0.b32.cont [7/16] 0.0, 128
        %4318 = vxpose.xlu0.b32.cont [8/16] 0.0, 128
        %4319 = vxpose.xlu0.b32.cont [9/16] 0.0, 128
        %4320 = vxpose.xlu0.b32.cont [10/16] 0.0, 128
        %4321 = vxpose.xlu0.b32.cont [11/16] 0.0, 128
        %4322 = vxpose.xlu0.b32.cont [12/16] 0.0, 128
        %4323 = vxpose.xlu0.b32.cont [13/16] 0.0, 128
        %4324 = vxpose.xlu0.b32.cont [14/16] 0.0, 128
        %4325 = vxpose.xlu0.b32.cont [15/16] 0.0, 128
        %4326 = vxpose.xlu0.b32.end [16/16] 0.0, 128
        %v4327 = vpop.trf.xlu0
        %v4328 = vpop.trf.xlu0
        %v4329 = vpop.trf.xlu0
        %v4330 = vpop.trf.xlu0
        %v4331 = vpop.trf.xlu0
        %v4332 = vpop.trf.xlu0
        %v4333 = vpop.trf.xlu0
        %v4334 = vpop.trf.xlu0
        %v4335 = vpop.trf.xlu0
        %v4336 = vpop.trf.xlu0
        %v4337 = vpop.trf.xlu0
        %v4338 = vpop.trf.xlu0
        %v4339 = vpop.trf.xlu0
        %v4340 = vpop.trf.xlu0
        %v4341 = vpop.trf.xlu0
        %v4342 = vpop.trf.xlu0
        %4343 = vxpose.xlu0.b32.start [1/16] %v4116, 128
        %4344 = vxpose.xlu0.b32.cont [2/16] 0.0, 128
        %4345 = vxpose.xlu0.b32.cont [3/16] 0.0, 128
        %4346 = vxpose.xlu0.b32.cont [4/16] 0.0, 128
        %4347 = vxpose.xlu0.b32.cont [5/16] 0.0, 128
        %4348 = vxpose.xlu0.b32.cont [6/16] 0.0, 128
        %4349 = vxpose.xlu0.b32.cont [7/16] 0.0, 128
        %4350 = vxpose.xlu0.b32.cont [8/16] 0.0, 128
        %4351 = vxpose.xlu0.b32.cont [9/16] 0.0, 128
        %4352 = vxpose.xlu0.b32.cont [10/16] 0.0, 128
        %4353 = vxpose.xlu0.b32.cont [11/16] 0.0, 128
        %4354 = vxpose.xlu0.b32.cont [12/16] 0.0, 128
        %4355 = vxpose.xlu0.b32.cont [13/16] 0.0, 128
        %4356 = vxpose.xlu0.b32.cont [14/16] 0.0, 128
        %4357 = vxpose.xlu0.b32.cont [15/16] 0.0, 128
        %4358 = vxpose.xlu0.b32.end [16/16] 0.0, 128
        %v4359 = vpop.trf.xlu0
        %v4360 = vpop.trf.xlu0
        %v4361 = vpop.trf.xlu0
        %v4362 = vpop.trf.xlu0
        %v4363 = vpop.trf.xlu0
        %v4364 = vpop.trf.xlu0
        %v4365 = vpop.trf.xlu0
        %v4366 = vpop.trf.xlu0
        %v4367 = vpop.trf.xlu0
        %v4368 = vpop.trf.xlu0
        %v4369 = vpop.trf.xlu0
        %v4370 = vpop.trf.xlu0
        %v4371 = vpop.trf.xlu0
        %v4372 = vpop.trf.xlu0
        %v4373 = vpop.trf.xlu0
        %v4374 = vpop.trf.xlu0
        %v4375 = vcombine.low %v4135, %v4199
        %v4376 = vcombine.high %v4135, %v4199
        %v4378 = vunpack.c.l.s4 1983009808
        %v4379 = vunpack.c.0.s8 %v4378
        %v4380 = vlaneseq
        %v4381 = vshrl.u32 %v4380, 7
        %v4382 = vsub.s32 %v4379, %v4381
        %v4383 = vrot.slane %v4375, %v4382
        %v4385 = vunpack.c.l.s4 1983009808
        %v4386 = vunpack.c.0.s8 %v4385
        %v4387 = vlaneseq
        %v4388 = vshrl.u32 %v4387, 7
        %v4389 = vsub.s32 %v4386, %v4388
        %v4390 = vrot.slane %v4376, %v4389
        %v4391 = vcombine.low %v4167, %v4231
        %v4392 = vcombine.high %v4167, %v4231
        %v4394 = vunpack.c.l.s4 1983009808
        %v4395 = vunpack.c.0.s8 %v4394
        %v4396 = vlaneseq
        %v4397 = vshrl.u32 %v4396, 7
        %v4398 = vsub.s32 %v4395, %v4397
        %v4399 = vrot.slane %v4391, %v4398
        %v4401 = vunpack.c.l.s4 1983009808
        %v4402 = vunpack.c.0.s8 %v4401
        %v4403 = vlaneseq
        %v4404 = vshrl.u32 %v4403, 7
        %v4405 = vsub.s32 %v4402, %v4404
        %v4406 = vrot.slane %v4392, %v4405
        %v4407 = vcombine.low %v4263, %v4327
        %v4408 = vcombine.high %v4263, %v4327
        %v4410 = vunpack.c.l.s4 1983009808
        %v4411 = vunpack.c.0.s8 %v4410
        %v4412 = vlaneseq
        %v4413 = vshrl.u32 %v4412, 7
        %v4414 = vsub.s32 %v4411, %v4413
        %v4415 = vrot.slane %v4407, %v4414
        %v4417 = vunpack.c.l.s4 1983009808
        %v4418 = vunpack.c.0.s8 %v4417
        %v4419 = vlaneseq
        %v4420 = vshrl.u32 %v4419, 7
        %v4421 = vsub.s32 %v4418, %v4420
        %v4422 = vrot.slane %v4408, %v4421
        %v4423 = vcombine.low %v4295, %v4359
        %v4424 = vcombine.high %v4295, %v4359
        %v4426 = vunpack.c.l.s4 1983009808
        %v4427 = vunpack.c.0.s8 %v4426
        %v4428 = vlaneseq
        %v4429 = vshrl.u32 %v4428, 7
        %v4430 = vsub.s32 %v4427, %v4429
        %v4431 = vrot.slane %v4423, %v4430
        %v4433 = vunpack.c.l.s4 1983009808
        %v4434 = vunpack.c.0.s8 %v4433
        %v4435 = vlaneseq
        %v4436 = vshrl.u32 %v4435, 7
        %v4437 = vsub.s32 %v4434, %v4436
        %v4438 = vrot.slane %v4424, %v4437
        %v4439 = vcombine.low %v4383, %v4399
        %v4440 = vcombine.high %v4383, %v4399
        %v4442 = vunpack.c.l.s4 1934713408
        %v4443 = vunpack.c.0.s8 %v4442
        %v4444 = vlaneseq
        %v4445 = vshrl.u32 %v4444, 7
        %v4446 = vsub.s32 %v4443, %v4445
        %v4447 = vrot.slane %v4439, %v4446
        %v4449 = vunpack.c.l.s4 1934713408
        %v4450 = vunpack.c.0.s8 %v4449
        %v4451 = vlaneseq
        %v4452 = vshrl.u32 %v4451, 7
        %v4453 = vsub.s32 %v4450, %v4452
        %v4454 = vrot.slane %v4440, %v4453
        %v4455 = vcombine.low %v4390, %v4406
        %v4456 = vcombine.high %v4390, %v4406
        %v4458 = vunpack.c.l.s4 1934713408
        %v4459 = vunpack.c.0.s8 %v4458
        %v4460 = vlaneseq
        %v4461 = vshrl.u32 %v4460, 7
        %v4462 = vsub.s32 %v4459, %v4461
        %v4463 = vrot.slane %v4455, %v4462
        %v4465 = vunpack.c.l.s4 1934713408
        %v4466 = vunpack.c.0.s8 %v4465
        %v4467 = vlaneseq
        %v4468 = vshrl.u32 %v4467, 7
        %v4469 = vsub.s32 %v4466, %v4468
        %v4470 = vrot.slane %v4456, %v4469
        %v4471 = vcombine.low %v4415, %v4431
        %v4472 = vcombine.high %v4415, %v4431
        %v4474 = vunpack.c.l.s4 1934713408
        %v4475 = vunpack.c.0.s8 %v4474
        %v4476 = vlaneseq
        %v4477 = vshrl.u32 %v4476, 7
        %v4478 = vsub.s32 %v4475, %v4477
        %v4479 = vrot.slane %v4471, %v4478
        %v4481 = vunpack.c.l.s4 1934713408
        %v4482 = vunpack.c.0.s8 %v4481
        %v4483 = vlaneseq
        %v4484 = vshrl.u32 %v4483, 7
        %v4485 = vsub.s32 %v4482, %v4484
        %v4486 = vrot.slane %v4472, %v4485
        %v4487 = vcombine.low %v4422, %v4438
        %v4488 = vcombine.high %v4422, %v4438
        %v4490 = vunpack.c.l.s4 1934713408
        %v4491 = vunpack.c.0.s8 %v4490
        %v4492 = vlaneseq
        %v4493 = vshrl.u32 %v4492, 7
        %v4494 = vsub.s32 %v4491, %v4493
        %v4495 = vrot.slane %v4487, %v4494
        %v4497 = vunpack.c.l.s4 1934713408
        %v4498 = vunpack.c.0.s8 %v4497
        %v4499 = vlaneseq
        %v4500 = vshrl.u32 %v4499, 7
        %v4501 = vsub.s32 %v4498, %v4500
        %v4502 = vrot.slane %v4488, %v4501
        %v4503 = vcombine.low %v4447, %v4479
        %v4504 = vcombine.high %v4447, %v4479
        %v4505 = vcombine.low %v4454, %v4486
        %v4506 = vcombine.high %v4454, %v4486
        %v4507 = vcombine.low %v4463, %v4495
        %v4508 = vcombine.high %v4463, %v4495
        %v4509 = vcombine.low %v4470, %v4502
        %v4510 = vcombine.high %v4470, %v4502
        %4519 = vrot.lane.b32.xlu0 %v4503, 8
        %v4520 = vpop.permute.xlu0 %4519
        %4521 = vrot.lane.b32.xlu0 %v4504, 8
        %v4522 = vpop.permute.xlu0 %4521
        %4523 = vrot.lane.b32.xlu0 %v4505, 8
        %v4524 = vpop.permute.xlu0 %4523
        %4525 = vrot.lane.b32.xlu0 %v4506, 8
        %v4526 = vpop.permute.xlu0 %4525
        %4527 = vrot.lane.b32.xlu0 %v4507, 8
        %v4528 = vpop.permute.xlu0 %4527
        %4529 = vrot.lane.b32.xlu0 %v4508, 8
        %v4530 = vpop.permute.xlu0 %4529
        %4531 = vrot.lane.b32.xlu0 %v4509, 8
        %v4532 = vpop.permute.xlu0 %4531
        %4533 = vrot.lane.b32.xlu0 %v4510, 8
        %v4534 = vpop.permute.xlu0 %4533
        %vm4543 = vcmask 64512
        %v4544 = vsel %vm4543, %v397, %v4520
        %v4545 = vsel %vm4543, %v470, %v4522
        %v4546 = vsel %vm4543, %v543, %v4524
        %v4547 = vsel %vm4543, %v616, %v4526
        %v4548 = vsel %vm4543, %v689, %v4528
        %v4549 = vsel %vm4543, %v762, %v4530
        %v4550 = vsel %vm4543, %v835, %v4532
        %v4551 = vsel %vm4543, %v908, %v4534
        %vm4552 = vcmask 130048
        %v4554 = vsel %vm4552, %v4544, 0
        %v4557 = vsel %vm4552, %v4545, 0
        %v4560 = vsel %vm4552, %v4546, 0
        %v4563 = vsel %vm4552, %v4547, 0
        %v4566 = vsel %vm4552, %v4548, 0
        %v4569 = vsel %vm4552, %v4549, 0
        %v4572 = vsel %vm4552, %v4550, 0
        %v4575 = vsel %vm4552, %v4551, 0
        %4577 = vmatprep.subr.mxu0 0.0
        %4578 = vmatpush1.msra.mxu0 %v324
        %4579 = vmatprep.subr.mxu0 0.0
        %4580 = vmatpush1.msra.mxu0 %v325
        %4581 = vmatprep.subr.mxu0 0.0
        %4582 = vmatpush1.msra.mxu0 0.0
        %4583 = vmatprep.subr.mxu0 0.0
        %4584 = vmatpush1.msra.mxu0 0.0
        %4585 = vmatprep.subr.mxu0 0.0
        %4586 = vmatpush1.msra.mxu0 0.0
        %4587 = vmatprep.subr.mxu0 0.0
        %4588 = vmatpush1.msra.mxu0 0.0
        %4589 = vmatprep.subr.mxu0 0.0
        %4590 = vmatpush1.msra.mxu0 0.0
        %4591 = vmatprep.subr.mxu0 0.0
        %4592 = vmatpush1.msra.mxu0 0.0
        %4593 = vmatprep.subr.mxu0 0.0
        %4594 = vmatpush1.msra.mxu0 0.0
        %4595 = vmatprep.subr.mxu0 0.0
        %4596 = vmatpush1.msra.mxu0 0.0
        %4597 = vmatprep.subr.mxu0 0.0
        %4598 = vmatpush1.msra.mxu0 0.0
        %4599 = vmatprep.subr.mxu0 0.0
        %4600 = vmatpush1.msra.mxu0 0.0
        %4601 = vmatprep.subr.mxu0 0.0
        %4602 = vmatpush1.msra.mxu0 0.0
        %4603 = vmatprep.subr.mxu0 0.0
        %4604 = vmatpush1.msra.mxu0 0.0
        %4605 = vmatprep.subr.mxu0 0.0
        %4606 = vmatpush1.msra.mxu0 0.0
        %4607 = vmatprep.subr.mxu0 0.0
        %4608 = vmatpush1.msra.mxu0 0.0
        %4609 = vmatprep.subr.mxu0 0.0
        %4610 = vmatpush1.msra.mxu0 0.0
        %4611 = vmatprep.subr.mxu0 0.0
        %4612 = vmatpush1.msra.mxu0 0.0
        %4613 = vmatprep.subr.mxu0 0.0
        %4614 = vmatpush1.msra.mxu0 0.0
        %4615 = vmatprep.subr.mxu0 0.0
        %4616 = vmatpush1.msra.mxu0 0.0
        %4617 = vmatprep.subr.mxu0 0.0
        %4618 = vmatpush1.msra.mxu0 0.0
        %4619 = vmatprep.subr.mxu0 0.0
        %4620 = vmatpush1.msra.mxu0 0.0
        %4621 = vmatprep.subr.mxu0 0.0
        %4622 = vmatpush1.msra.mxu0 0.0
        %4623 = vmatprep.subr.mxu0 0.0
        %4624 = vmatpush1.msra.mxu0 0.0
        %4625 = vmatprep.subr.mxu0 0.0
        %4626 = vmatpush1.msra.mxu0 0.0
        %4627 = vmatprep.subr.mxu0 0.0
        %4628 = vmatpush1.msra.mxu0 0.0
        %4629 = vmatprep.subr.mxu0 0.0
        %4630 = vmatpush1.msra.mxu0 0.0
        %4631 = vmatprep.subr.mxu0 0.0
        %4632 = vmatpush1.msra.mxu0 0.0
        %4633 = vmatprep.subr.mxu0 0.0
        %4634 = vmatpush1.msra.mxu0 0.0
        %4635 = vmatprep.subr.mxu0 0.0
        %4636 = vmatpush1.msra.mxu0 0.0
        %4637 = vmatprep.subr.mxu0 0.0
        %4638 = vmatpush1.msra.mxu0 0.0
        %4639 = vmatprep.subr.mxu0 0.0
        %4640 = vmatpush1.msra.mxu0 0.0
        %4641 = vmatprep.mubr.f32.mxu0 0.0
        %4642 = vmatmul.mubr.f32.gmra.mrb[0].mxu0 %v4554
        %v4643 = vpop.f32.mrb[0].mxu0
        %v4644 = vadd.f32 0.0, %v4643
        %v4645 = vpop.f32.mrb[0].mxu0
        %4646 = vmatprep.mubr.f32.mxu0 0.0
        %4647 = vmatmul.mubr.f32.gmra.mrb[0].mxu0 %v4557
        %v4648 = vpop.f32.mrb[0].mxu0
        %v4649 = vadd.f32 0.0, %v4648
        %v4650 = vpop.f32.mrb[0].mxu0
        %4651 = vmatprep.mubr.f32.mxu0 0.0
        %4652 = vmatmul.mubr.f32.gmra.mrb[0].mxu0 %v4560
        %v4653 = vpop.f32.mrb[0].mxu0
        %v4654 = vadd.f32 0.0, %v4653
        %v4655 = vpop.f32.mrb[0].mxu0
        %4656 = vmatprep.mubr.f32.mxu0 0.0
        %4657 = vmatmul.mubr.f32.gmra.mrb[0].mxu0 %v4563
        %v4658 = vpop.f32.mrb[0].mxu0
        %v4659 = vadd.f32 0.0, %v4658
        %v4660 = vpop.f32.mrb[0].mxu0
        %4661 = vmatprep.mubr.f32.mxu0 0.0
        %4662 = vmatmul.mubr.f32.gmra.mrb[0].mxu0 %v4566
        %v4663 = vpop.f32.mrb[0].mxu0
        %v4664 = vadd.f32 0.0, %v4663
        %v4665 = vpop.f32.mrb[0].mxu0
        %4666 = vmatprep.mubr.f32.mxu0 0.0
        %4667 = vmatmul.mubr.f32.gmra.mrb[0].mxu0 %v4569
        %v4668 = vpop.f32.mrb[0].mxu0
        %v4669 = vadd.f32 0.0, %v4668
        %v4670 = vpop.f32.mrb[0].mxu0
        %4671 = vmatprep.mubr.f32.mxu0 0.0
        %4672 = vmatmul.mubr.f32.gmra.mrb[0].mxu0 %v4572
        %v4673 = vpop.f32.mrb[0].mxu0
        %v4674 = vadd.f32 0.0, %v4673
        %v4675 = vpop.f32.mrb[0].mxu0
        %4676 = vmatprep.mubr.f32.mxu0 0.0
        %4677 = vmatmul.mubr.f32.gmra.mrb[0].mxu0 %v4575
        %v4678 = vpop.f32.mrb[0].mxu0
        %v4679 = vadd.f32 0.0, %v4678
        %v4680 = vpop.f32.mrb[0].mxu0
        %4681 = vdwg.mxu0
        %vm4682 = vcmask 523264
        %4683 = vst.msk [vmem:[%s233] sm:$0xff] %vm4682, %v4644
        %4684 = vst.msk [vmem:[%s233 + $0x8] sm:$0xff] %vm4682, %v4649
        %4685 = vst.msk [vmem:[%s233 + $0x10] sm:$0xff] %vm4682, %v4654
        %4686 = vst.msk [vmem:[%s233 + $0x18] sm:$0xff] %vm4682, %v4659
        %4687 = vst.msk [vmem:[%s233 + $0x20] sm:$0xff] %vm4682, %v4664
        %4688 = vst.msk [vmem:[%s233 + $0x28] sm:$0xff] %vm4682, %v4669
        %4689 = vst.msk [vmem:[%s233 + $0x30] sm:$0xff] %vm4682, %v4674
        %4690 = vst.msk [vmem:[%s233 + $0x38] sm:$0xff] %vm4682, %v4679
        %s4691 = sand.u32 %s136, 1
        %s4692 = scalar_lea.sflag [#allocation3], %s4691
        %s4693 = sand.u32 %s136, 1
        %s4694 = smul.addr %s4693, 64
        %s4695 = scalar_lea.vmem [#allocation2], %s4694
        // Predicated region
        $region37: #{tpu_custom_call.1} parent=35 // pred_check
          %p4696 = pneg %p146
        $region38: #{tpu_custom_call.1} parent=35 // pred_check_branch
          %4698 = sbr.rel (%p4696) target = $region40
        $region39: #{tpu_custom_call.1} parent=35 // pred_region
          %s4699 = smul.u32 8, %s23
          %s4701 = ssub.s32 1024, 1024
          %4702 = vsyncadd %s4692, %s4701
          %s4703 = smul.addr %s22, 8
          %s4704 = sadd.s32 %s4699, %s4703
          %s4705 = smul.addr %s4704, 128
          %s4706 = scalar_lea.hbm %s4, %s4705
          %s4707 = sshll.u32 %s4695, 4
          %s4708 = int_to_ptr.vmem [resolvable:$true] %s4707
          %4713 = dma.vmem_to_hbm [thread:$0]  %s4708, 1024, %s4706, %s4692, 128, 128, 8
        $region40: #{tpu_custom_call.1} parent=35 // pred_fallthru
          _
      $region36: #{tpu_custom_call.1} parent=5 // pred_fallthru
        _
      %p4714 = scmp.le.s32.totalorder 2, %s13
      // Predicated region
      $region41: #{tpu_custom_call.1} parent=5 // pred_check
        %p4715 = pneg %p4714
      $region42: #{tpu_custom_call.1} parent=5 // pred_check_branch
        %4717 = sbr.rel (%p4715) target = $region44
      $region43: #{tpu_custom_call.1} parent=5 // pred_region
        %s4718 = ssub.s32 %s13, 2
        // Predicated region
        $region45: #{tpu_custom_call.1} parent=43 // pred_check
          %p4719 = pneg %p152
        $region46: #{tpu_custom_call.1} parent=43 // pred_check_branch
          %4721 = sbr.rel (%p4719) target = $region48
        $region47: #{tpu_custom_call.1} parent=43 // pred_region
          %s4722 = sand.u32 %s137, 1
          %s4723 = scalar_lea.sflag [#allocation3], %s4722
          %s4724 = sand.u32 %s137, 1
          %s4725 = smul.addr %s4724, 64
          %s4726 = scalar_lea.vmem [#allocation2], %s4725
          %4727 = dma.done %s4723, 1024
        $region48: #{tpu_custom_call.1} parent=43 // pred_fallthru
          _
      $region44: #{tpu_custom_call.1} parent=5 // pred_fallthru
        _
    $region6: #{tpu_custom_call.1} parent=1 // loop_footer
      %s17 = sadd.s32 1, %s13
    $region7: #{tpu_custom_call.1} parent=1 // loop_footer_branch
      %12 = sbr.rel target = $region3
    $region8: #{tpu_custom_call.1} parent=1 // loop_exit
      _
    %4728 = vsyncpa [#allocation3], 1
    %s4729 = scalar_lea.sflag [#allocation3], 1
    %4730 = vsyncpa %s4729, 1

</llo_original>
